<compile_context>
chip_gen: v7x
topology: tpu7x:2x2x1
jax: 0.10.0
libtpu: 0.0.40
codegen_flags: <defaults>
</compile_context>

<pallas_src>
import functools

import jax
import jax.numpy as jnp
from jax.experimental import pallas as pl
from jax.experimental.pallas import tpu as pltpu

# Matmul operand dtype. f32 keeps parity with the PyTorch reference; set to
# jnp.bfloat16 on v6e / v7x for ~2x MXU throughput and half the weight DMA
# bytes (accumulation stays f32 via preferred_element_type).
_MATMUL_DTYPE = jnp.float32


# --------------------------------------------------------------------------
# In-kernel math helpers
# --------------------------------------------------------------------------
def _erf(x):
    # Abramowitz & Stegun 7.1.26 (max abs err ~1.5e-7): exact-erf GELU without
    # relying on an erf primitive lowering; only exp / mul / add / div (EUP/VPU).
    a1, a2, a3, a4, a5 = 0.254829592, -0.284496736, 1.421413741, -1.453152027, 1.061405429
    p = 0.3275911
    sgn = jnp.where(x < 0.0, -1.0, 1.0)
    ax = jnp.abs(x)
    t = 1.0 / (1.0 + p * ax)
    poly = ((((a5 * t + a4) * t + a3) * t + a2) * t + a1) * t
    return sgn * (1.0 - poly * jnp.exp(-ax * ax))


def _gelu(x):
    return 0.5 * x * (1.0 + _erf(x * 0.7071067811865476))


# --------------------------------------------------------------------------
# Fused ViT kernel: grid = (batch, layer)
# --------------------------------------------------------------------------
def _vit_kernel(patches_ref, pw_ref, pb_ref, cls_ref, pos_ref,
                ln1_g_ref, ln1_b_ref, qkv_w_ref, qkv_b_ref,
                out_w_ref, out_b_ref, ln2_g_ref, ln2_b_ref,
                w1_ref, b1_ref, w2_ref, b2_ref,
                hln_g_ref, hln_b_ref, hw_ref, hb_ref,
                logits_ref,
                tok, qkv_s,
                *, N, S, H, eps):
    layer = pl.program_id(1)
    n_layers = pl.num_programs(1)
    S_pad, D = tok.shape
    dh = D // H
    scale = 1.0 / float(dh) ** 0.5

    def mm(a, w):
        return jnp.dot(a.astype(_MATMUL_DTYPE), w.astype(_MATMUL_DTYPE),
                       preferred_element_type=jnp.float32)

    def layernorm(x, g, b):
        mu = jnp.mean(x, axis=-1, keepdims=True)
        var = jnp.mean(jnp.square(x - mu), axis=-1, keepdims=True)
        return (x - mu) * jax.lax.rsqrt(var + eps) * g + b

    # ---- layer 0: fused patch embedding + class token + positional embed ----
    @pl.when(layer == 0)
    def _():
        emb = mm(patches_ref[0], pw_ref[...]) + pb_ref[...]            # (N, D)
        tok[...] = jnp.zeros((S_pad, D), jnp.float32)                  # pad rows = 0
        tok[0:1, :] = cls_ref[...] + pos_ref[0:1, :]
        tok[1:1 + N, :] = emb + pos_ref[1:1 + N, :]

    x = tok[...]                                                       # (S_pad, D)

    # ---- multi-head self-attention block (pre-LN), residual fused ----
    xn = layernorm(x, ln1_g_ref[0], ln1_b_ref[0])
    qkv_s[...] = mm(xn, qkv_w_ref[0]) + qkv_b_ref[0]                   # (S_pad, 3D)

    # mask out padded key positions (j >= S) for every query row
    key_mask = jnp.where(
        jax.lax.broadcasted_iota(jnp.int32, (S_pad, S_pad), 1) < S,
        0.0, -1e30).astype(jnp.float32)

    for h in range(H):                                 # static unroll, H small
        q = qkv_s[:, h * dh:(h + 1) * dh]
        k = qkv_s[:, D + h * dh:D + (h + 1) * dh]
        v = qkv_s[:, 2 * D + h * dh:2 * D + (h + 1) * dh]
        s = jax.lax.dot_general(q, k, (((1,), (1,)), ((), ())),        # q @ k^T
                                preferred_element_type=jnp.float32)
        s = s * scale + key_mask
        m = jnp.max(s, axis=-1, keepdims=True)
        p = jnp.exp(s - m)
        p = p / jnp.sum(p, axis=-1, keepdims=True)
        # q-columns of head h are dead after this point: reuse them to stage
        # the head output so the out-projection becomes ONE full-width matmul.
        qkv_s[:, h * dh:(h + 1) * dh] = mm(p, v)                       # (S_pad, dh)

    attn = mm(qkv_s[:, 0:D], out_w_ref[0])                             # (S_pad, D)
    x = x + attn + out_b_ref[0]                                        # residual 1

    # ---- MLP block (pre-LN), residual fused ----
    xn2 = layernorm(x, ln2_g_ref[0], ln2_b_ref[0])
    hmid = _gelu(mm(xn2, w1_ref[0]) + b1_ref[0])
    x = x + mm(hmid, w2_ref[0]) + b2_ref[0]                            # residual 2

    tok[...] = x

    # ---- classifier head on the class token (last layer only) ----
    @pl.when(layer == n_layers - 1)
    def _():
        cn = layernorm(x[0:1, :], hln_g_ref[...], hln_b_ref[...])
        logits_ref[0] = mm(cn, hw_ref[...]) + hb_ref[...]


# --------------------------------------------------------------------------
# Wrapper: one pallas_call for the whole forward pass
# --------------------------------------------------------------------------
def vit_forward(params, x, *, patch_size, num_heads):
    B, C, Himg, Wimg = x.shape
    P = patch_size
    nph, npw = Himg // P, Wimg // P
    N = nph * npw
    patch_dim = C * P * P
    D = params["cls"].shape[-1]
    S = N + 1
    S_pad = ((S + 7) // 8) * 8
    L = params["ln1_g"].shape[0]
    MLP = params["mlp_w1"].shape[-1]
    num_classes = params["head_w"].shape[-1]
    dh = D // num_heads

    # patchify: Conv2d(k=P, stride=P) == patch extraction + matmul.
    # TODO(synk): this NCHW->(B,N,C*P*P) re-layout stays in XLA (pure copy).
    patches = (x.reshape(B, C, nph, P, npw, P)
                 .transpose(0, 2, 4, 1, 3, 5)
                 .reshape(B, N, patch_dim))

    def lyr(a):   # per-layer stacked weight: pipeline next layer behind compute
        return pl.BlockSpec((1,) + a.shape[1:], lambda b, l: (l, 0, 0))

    def whole(a):  # small constant operands: fetched once, stay resident
        nd = a.ndim
        return pl.BlockSpec(a.shape, lambda b, l, _nd=nd: (0,) * _nd)

    in_specs = [
        pl.BlockSpec((1, N, patch_dim), lambda b, l: (b, 0, 0)),   # patches
        whole(params["patch_w"]), whole(params["patch_b"]),
        whole(params["cls"]), whole(params["pos"]),
        lyr(params["ln1_g"]), lyr(params["ln1_b"]),
        lyr(params["qkv_w"]), lyr(params["qkv_b"]),
        lyr(params["out_w"]), lyr(params["out_b"]),
        lyr(params["ln2_g"]), lyr(params["ln2_b"]),
        lyr(params["mlp_w1"]), lyr(params["mlp_b1"]),
        lyr(params["mlp_w2"]), lyr(params["mlp_b2"]),
        whole(params["head_ln_g"]), whole(params["head_ln_b"]),
        whole(params["head_w"]), whole(params["head_b"]),
    ]
    out_spec = pl.BlockSpec((1, 1, num_classes), lambda b, l: (b, 0, 0))

    flops = int(
        2 * B * N * patch_dim * D
        + 2 * B * L * S_pad * (D * 3 * D + num_heads * 2 * S_pad * dh
                               + D * D + 2 * D * MLP)
        + 2 * B * D * num_classes)
    transcend = int(B * L * (num_heads * S_pad * S_pad + S_pad * MLP))
    bytes_accessed = int(
        sum(int(a.size) * 4 for a in jax.tree_util.tree_leaves(params))
        + patches.size * 4 + B * num_classes * 4)

    logits = pl.pallas_call(
        functools.partial(_vit_kernel, N=N, S=S, H=num_heads, eps=1e-5),
        out_shape=jax.ShapeDtypeStruct((B, 1, num_classes), jnp.float32),
        grid=(B, L),
        in_specs=in_specs,
        out_specs=out_spec,
        scratch_shapes=[
            pltpu.VMEM((S_pad, D), jnp.float32),      # resident token slab
            pltpu.VMEM((S_pad, 3 * D), jnp.float32),  # qkv slab (head slicing)
        ],
        compiler_params=pltpu.CompilerParams(
            dimension_semantics=("parallel", "arbitrary")),
        cost_estimate=pl.CostEstimate(flops=flops, transcendentals=transcend,
                                      bytes_accessed=bytes_accessed),
    )(patches, params["patch_w"], params["patch_b"], params["cls"], params["pos"],
      params["ln1_g"], params["ln1_b"], params["qkv_w"], params["qkv_b"],
      params["out_w"], params["out_b"], params["ln2_g"], params["ln2_b"],
      params["mlp_w1"], params["mlp_b1"], params["mlp_w2"], params["mlp_b2"],
      params["head_ln_g"], params["head_ln_b"], params["head_w"], params["head_b"])
    return logits.reshape(B, num_classes)


# --------------------------------------------------------------------------
# Pure-JAX reference (same math) for in-script validation
# --------------------------------------------------------------------------
def vit_forward_ref(params, x, *, patch_size, num_heads):
    B, C, Himg, Wimg = x.shape
    P = patch_size
    nph, npw = Himg // P, Wimg // P
    N = nph * npw
    D = params["cls"].shape[-1]
    S = N + 1
    dh = D // num_heads
    scale = 1.0 / dh ** 0.5

    patches = (x.reshape(B, C, nph, P, npw, P)
                 .transpose(0, 2, 4, 1, 3, 5).reshape(B, N, C * P * P))
    emb = patches @ params["patch_w"] + params["patch_b"]
    cls = jnp.broadcast_to(params["cls"][None], (B, 1, D))
    tokens = jnp.concatenate([cls, emb], axis=1) + params["pos"][None]

    def ln(v, g, b, eps=1e-5):
        mu = v.mean(-1, keepdims=True)
        var = ((v - mu) ** 2).mean(-1, keepdims=True)
        return (v - mu) * jax.lax.rsqrt(var + eps) * g + b

    L = params["ln1_g"].shape[0]
    for l in range(L):
        xn = ln(tokens, params["ln1_g"][l], params["ln1_b"][l])
        qkv = xn @ params["qkv_w"][l] + params["qkv_b"][l]
        q, k, v = jnp.split(qkv, 3, axis=-1)
        q = q.reshape(B, S, num_heads, dh).transpose(0, 2, 1, 3)
        k = k.reshape(B, S, num_heads, dh).transpose(0, 2, 1, 3)
        v = v.reshape(B, S, num_heads, dh).transpose(0, 2, 1, 3)
        s = jnp.einsum("bhqd,bhkd->bhqk", q, k) * scale
        p = jax.nn.softmax(s, axis=-1)
        o = jnp.einsum("bhqk,bhkd->bhqd", p, v).transpose(0, 2, 1, 3).reshape(B, S, D)
        tokens = tokens + o @ params["out_w"][l] + params["out_b"][l]
        xn2 = ln(tokens, params["ln2_g"][l], params["ln2_b"][l])
        h = xn2 @ params["mlp_w1"][l] + params["mlp_b1"][l]
        h = 0.5 * h * (1.0 + jax.scipy.special.erf(h * 0.7071067811865476))
        tokens = tokens + h @ params["mlp_w2"][l] + params["mlp_b2"][l]

    cls_out = ln(tokens[:, 0], params["head_ln_g"], params["head_ln_b"])
    return cls_out @ params["head_w"] + params["head_b"]


# --------------------------------------------------------------------------
# Deterministic synthetic parameter init (layer weights pre-stacked on axis 0)
# --------------------------------------------------------------------------
def init_params(key, *, in_channels, patch_size, embedding_dim, mlp_size,
                num_heads, num_layers, num_patches, num_classes):
    D = embedding_dim
    patch_dim = in_channels * patch_size * patch_size
    S = num_patches + 1
    ks = iter(jax.random.split(key, 64))

    def nrm(shape, scale=0.02):
        return (scale * jax.random.normal(next(ks), shape)).astype(jnp.float32)

    L = num_layers
    return {
        "cls": jax.random.normal(next(ks), (1, D), dtype=jnp.float32),
        "pos": jax.random.normal(next(ks), (S, D), dtype=jnp.float32),
        "patch_w": nrm((patch_dim, D)),
        "patch_b": nrm((1, D)),
        "ln1_g": 1.0 + nrm((L, 1, D)),
        "ln1_b": nrm((L, 1, D)),
        "qkv_w": nrm((L, D, 3 * D)),
        "qkv_b": nrm((L, 1, 3 * D)),
        "out_w": nrm((L, D, D)),
        "out_b": nrm((L, 1, D)),
        "ln2_g": 1.0 + nrm((L, 1, D)),
        "ln2_b": nrm((L, 1, D)),
        "mlp_w1": nrm((L, D, mlp_size)),
        "mlp_b1": nrm((L, 1, mlp_size)),
        "mlp_w2": nrm((L, mlp_size, D)),
        "mlp_b2": nrm((L, 1, D)),
        "head_ln_g": 1.0 + nrm((1, D)),
        "head_ln_b": nrm((1, D)),
        "head_w": nrm((D, num_classes)),
        "head_b": nrm((1, num_classes)),
    }


# --------------------------------------------------------------------------
if __name__ == "__main__":
    # Small ViT config consistent with the module's constructor.
    # D=128 keeps activations / MLP weights lane-dense (128-lane multiples).
    B, C, IMG = 2, 3, 16
    PATCH = 4
    D, MLP, HEADS, LAYERS, CLASSES = 128, 256, 4, 2, 16
    NUM_PATCHES = (IMG // PATCH) ** 2          # 16 patches -> seq len 17

    key = jax.random.PRNGKey(0)
    kx, kp = jax.random.split(key)
    x = jax.random.normal(kx, (B, C, IMG, IMG), dtype=jnp.float32)
    params = init_params(
        kp, in_channels=C, patch_size=PATCH, embedding_dim=D, mlp_size=MLP,
        num_heads=HEADS, num_layers=LAYERS, num_patches=NUM_PATCHES,
        num_classes=CLASSES)

    fwd = jax.jit(functools.partial(vit_forward, patch_size=PATCH, num_heads=HEADS))
    logits = fwd(params, x)
    jax.block_until_ready(logits)

    assert logits.shape == (B, CLASSES)
    assert bool(jnp.all(jnp.isfinite(logits)))

    ref = vit_forward_ref(params, x, patch_size=PATCH, num_heads=HEADS)
    max_err = float(jnp.max(jnp.abs(logits - ref)))
    assert bool(jnp.allclose(logits, ref, atol=2e-3, rtol=2e-3)), max_err

    print("KERNEL_OK")
</pallas_src>

<mosaic_0001>
module attributes {stable_mosaic.version = 11 : i64} {
  func.func @_vit_kernel(%arg0: i32, %arg1: i32, %arg2: memref<1x16x48xf32, #tpu.memory_space<vmem>>, %arg3: memref<48x128xf32, #tpu.memory_space<vmem>>, %arg4: memref<1x128xf32, #tpu.memory_space<vmem>>, %arg5: memref<1x128xf32, #tpu.memory_space<vmem>>, %arg6: memref<17x128xf32, #tpu.memory_space<vmem>>, %arg7: memref<1x1x128xf32, #tpu.memory_space<vmem>>, %arg8: memref<1x1x128xf32, #tpu.memory_space<vmem>>, %arg9: memref<1x128x384xf32, #tpu.memory_space<vmem>>, %arg10: memref<1x1x384xf32, #tpu.memory_space<vmem>>, %arg11: memref<1x128x128xf32, #tpu.memory_space<vmem>>, %arg12: memref<1x1x128xf32, #tpu.memory_space<vmem>>, %arg13: memref<1x1x128xf32, #tpu.memory_space<vmem>>, %arg14: memref<1x1x128xf32, #tpu.memory_space<vmem>>, %arg15: memref<1x128x256xf32, #tpu.memory_space<vmem>>, %arg16: memref<1x1x256xf32, #tpu.memory_space<vmem>>, %arg17: memref<1x256x128xf32, #tpu.memory_space<vmem>>, %arg18: memref<1x1x128xf32, #tpu.memory_space<vmem>>, %arg19: memref<1x128xf32, #tpu.memory_space<vmem>>, %arg20: memref<1x128xf32, #tpu.memory_space<vmem>>, %arg21: memref<128x16xf32, #tpu.memory_space<vmem>>, %arg22: memref<1x16xf32, #tpu.memory_space<vmem>>, %arg23: memref<1x1x16xf32, #tpu.memory_space<vmem>>, %arg24: memref<24x128xf32, #tpu.memory_space<vmem>>, %arg25: memref<24x384xf32, #tpu.memory_space<vmem>>) attributes {dimension_semantics = [#tpu.dimension_semantics<parallel>, #tpu.dimension_semantics<arbitrary>], iteration_bounds = array<i64: 2, 2>, scalar_prefetch = 0 : i64, scratch_operands = 2 : i64, tpu.core_type = #tpu.core_type<tc>, window_params = [{transform_indices = @transform_0, window_bounds = array<i64: 1, 16, 48>}, {pipeline_mode = #tpu.pipeline_mode<synchronous>, transform_indices = @transform_1, window_bounds = array<i64: 48, 128>}, {pipeline_mode = #tpu.pipeline_mode<synchronous>, transform_indices = @transform_2, window_bounds = array<i64: 1, 128>}, {pipeline_mode = #tpu.pipeline_mode<synchronous>, transform_indices = @transform_3, window_bounds = array<i64: 1, 128>}, {pipeline_mode = #tpu.pipeline_mode<synchronous>, transform_indices = @transform_4, window_bounds = array<i64: 17, 128>}, {transform_indices = @transform_5, window_bounds = array<i64: 1, 1, 128>}, {transform_indices = @transform_6, window_bounds = array<i64: 1, 1, 128>}, {transform_indices = @transform_7, window_bounds = array<i64: 1, 128, 384>}, {transform_indices = @transform_8, window_bounds = array<i64: 1, 1, 384>}, {transform_indices = @transform_9, window_bounds = array<i64: 1, 128, 128>}, {transform_indices = @transform_10, window_bounds = array<i64: 1, 1, 128>}, {transform_indices = @transform_11, window_bounds = array<i64: 1, 1, 128>}, {transform_indices = @transform_12, window_bounds = array<i64: 1, 1, 128>}, {transform_indices = @transform_13, window_bounds = array<i64: 1, 128, 256>}, {transform_indices = @transform_14, window_bounds = array<i64: 1, 1, 256>}, {transform_indices = @transform_15, window_bounds = array<i64: 1, 256, 128>}, {transform_indices = @transform_16, window_bounds = array<i64: 1, 1, 128>}, {pipeline_mode = #tpu.pipeline_mode<synchronous>, transform_indices = @transform_17, window_bounds = array<i64: 1, 128>}, {pipeline_mode = #tpu.pipeline_mode<synchronous>, transform_indices = @transform_18, window_bounds = array<i64: 1, 128>}, {pipeline_mode = #tpu.pipeline_mode<synchronous>, transform_indices = @transform_19, window_bounds = array<i64: 128, 16>}, {pipeline_mode = #tpu.pipeline_mode<synchronous>, transform_indices = @transform_20, window_bounds = array<i64: 1, 16>}, {transform_indices = @transform_21, window_bounds = array<i64: 1, 1, 16>}]} {
    %c0_i32 = arith.constant 0 : i32
    %0 = arith.cmpi eq, %arg1, %c0_i32 : i32
    %1 = arith.extui %0 : i1 to i32
    %c0_i32_0 = arith.constant 0 : i32
    %2 = arith.cmpi ne, %1, %c0_i32_0 : i32
    scf.if %2 {
      %c0_117 = arith.constant 0 : index
      %c0_118 = arith.constant 0 : index
      %c0_119 = arith.constant 0 : index
      %211 = vector.load %arg2[%c0_117, %c0_118, %c0_119] : memref<1x16x48xf32, #tpu.memory_space<vmem>>, vector<1x16x48xf32>
      %212 = vector.shape_cast %211 : vector<1x16x48xf32> to vector<16x48xf32>
      %c0_120 = arith.constant 0 : index
      %c0_121 = arith.constant 0 : index
      %213 = vector.load %arg3[%c0_120, %c0_121] : memref<48x128xf32, #tpu.memory_space<vmem>>, vector<48x128xf32>
      %cst_122 = arith.constant dense<0.000000e+00> : vector<16x128xf32>
      %214 = tpu.matmul %212, %213, %cst_122 {dimension_numbers = #tpu.dot_dimension_numbers<[1], [0], [0], [1], [0, 0, 1, 1], [], []>} : vector<16x48xf32>, vector<48x128xf32>, vector<16x128xf32> -> vector<16x128xf32>
      %c0_123 = arith.constant 0 : index
      %c0_124 = arith.constant 0 : index
      %215 = vector.load %arg4[%c0_123, %c0_124] : memref<1x128xf32, #tpu.memory_space<vmem>>, vector<1x128xf32>
      %216 = vector.broadcast %215 : vector<1x128xf32> to vector<16x128xf32>
      %217 = arith.addf %214, %216 : vector<16x128xf32>
      %cst_125 = arith.constant 0.000000e+00 : f32
      %218 = vector.broadcast %cst_125 : f32 to vector<24x128xf32>
      %c0_126 = arith.constant 0 : index
      %c0_127 = arith.constant 0 : index
      %219 = vector.load %arg24[%c0_126, %c0_127] : memref<24x128xf32, #tpu.memory_space<vmem>>, vector<24x128xf32>
      tpu.vector_store %arg24[%c0_126, %c0_127], %218 {strides = array<i32>} : memref<24x128xf32, #tpu.memory_space<vmem>>, vector<24x128xf32>,
      %c0_128 = arith.constant 0 : index
      %c0_129 = arith.constant 0 : index
      %220 = vector.load %arg5[%c0_128, %c0_129] : memref<1x128xf32, #tpu.memory_space<vmem>>, vector<1x128xf32>
      %c0_130 = arith.constant 0 : index
      %c0_131 = arith.constant 0 : index
      %221 = vector.load %arg6[%c0_130, %c0_131] : memref<17x128xf32, #tpu.memory_space<vmem>>, vector<1x128xf32>
      %222 = arith.addf %220, %221 : vector<1x128xf32>
      %c0_132 = arith.constant 0 : index
      %c0_133 = arith.constant 0 : index
      %223 = vector.load %arg24[%c0_132, %c0_133] : memref<24x128xf32, #tpu.memory_space<vmem>>, vector<1x128xf32>
      tpu.vector_store %arg24[%c0_132, %c0_133], %222 {strides = array<i32>} : memref<24x128xf32, #tpu.memory_space<vmem>>, vector<1x128xf32>,
      %c1 = arith.constant 1 : index
      %c0_134 = arith.constant 0 : index
      %224 = vector.load %arg6[%c1, %c0_134] : memref<17x128xf32, #tpu.memory_space<vmem>>, vector<16x128xf32>
      %225 = arith.addf %217, %224 : vector<16x128xf32>
      %c1_135 = arith.constant 1 : index
      %c0_136 = arith.constant 0 : index
      %226 = vector.load %arg24[%c1_135, %c0_136] : memref<24x128xf32, #tpu.memory_space<vmem>>, vector<16x128xf32>
      tpu.vector_store %arg24[%c1_135, %c0_136], %225 {strides = array<i32>} : memref<24x128xf32, #tpu.memory_space<vmem>>, vector<16x128xf32>,
    } else {
    }
    %c0 = arith.constant 0 : index
    %c0_1 = arith.constant 0 : index
    %3 = vector.load %arg24[%c0, %c0_1] : memref<24x128xf32, #tpu.memory_space<vmem>>, vector<24x128xf32>
    %c0_2 = arith.constant 0 : index
    %c0_3 = arith.constant 0 : index
    %c0_4 = arith.constant 0 : index
    %4 = vector.load %arg7[%c0_2, %c0_3, %c0_4] : memref<1x1x128xf32, #tpu.memory_space<vmem>>, vector<1x1x128xf32>
    %5 = vector.shape_cast %4 : vector<1x1x128xf32> to vector<1x128xf32>
    %c0_5 = arith.constant 0 : index
    %c0_6 = arith.constant 0 : index
    %c0_7 = arith.constant 0 : index
    %6 = vector.load %arg8[%c0_5, %c0_6, %c0_7] : memref<1x1x128xf32, #tpu.memory_space<vmem>>, vector<1x1x128xf32>
    %7 = vector.shape_cast %6 : vector<1x1x128xf32> to vector<1x128xf32>
    %cst = arith.constant dense<0.000000e+00> : vector<24xf32>
    %8 = vector.multi_reduction <add>, %3, %cst [1] : vector<24x128xf32> to vector<24xf32>
    %9 = vector.shape_cast %8 : vector<24xf32> to vector<24x1xf32>
    %cst_8 = arith.constant 1.280000e+02 : f32
    %10 = vector.broadcast %cst_8 : f32 to vector<24x1xf32>
    %11 = arith.divf %9, %10 : vector<24x1xf32>
    %12 = vector.broadcast %11 : vector<24x1xf32> to vector<24x128xf32>
    %13 = arith.subf %3, %12 : vector<24x128xf32>
    %14 = arith.mulf %13, %13 : vector<24x128xf32>
    %cst_9 = arith.constant dense<0.000000e+00> : vector<24xf32>
    %15 = vector.multi_reduction <add>, %14, %cst_9 [1] : vector<24x128xf32> to vector<24xf32>
    %16 = vector.shape_cast %15 : vector<24xf32> to vector<24x1xf32>
    %cst_10 = arith.constant 1.280000e+02 : f32
    %17 = vector.broadcast %cst_10 : f32 to vector<24x1xf32>
    %18 = arith.divf %16, %17 : vector<24x1xf32>
    %19 = vector.broadcast %11 : vector<24x1xf32> to vector<24x128xf32>
    %20 = arith.subf %3, %19 : vector<24x128xf32>
    %cst_11 = arith.constant 9.99999974E-6 : f32
    %21 = vector.broadcast %cst_11 : f32 to vector<24x1xf32>
    %22 = arith.addf %18, %21 : vector<24x1xf32>
    %23 = math.rsqrt %22 : vector<24x1xf32>
    %24 = vector.broadcast %23 : vector<24x1xf32> to vector<24x128xf32>
    %25 = arith.mulf %20, %24 : vector<24x128xf32>
    %26 = vector.broadcast %5 : vector<1x128xf32> to vector<24x128xf32>
    %27 = arith.mulf %25, %26 : vector<24x128xf32>
    %28 = vector.broadcast %7 : vector<1x128xf32> to vector<24x128xf32>
    %29 = arith.addf %27, %28 : vector<24x128xf32>
    %c0_12 = arith.constant 0 : index
    %c0_13 = arith.constant 0 : index
    %c0_14 = arith.constant 0 : index
    %30 = vector.load %arg9[%c0_12, %c0_13, %c0_14] : memref<1x128x384xf32, #tpu.memory_space<vmem>>, vector<1x128x384xf32>
    %31 = vector.shape_cast %30 : vector<1x128x384xf32> to vector<128x384xf32>
    %cst_15 = arith.constant dense<0.000000e+00> : vector<24x384xf32>
    %32 = tpu.matmul %29, %31, %cst_15 {dimension_numbers = #tpu.dot_dimension_numbers<[1], [0], [0], [1], [0, 0, 1, 1], [], []>} : vector<24x128xf32>, vector<128x384xf32>, vector<24x384xf32> -> vector<24x384xf32>
    %c0_16 = arith.constant 0 : index
    %c0_17 = arith.constant 0 : index
    %c0_18 = arith.constant 0 : index
    %33 = vector.load %arg10[%c0_16, %c0_17, %c0_18] : memref<1x1x384xf32, #tpu.memory_space<vmem>>, vector<1x1x384xf32>
    %34 = vector.shape_cast %33 : vector<1x1x384xf32> to vector<1x384xf32>
    %35 = vector.broadcast %34 : vector<1x384xf32> to vector<24x384xf32>
    %36 = arith.addf %32, %35 : vector<24x384xf32>
    %c0_19 = arith.constant 0 : index
    %c0_20 = arith.constant 0 : index
    %37 = vector.load %arg25[%c0_19, %c0_20] : memref<24x384xf32, #tpu.memory_space<vmem>>, vector<24x384xf32>
    tpu.vector_store %arg25[%c0_19, %c0_20], %36 {strides = array<i32>} : memref<24x384xf32, #tpu.memory_space<vmem>>, vector<24x384xf32>,
    %38 = tpu.iota {dimensions = array<i32: 1>} : vector<24x24xi32>
    %c17_i32 = arith.constant 17 : i32
    %39 = vector.broadcast %c17_i32 : i32 to vector<24x24xi32>
    %40 = arith.cmpi slt, %38, %39 : vector<24x24xi32>
    %cst_21 = arith.constant 0.000000e+00 : f32
    %cst_22 = arith.constant -1.000000e+30 : f32
    %41 = vector.broadcast %cst_21 : f32 to vector<24x24xf32>
    %42 = vector.broadcast %cst_22 : f32 to vector<24x24xf32>
    %43 = arith.select %40, %41, %42 : vector<24x24xi1>, vector<24x24xf32>
    %c0_23 = arith.constant 0 : index
    %c0_24 = arith.constant 0 : index
    %44 = vector.load %arg25[%c0_23, %c0_24] : memref<24x384xf32, #tpu.memory_space<vmem>>, vector<24x32xf32>
    %c0_25 = arith.constant 0 : index
    %c128 = arith.constant 128 : index
    %45 = vector.load %arg25[%c0_25, %c128] : memref<24x384xf32, #tpu.memory_space<vmem>>, vector<24x32xf32>
    %c0_26 = arith.constant 0 : index
    %c256 = arith.constant 256 : index
    %46 = vector.load %arg25[%c0_26, %c256] : memref<24x384xf32, #tpu.memory_space<vmem>>, vector<24x32xf32>
    %cst_27 = arith.constant dense<0.000000e+00> : vector<24x24xf32>
    %47 = tpu.matmul %44, %45, %cst_27 {dimension_numbers = #tpu.dot_dimension_numbers<[1], [1], [0], [0], [0, 0, 1, 0], [], []>} : vector<24x32xf32>, vector<24x32xf32>, vector<24x24xf32> -> vector<24x24xf32>
    %cst_28 = arith.constant 0.176776692 : f32
    %48 = vector.broadcast %cst_28 : f32 to vector<24x24xf32>
    %49 = arith.mulf %47, %48 : vector<24x24xf32>
    %50 = arith.addf %49, %43 : vector<24x24xf32>
    %cst_29 = arith.constant dense<0xFF800000> : vector<24xf32>
    %51 = vector.multi_reduction <maximumf>, %50, %cst_29 [1] : vector<24x24xf32> to vector<24xf32>
    %52 = vector.shape_cast %51 : vector<24xf32> to vector<24x1xf32>
    %53 = vector.broadcast %52 : vector<24x1xf32> to vector<24x24xf32>
    %54 = arith.subf %50, %53 : vector<24x24xf32>
    %55 = math.exp %54 : vector<24x24xf32>
    %cst_30 = arith.constant dense<0.000000e+00> : vector<24xf32>
    %56 = vector.multi_reduction <add>, %55, %cst_30 [1] : vector<24x24xf32> to vector<24xf32>
    %57 = vector.shape_cast %56 : vector<24xf32> to vector<24x1xf32>
    %58 = vector.broadcast %57 : vector<24x1xf32> to vector<24x24xf32>
    %59 = arith.divf %55, %58 : vector<24x24xf32>
    %cst_31 = arith.constant dense<0.000000e+00> : vector<24x32xf32>
    %60 = tpu.matmul %59, %46, %cst_31 {dimension_numbers = #tpu.dot_dimension_numbers<[1], [0], [0], [1], [0, 0, 1, 1], [], []>} : vector<24x24xf32>, vector<24x32xf32>, vector<24x32xf32> -> vector<24x32xf32>
    %c0_32 = arith.constant 0 : index
    %c0_33 = arith.constant 0 : index
    %61 = vector.load %arg25[%c0_32, %c0_33] : memref<24x384xf32, #tpu.memory_space<vmem>>, vector<24x32xf32>
    tpu.vector_store %arg25[%c0_32, %c0_33], %60 {strides = array<i32>} : memref<24x384xf32, #tpu.memory_space<vmem>>, vector<24x32xf32>,
    %c0_34 = arith.constant 0 : index
    %c32 = arith.constant 32 : index
    %62 = vector.load %arg25[%c0_34, %c32] : memref<24x384xf32, #tpu.memory_space<vmem>>, vector<24x32xf32>
    %c0_35 = arith.constant 0 : index
    %c160 = arith.constant 160 : index
    %63 = vector.load %arg25[%c0_35, %c160] : memref<24x384xf32, #tpu.memory_space<vmem>>, vector<24x32xf32>
    %c0_36 = arith.constant 0 : index
    %c288 = arith.constant 288 : index
    %64 = vector.load %arg25[%c0_36, %c288] : memref<24x384xf32, #tpu.memory_space<vmem>>, vector<24x32xf32>
    %cst_37 = arith.constant dense<0.000000e+00> : vector<24x24xf32>
    %65 = tpu.matmul %62, %63, %cst_37 {dimension_numbers = #tpu.dot_dimension_numbers<[1], [1], [0], [0], [0, 0, 1, 0], [], []>} : vector<24x32xf32>, vector<24x32xf32>, vector<24x24xf32> -> vector<24x24xf32>
    %cst_38 = arith.constant 0.176776692 : f32
    %66 = vector.broadcast %cst_38 : f32 to vector<24x24xf32>
    %67 = arith.mulf %65, %66 : vector<24x24xf32>
    %68 = arith.addf %67, %43 : vector<24x24xf32>
    %cst_39 = arith.constant dense<0xFF800000> : vector<24xf32>
    %69 = vector.multi_reduction <maximumf>, %68, %cst_39 [1] : vector<24x24xf32> to vector<24xf32>
    %70 = vector.shape_cast %69 : vector<24xf32> to vector<24x1xf32>
    %71 = vector.broadcast %70 : vector<24x1xf32> to vector<24x24xf32>
    %72 = arith.subf %68, %71 : vector<24x24xf32>
    %73 = math.exp %72 : vector<24x24xf32>
    %cst_40 = arith.constant dense<0.000000e+00> : vector<24xf32>
    %74 = vector.multi_reduction <add>, %73, %cst_40 [1] : vector<24x24xf32> to vector<24xf32>
    %75 = vector.shape_cast %74 : vector<24xf32> to vector<24x1xf32>
    %76 = vector.broadcast %75 : vector<24x1xf32> to vector<24x24xf32>
    %77 = arith.divf %73, %76 : vector<24x24xf32>
    %cst_41 = arith.constant dense<0.000000e+00> : vector<24x32xf32>
    %78 = tpu.matmul %77, %64, %cst_41 {dimension_numbers = #tpu.dot_dimension_numbers<[1], [0], [0], [1], [0, 0, 1, 1], [], []>} : vector<24x24xf32>, vector<24x32xf32>, vector<24x32xf32> -> vector<24x32xf32>
    %c0_42 = arith.constant 0 : index
    %c32_43 = arith.constant 32 : index
    %79 = vector.load %arg25[%c0_42, %c32_43] : memref<24x384xf32, #tpu.memory_space<vmem>>, vector<24x32xf32>
    tpu.vector_store %arg25[%c0_42, %c32_43], %78 {strides = array<i32>} : memref<24x384xf32, #tpu.memory_space<vmem>>, vector<24x32xf32>,
    %c0_44 = arith.constant 0 : index
    %c64 = arith.constant 64 : index
    %80 = vector.load %arg25[%c0_44, %c64] : memref<24x384xf32, #tpu.memory_space<vmem>>, vector<24x32xf32>
    %c0_45 = arith.constant 0 : index
    %c192 = arith.constant 192 : index
    %81 = vector.load %arg25[%c0_45, %c192] : memref<24x384xf32, #tpu.memory_space<vmem>>, vector<24x32xf32>
    %c0_46 = arith.constant 0 : index
    %c320 = arith.constant 320 : index
    %82 = vector.load %arg25[%c0_46, %c320] : memref<24x384xf32, #tpu.memory_space<vmem>>, vector<24x32xf32>
    %cst_47 = arith.constant dense<0.000000e+00> : vector<24x24xf32>
    %83 = tpu.matmul %80, %81, %cst_47 {dimension_numbers = #tpu.dot_dimension_numbers<[1], [1], [0], [0], [0, 0, 1, 0], [], []>} : vector<24x32xf32>, vector<24x32xf32>, vector<24x24xf32> -> vector<24x24xf32>
    %cst_48 = arith.constant 0.176776692 : f32
    %84 = vector.broadcast %cst_48 : f32 to vector<24x24xf32>
    %85 = arith.mulf %83, %84 : vector<24x24xf32>
    %86 = arith.addf %85, %43 : vector<24x24xf32>
    %cst_49 = arith.constant dense<0xFF800000> : vector<24xf32>
    %87 = vector.multi_reduction <maximumf>, %86, %cst_49 [1] : vector<24x24xf32> to vector<24xf32>
    %88 = vector.shape_cast %87 : vector<24xf32> to vector<24x1xf32>
    %89 = vector.broadcast %88 : vector<24x1xf32> to vector<24x24xf32>
    %90 = arith.subf %86, %89 : vector<24x24xf32>
    %91 = math.exp %90 : vector<24x24xf32>
    %cst_50 = arith.constant dense<0.000000e+00> : vector<24xf32>
    %92 = vector.multi_reduction <add>, %91, %cst_50 [1] : vector<24x24xf32> to vector<24xf32>
    %93 = vector.shape_cast %92 : vector<24xf32> to vector<24x1xf32>
    %94 = vector.broadcast %93 : vector<24x1xf32> to vector<24x24xf32>
    %95 = arith.divf %91, %94 : vector<24x24xf32>
    %cst_51 = arith.constant dense<0.000000e+00> : vector<24x32xf32>
    %96 = tpu.matmul %95, %82, %cst_51 {dimension_numbers = #tpu.dot_dimension_numbers<[1], [0], [0], [1], [0, 0, 1, 1], [], []>} : vector<24x24xf32>, vector<24x32xf32>, vector<24x32xf32> -> vector<24x32xf32>
    %c0_52 = arith.constant 0 : index
    %c64_53 = arith.constant 64 : index
    %97 = vector.load %arg25[%c0_52, %c64_53] : memref<24x384xf32, #tpu.memory_space<vmem>>, vector<24x32xf32>
    tpu.vector_store %arg25[%c0_52, %c64_53], %96 {strides = array<i32>} : memref<24x384xf32, #tpu.memory_space<vmem>>, vector<24x32xf32>,
    %c0_54 = arith.constant 0 : index
    %c96 = arith.constant 96 : index
    %98 = vector.load %arg25[%c0_54, %c96] : memref<24x384xf32, #tpu.memory_space<vmem>>, vector<24x32xf32>
    %c0_55 = arith.constant 0 : index
    %c224 = arith.constant 224 : index
    %99 = vector.load %arg25[%c0_55, %c224] : memref<24x384xf32, #tpu.memory_space<vmem>>, vector<24x32xf32>
    %c0_56 = arith.constant 0 : index
    %c352 = arith.constant 352 : index
    %100 = vector.load %arg25[%c0_56, %c352] : memref<24x384xf32, #tpu.memory_space<vmem>>, vector<24x32xf32>
    %cst_57 = arith.constant dense<0.000000e+00> : vector<24x24xf32>
    %101 = tpu.matmul %98, %99, %cst_57 {dimension_numbers = #tpu.dot_dimension_numbers<[1], [1], [0], [0], [0, 0, 1, 0], [], []>} : vector<24x32xf32>, vector<24x32xf32>, vector<24x24xf32> -> vector<24x24xf32>
    %cst_58 = arith.constant 0.176776692 : f32
    %102 = vector.broadcast %cst_58 : f32 to vector<24x24xf32>
    %103 = arith.mulf %101, %102 : vector<24x24xf32>
    %104 = arith.addf %103, %43 : vector<24x24xf32>
    %cst_59 = arith.constant dense<0xFF800000> : vector<24xf32>
    %105 = vector.multi_reduction <maximumf>, %104, %cst_59 [1] : vector<24x24xf32> to vector<24xf32>
    %106 = vector.shape_cast %105 : vector<24xf32> to vector<24x1xf32>
    %107 = vector.broadcast %106 : vector<24x1xf32> to vector<24x24xf32>
    %108 = arith.subf %104, %107 : vector<24x24xf32>
    %109 = math.exp %108 : vector<24x24xf32>
    %cst_60 = arith.constant dense<0.000000e+00> : vector<24xf32>
    %110 = vector.multi_reduction <add>, %109, %cst_60 [1] : vector<24x24xf32> to vector<24xf32>
    %111 = vector.shape_cast %110 : vector<24xf32> to vector<24x1xf32>
    %112 = vector.broadcast %111 : vector<24x1xf32> to vector<24x24xf32>
    %113 = arith.divf %109, %112 : vector<24x24xf32>
    %cst_61 = arith.constant dense<0.000000e+00> : vector<24x32xf32>
    %114 = tpu.matmul %113, %100, %cst_61 {dimension_numbers = #tpu.dot_dimension_numbers<[1], [0], [0], [1], [0, 0, 1, 1], [], []>} : vector<24x24xf32>, vector<24x32xf32>, vector<24x32xf32> -> vector<24x32xf32>
    %c0_62 = arith.constant 0 : index
    %c96_63 = arith.constant 96 : index
    %115 = vector.load %arg25[%c0_62, %c96_63] : memref<24x384xf32, #tpu.memory_space<vmem>>, vector<24x32xf32>
    tpu.vector_store %arg25[%c0_62, %c96_63], %114 {strides = array<i32>} : memref<24x384xf32, #tpu.memory_space<vmem>>, vector<24x32xf32>,
    %c0_64 = arith.constant 0 : index
    %c0_65 = arith.constant 0 : index
    %116 = vector.load %arg25[%c0_64, %c0_65] : memref<24x384xf32, #tpu.memory_space<vmem>>, vector<24x128xf32>
    %c0_66 = arith.constant 0 : index
    %c0_67 = arith.constant 0 : index
    %c0_68 = arith.constant 0 : index
    %117 = vector.load %arg11[%c0_66, %c0_67, %c0_68] : memref<1x128x128xf32, #tpu.memory_space<vmem>>, vector<1x128x128xf32>
    %118 = vector.shape_cast %117 : vector<1x128x128xf32> to vector<128x128xf32>
    %cst_69 = arith.constant dense<0.000000e+00> : vector<24x128xf32>
    %119 = tpu.matmul %116, %118, %cst_69 {dimension_numbers = #tpu.dot_dimension_numbers<[1], [0], [0], [1], [0, 0, 1, 1], [], []>} : vector<24x128xf32>, vector<128x128xf32>, vector<24x128xf32> -> vector<24x128xf32>
    %120 = arith.addf %3, %119 : vector<24x128xf32>
    %c0_70 = arith.constant 0 : index
    %c0_71 = arith.constant 0 : index
    %c0_72 = arith.constant 0 : index
    %121 = vector.load %arg12[%c0_70, %c0_71, %c0_72] : memref<1x1x128xf32, #tpu.memory_space<vmem>>, vector<1x1x128xf32>
    %122 = vector.shape_cast %121 : vector<1x1x128xf32> to vector<1x128xf32>
    %123 = vector.broadcast %122 : vector<1x128xf32> to vector<24x128xf32>
    %124 = arith.addf %120, %123 : vector<24x128xf32>
    %c0_73 = arith.constant 0 : index
    %c0_74 = arith.constant 0 : index
    %c0_75 = arith.constant 0 : index
    %125 = vector.load %arg13[%c0_73, %c0_74, %c0_75] : memref<1x1x128xf32, #tpu.memory_space<vmem>>, vector<1x1x128xf32>
    %126 = vector.shape_cast %125 : vector<1x1x128xf32> to vector<1x128xf32>
    %c0_76 = arith.constant 0 : index
    %c0_77 = arith.constant 0 : index
    %c0_78 = arith.constant 0 : index
    %127 = vector.load %arg14[%c0_76, %c0_77, %c0_78] : memref<1x1x128xf32, #tpu.memory_space<vmem>>, vector<1x1x128xf32>
    %128 = vector.shape_cast %127 : vector<1x1x128xf32> to vector<1x128xf32>
    %cst_79 = arith.constant dense<0.000000e+00> : vector<24xf32>
    %129 = vector.multi_reduction <add>, %124, %cst_79 [1] : vector<24x128xf32> to vector<24xf32>
    %130 = vector.shape_cast %129 : vector<24xf32> to vector<24x1xf32>
    %cst_80 = arith.constant 1.280000e+02 : f32
    %131 = vector.broadcast %cst_80 : f32 to vector<24x1xf32>
    %132 = arith.divf %130, %131 : vector<24x1xf32>
    %133 = vector.broadcast %132 : vector<24x1xf32> to vector<24x128xf32>
    %134 = arith.subf %124, %133 : vector<24x128xf32>
    %135 = arith.mulf %134, %134 : vector<24x128xf32>
    %cst_81 = arith.constant dense<0.000000e+00> : vector<24xf32>
    %136 = vector.multi_reduction <add>, %135, %cst_81 [1] : vector<24x128xf32> to vector<24xf32>
    %137 = vector.shape_cast %136 : vector<24xf32> to vector<24x1xf32>
    %cst_82 = arith.constant 1.280000e+02 : f32
    %138 = vector.broadcast %cst_82 : f32 to vector<24x1xf32>
    %139 = arith.divf %137, %138 : vector<24x1xf32>
    %140 = vector.broadcast %132 : vector<24x1xf32> to vector<24x128xf32>
    %141 = arith.subf %124, %140 : vector<24x128xf32>
    %cst_83 = arith.constant 9.99999974E-6 : f32
    %142 = vector.broadcast %cst_83 : f32 to vector<24x1xf32>
    %143 = arith.addf %139, %142 : vector<24x1xf32>
    %144 = math.rsqrt %143 : vector<24x1xf32>
    %145 = vector.broadcast %144 : vector<24x1xf32> to vector<24x128xf32>
    %146 = arith.mulf %141, %145 : vector<24x128xf32>
    %147 = vector.broadcast %126 : vector<1x128xf32> to vector<24x128xf32>
    %148 = arith.mulf %146, %147 : vector<24x128xf32>
    %149 = vector.broadcast %128 : vector<1x128xf32> to vector<24x128xf32>
    %150 = arith.addf %148, %149 : vector<24x128xf32>
    %c0_84 = arith.constant 0 : index
    %c0_85 = arith.constant 0 : index
    %c0_86 = arith.constant 0 : index
    %151 = vector.load %arg15[%c0_84, %c0_85, %c0_86] : memref<1x128x256xf32, #tpu.memory_space<vmem>>, vector<1x128x256xf32>
    %152 = vector.shape_cast %151 : vector<1x128x256xf32> to vector<128x256xf32>
    %cst_87 = arith.constant dense<0.000000e+00> : vector<24x256xf32>
    %153 = tpu.matmul %150, %152, %cst_87 {dimension_numbers = #tpu.dot_dimension_numbers<[1], [0], [0], [1], [0, 0, 1, 1], [], []>} : vector<24x128xf32>, vector<128x256xf32>, vector<24x256xf32> -> vector<24x256xf32>
    %c0_88 = arith.constant 0 : index
    %c0_89 = arith.constant 0 : index
    %c0_90 = arith.constant 0 : index
    %154 = vector.load %arg16[%c0_88, %c0_89, %c0_90] : memref<1x1x256xf32, #tpu.memory_space<vmem>>, vector<1x1x256xf32>
    %155 = vector.shape_cast %154 : vector<1x1x256xf32> to vector<1x256xf32>
    %156 = vector.broadcast %155 : vector<1x256xf32> to vector<24x256xf32>
    %157 = arith.addf %153, %156 : vector<24x256xf32>
    %cst_91 = arith.constant 5.000000e-01 : f32
    %158 = vector.broadcast %cst_91 : f32 to vector<24x256xf32>
    %159 = arith.mulf %158, %157 : vector<24x256xf32>
    %cst_92 = arith.constant 0.707106769 : f32
    %160 = vector.broadcast %cst_92 : f32 to vector<24x256xf32>
    %161 = arith.mulf %157, %160 : vector<24x256xf32>
    %cst_93 = arith.constant 0.000000e+00 : f32
    %162 = vector.broadcast %cst_93 : f32 to vector<24x256xf32>
    %163 = arith.cmpf olt, %161, %162 : vector<24x256xf32>
    %cst_94 = arith.constant -1.000000e+00 : f32
    %cst_95 = arith.constant 1.000000e+00 : f32
    %164 = vector.broadcast %cst_94 : f32 to vector<24x256xf32>
    %165 = vector.broadcast %cst_95 : f32 to vector<24x256xf32>
    %166 = arith.select %163, %164, %165 : vector<24x256xi1>, vector<24x256xf32>
    %167 = math.absf %161 : vector<24x256xf32>
    %cst_96 = arith.constant 0.327591091 : f32
    %168 = vector.broadcast %cst_96 : f32 to vector<24x256xf32>
    %169 = arith.mulf %168, %167 : vector<24x256xf32>
    %cst_97 = arith.constant 1.000000e+00 : f32
    %170 = vector.broadcast %cst_97 : f32 to vector<24x256xf32>
    %171 = arith.addf %170, %169 : vector<24x256xf32>
    %cst_98 = arith.constant 1.000000e+00 : f32
    %172 = vector.broadcast %cst_98 : f32 to vector<24x256xf32>
    %173 = arith.divf %172, %171 : vector<24x256xf32>
    %cst_99 = arith.constant 1.06140542 : f32
    %174 = vector.broadcast %cst_99 : f32 to vector<24x256xf32>
    %175 = arith.mulf %174, %173 : vector<24x256xf32>
    %cst_100 = arith.constant -1.45315206 : f32
    %176 = vector.broadcast %cst_100 : f32 to vector<24x256xf32>
    %177 = arith.addf %175, %176 : vector<24x256xf32>
    %178 = arith.mulf %177, %173 : vector<24x256xf32>
    %cst_101 = arith.constant 1.42141378 : f32
    %179 = vector.broadcast %cst_101 : f32 to vector<24x256xf32>
    %180 = arith.addf %178, %179 : vector<24x256xf32>
    %181 = arith.mulf %180, %173 : vector<24x256xf32>
    %cst_102 = arith.constant -0.284496725 : f32
    %182 = vector.broadcast %cst_102 : f32 to vector<24x256xf32>
    %183 = arith.addf %181, %182 : vector<24x256xf32>
    %184 = arith.mulf %183, %173 : vector<24x256xf32>
    %cst_103 = arith.constant 0.254829586 : f32
    %185 = vector.broadcast %cst_103 : f32 to vector<24x256xf32>
    %186 = arith.addf %184, %185 : vector<24x256xf32>
    %187 = arith.mulf %186, %173 : vector<24x256xf32>
    %cst_104 = arith.constant 0.000000e+00 : f32
    %188 = vector.broadcast %cst_104 : f32 to vector<24x256xf32>
    %189 = arith.subf %188, %167 : vector<24x256xf32>
    %190 = arith.mulf %189, %167 : vector<24x256xf32>
    %191 = math.exp %190 : vector<24x256xf32>
    %192 = arith.mulf %187, %191 : vector<24x256xf32>
    %cst_105 = arith.constant 1.000000e+00 : f32
    %193 = vector.broadcast %cst_105 : f32 to vector<24x256xf32>
    %194 = arith.subf %193, %192 : vector<24x256xf32>
    %195 = arith.mulf %166, %194 : vector<24x256xf32>
    %cst_106 = arith.constant 1.000000e+00 : f32
    %196 = vector.broadcast %cst_106 : f32 to vector<24x256xf32>
    %197 = arith.addf %196, %195 : vector<24x256xf32>
    %198 = arith.mulf %159, %197 : vector<24x256xf32>
    %c0_107 = arith.constant 0 : index
    %c0_108 = arith.constant 0 : index
    %c0_109 = arith.constant 0 : index
    %199 = vector.load %arg17[%c0_107, %c0_108, %c0_109] : memref<1x256x128xf32, #tpu.memory_space<vmem>>, vector<1x256x128xf32>
    %200 = vector.shape_cast %199 : vector<1x256x128xf32> to vector<256x128xf32>
    %cst_110 = arith.constant dense<0.000000e+00> : vector<24x128xf32>
    %201 = tpu.matmul %198, %200, %cst_110 {dimension_numbers = #tpu.dot_dimension_numbers<[1], [0], [0], [1], [0, 0, 1, 1], [], []>} : vector<24x256xf32>, vector<256x128xf32>, vector<24x128xf32> -> vector<24x128xf32>
    %202 = arith.addf %124, %201 : vector<24x128xf32>
    %c0_111 = arith.constant 0 : index
    %c0_112 = arith.constant 0 : index
    %c0_113 = arith.constant 0 : index
    %203 = vector.load %arg18[%c0_111, %c0_112, %c0_113] : memref<1x1x128xf32, #tpu.memory_space<vmem>>, vector<1x1x128xf32>
    %204 = vector.shape_cast %203 : vector<1x1x128xf32> to vector<1x128xf32>
    %205 = vector.broadcast %204 : vector<1x128xf32> to vector<24x128xf32>
    %206 = arith.addf %202, %205 : vector<24x128xf32>
    %c0_114 = arith.constant 0 : index
    %c0_115 = arith.constant 0 : index
    %207 = vector.load %arg24[%c0_114, %c0_115] : memref<24x128xf32, #tpu.memory_space<vmem>>, vector<24x128xf32>
    tpu.vector_store %arg24[%c0_114, %c0_115], %206 {strides = array<i32>} : memref<24x128xf32, #tpu.memory_space<vmem>>, vector<24x128xf32>,
    %c1_i32 = arith.constant 1 : i32
    %208 = arith.cmpi eq, %arg1, %c1_i32 : i32
    %209 = arith.extui %208 : i1 to i32
    %c0_i32_116 = arith.constant 0 : i32
    %210 = arith.cmpi ne, %209, %c0_i32_116 : i32
    scf.if %210 {
      %211 = vector.extract_strided_slice %206 {offsets = [0, 0], sizes = [1, 128], strides = [1, 1]} : vector<24x128xf32> to vector<1x128xf32>
      %c0_117 = arith.constant 0 : index
      %c0_118 = arith.constant 0 : index
      %212 = vector.load %arg19[%c0_117, %c0_118] : memref<1x128xf32, #tpu.memory_space<vmem>>, vector<1x128xf32>
      %c0_119 = arith.constant 0 : index
      %c0_120 = arith.constant 0 : index
      %213 = vector.load %arg20[%c0_119, %c0_120] : memref<1x128xf32, #tpu.memory_space<vmem>>, vector<1x128xf32>
      %cst_121 = arith.constant dense<0.000000e+00> : vector<1xf32>
      %214 = vector.multi_reduction <add>, %211, %cst_121 [1] : vector<1x128xf32> to vector<1xf32>
      %215 = vector.shape_cast %214 : vector<1xf32> to vector<1x1xf32>
      %cst_122 = arith.constant 1.280000e+02 : f32
      %216 = vector.broadcast %cst_122 : f32 to vector<1x1xf32>
      %217 = arith.divf %215, %216 : vector<1x1xf32>
      %218 = vector.broadcast %217 : vector<1x1xf32> to vector<1x128xf32>
      %219 = arith.subf %211, %218 : vector<1x128xf32>
      %220 = arith.mulf %219, %219 : vector<1x128xf32>
      %cst_123 = arith.constant dense<0.000000e+00> : vector<1xf32>
      %221 = vector.multi_reduction <add>, %220, %cst_123 [1] : vector<1x128xf32> to vector<1xf32>
      %222 = vector.shape_cast %221 : vector<1xf32> to vector<1x1xf32>
      %cst_124 = arith.constant 1.280000e+02 : f32
      %223 = vector.broadcast %cst_124 : f32 to vector<1x1xf32>
      %224 = arith.divf %222, %223 : vector<1x1xf32>
      %225 = vector.broadcast %217 : vector<1x1xf32> to vector<1x128xf32>
      %226 = arith.subf %211, %225 : vector<1x128xf32>
      %cst_125 = arith.constant 9.99999974E-6 : f32
      %227 = vector.broadcast %cst_125 : f32 to vector<1x1xf32>
      %228 = arith.addf %224, %227 : vector<1x1xf32>
      %229 = math.rsqrt %228 : vector<1x1xf32>
      %230 = vector.broadcast %229 : vector<1x1xf32> to vector<1x128xf32>
      %231 = arith.mulf %226, %230 : vector<1x128xf32>
      %232 = arith.mulf %231, %212 : vector<1x128xf32>
      %233 = arith.addf %232, %213 : vector<1x128xf32>
      %c0_126 = arith.constant 0 : index
      %c0_127 = arith.constant 0 : index
      %234 = vector.load %arg21[%c0_126, %c0_127] : memref<128x16xf32, #tpu.memory_space<vmem>>, vector<128x16xf32>
      %cst_128 = arith.constant dense<0.000000e+00> : vector<1x16xf32>
      %235 = tpu.matmul %233, %234, %cst_128 {dimension_numbers = #tpu.dot_dimension_numbers<[1], [0], [0], [1], [0, 0, 1, 1], [], []>} : vector<1x128xf32>, vector<128x16xf32>, vector<1x16xf32> -> vector<1x16xf32>
      %c0_129 = arith.constant 0 : index
      %c0_130 = arith.constant 0 : index
      %236 = vector.load %arg22[%c0_129, %c0_130] : memref<1x16xf32, #tpu.memory_space<vmem>>, vector<1x16xf32>
      %237 = arith.addf %235, %236 : vector<1x16xf32>
      %c0_131 = arith.constant 0 : index
      %c0_132 = arith.constant 0 : index
      %c0_133 = arith.constant 0 : index
      %238 = vector.load %arg23[%c0_131, %c0_132, %c0_133] : memref<1x1x16xf32, #tpu.memory_space<vmem>>, vector<1x1x16xf32>
      %239 = vector.shape_cast %238 : vector<1x1x16xf32> to vector<1x16xf32>
      %240 = vector.shape_cast %237 : vector<1x16xf32> to vector<1x1x16xf32>
      tpu.vector_store %arg23[%c0_131, %c0_132, %c0_133], %240 {strides = array<i32>} : memref<1x1x16xf32, #tpu.memory_space<vmem>>, vector<1x1x16xf32>,
    } else {
    }
    return
  }
  func.func @transform_0(%arg0: i32, %arg1: i32) -> (i32, i32, i32) {
    %c0_i32 = arith.constant 0 : i32
    %c0_i32_0 = arith.constant 0 : i32
    %c0_i32_1 = arith.constant 0 : i32
    return %arg0, %c0_i32, %c0_i32_0 : i32, i32, i32
  }
  func.func @transform_1(%arg0: i32, %arg1: i32) -> (i32, i32) {
    %c0_i32 = arith.constant 0 : i32
    %c0_i32_0 = arith.constant 0 : i32
    %c0_i32_1 = arith.constant 0 : i32
    return %c0_i32, %c0_i32_0 : i32, i32
  }
  func.func @transform_2(%arg0: i32, %arg1: i32) -> (i32, i32) {
    %c0_i32 = arith.constant 0 : i32
    %c0_i32_0 = arith.constant 0 : i32
    %c0_i32_1 = arith.constant 0 : i32
    return %c0_i32, %c0_i32_0 : i32, i32
  }
  func.func @transform_3(%arg0: i32, %arg1: i32) -> (i32, i32) {
    %c0_i32 = arith.constant 0 : i32
    %c0_i32_0 = arith.constant 0 : i32
    %c0_i32_1 = arith.constant 0 : i32
    return %c0_i32, %c0_i32_0 : i32, i32
  }
  func.func @transform_4(%arg0: i32, %arg1: i32) -> (i32, i32) {
    %c0_i32 = arith.constant 0 : i32
    %c0_i32_0 = arith.constant 0 : i32
    %c0_i32_1 = arith.constant 0 : i32
    return %c0_i32, %c0_i32_0 : i32, i32
  }
  func.func @transform_5(%arg0: i32, %arg1: i32) -> (i32, i32, i32) {
    %c0_i32 = arith.constant 0 : i32
    %c0_i32_0 = arith.constant 0 : i32
    %c0_i32_1 = arith.constant 0 : i32
    return %arg1, %c0_i32, %c0_i32_0 : i32, i32, i32
  }
  func.func @transform_6(%arg0: i32, %arg1: i32) -> (i32, i32, i32) {
    %c0_i32 = arith.constant 0 : i32
    %c0_i32_0 = arith.constant 0 : i32
    %c0_i32_1 = arith.constant 0 : i32
    return %arg1, %c0_i32, %c0_i32_0 : i32, i32, i32
  }
  func.func @transform_7(%arg0: i32, %arg1: i32) -> (i32, i32, i32) {
    %c0_i32 = arith.constant 0 : i32
    %c0_i32_0 = arith.constant 0 : i32
    %c0_i32_1 = arith.constant 0 : i32
    return %arg1, %c0_i32, %c0_i32_0 : i32, i32, i32
  }
  func.func @transform_8(%arg0: i32, %arg1: i32) -> (i32, i32, i32) {
    %c0_i32 = arith.constant 0 : i32
    %c0_i32_0 = arith.constant 0 : i32
    %c0_i32_1 = arith.constant 0 : i32
    return %arg1, %c0_i32, %c0_i32_0 : i32, i32, i32
  }
  func.func @transform_9(%arg0: i32, %arg1: i32) -> (i32, i32, i32) {
    %c0_i32 = arith.constant 0 : i32
    %c0_i32_0 = arith.constant 0 : i32
    %c0_i32_1 = arith.constant 0 : i32
    return %arg1, %c0_i32, %c0_i32_0 : i32, i32, i32
  }
  func.func @transform_10(%arg0: i32, %arg1: i32) -> (i32, i32, i32) {
    %c0_i32 = arith.constant 0 : i32
    %c0_i32_0 = arith.constant 0 : i32
    %c0_i32_1 = arith.constant 0 : i32
    return %arg1, %c0_i32, %c0_i32_0 : i32, i32, i32
  }
  func.func @transform_11(%arg0: i32, %arg1: i32) -> (i32, i32, i32) {
    %c0_i32 = arith.constant 0 : i32
    %c0_i32_0 = arith.constant 0 : i32
    %c0_i32_1 = arith.constant 0 : i32
    return %arg1, %c0_i32, %c0_i32_0 : i32, i32, i32
  }
  func.func @transform_12(%arg0: i32, %arg1: i32) -> (i32, i32, i32) {
    %c0_i32 = arith.constant 0 : i32
    %c0_i32_0 = arith.constant 0 : i32
    %c0_i32_1 = arith.constant 0 : i32
    return %arg1, %c0_i32, %c0_i32_0 : i32, i32, i32
  }
  func.func @transform_13(%arg0: i32, %arg1: i32) -> (i32, i32, i32) {
    %c0_i32 = arith.constant 0 : i32
    %c0_i32_0 = arith.constant 0 : i32
    %c0_i32_1 = arith.constant 0 : i32
    return %arg1, %c0_i32, %c0_i32_0 : i32, i32, i32
  }
  func.func @transform_14(%arg0: i32, %arg1: i32) -> (i32, i32, i32) {
    %c0_i32 = arith.constant 0 : i32
    %c0_i32_0 = arith.constant 0 : i32
    %c0_i32_1 = arith.constant 0 : i32
    return %arg1, %c0_i32, %c0_i32_0 : i32, i32, i32
  }
  func.func @transform_15(%arg0: i32, %arg1: i32) -> (i32, i32, i32) {
    %c0_i32 = arith.constant 0 : i32
    %c0_i32_0 = arith.constant 0 : i32
    %c0_i32_1 = arith.constant 0 : i32
    return %arg1, %c0_i32, %c0_i32_0 : i32, i32, i32
  }
  func.func @transform_16(%arg0: i32, %arg1: i32) -> (i32, i32, i32) {
    %c0_i32 = arith.constant 0 : i32
    %c0_i32_0 = arith.constant 0 : i32
    %c0_i32_1 = arith.constant 0 : i32
    return %arg1, %c0_i32, %c0_i32_0 : i32, i32, i32
  }
  func.func @transform_17(%arg0: i32, %arg1: i32) -> (i32, i32) {
    %c0_i32 = arith.constant 0 : i32
    %c0_i32_0 = arith.constant 0 : i32
    %c0_i32_1 = arith.constant 0 : i32
    return %c0_i32, %c0_i32_0 : i32, i32
  }
  func.func @transform_18(%arg0: i32, %arg1: i32) -> (i32, i32) {
    %c0_i32 = arith.constant 0 : i32
    %c0_i32_0 = arith.constant 0 : i32
    %c0_i32_1 = arith.constant 0 : i32
    return %c0_i32, %c0_i32_0 : i32, i32
  }
  func.func @transform_19(%arg0: i32, %arg1: i32) -> (i32, i32) {
    %c0_i32 = arith.constant 0 : i32
    %c0_i32_0 = arith.constant 0 : i32
    %c0_i32_1 = arith.constant 0 : i32
    return %c0_i32, %c0_i32_0 : i32, i32
  }
  func.func @transform_20(%arg0: i32, %arg1: i32) -> (i32, i32) {
    %c0_i32 = arith.constant 0 : i32
    %c0_i32_0 = arith.constant 0 : i32
    %c0_i32_1 = arith.constant 0 : i32
    return %c0_i32, %c0_i32_0 : i32, i32
  }
  func.func @transform_21(%arg0: i32, %arg1: i32) -> (i32, i32, i32) {
    %c0_i32 = arith.constant 0 : i32
    %c0_i32_0 = arith.constant 0 : i32
    %c0_i32_1 = arith.constant 0 : i32
    return %arg0, %c0_i32, %c0_i32_0 : i32, i32, i32
  }
}

</mosaic_0001>

<llo_original>
// kernel: vit_forward.1
$region0: #{vit_forward.1}
  #allocation0 [shape = 'u32[]', space=smem, size = 0x4, offset = 0x4, fixed_abs, tag = 'smem constant byte address 0x4 - core index']
  #allocation1 [shape = 'u32[144,128]{1,0:T(1,128)}', space=vmem, size = 0x12000, scoped, tag = 'internal scratch']
  #allocation2 [shape = 'f32[24,128]{1,0:T(8,128)}', space=vmem, size = 0x3000, scoped, tag = 'scratch operand']
  #allocation3 [shape = 'f32[24,384]{1,0:T(8,128)}', space=vmem, size = 0x9000, scoped, tag = 'scratch operand']
  %s0 = inlined_call_operand.vmem [shape: f32[2,16,48], index: 0, kind: input, shape index: {}]
  %s1 = inlined_call_operand.hbm [shape: f32[48,128], index: 1, kind: input, shape index: {}]
  %s2 = inlined_call_operand.hbm [shape: f32[1,128], index: 2, kind: input, shape index: {}]
  %s3 = inlined_call_operand.vmem [shape: f32[1,128], index: 3, kind: input, shape index: {}]
  %s4 = inlined_call_operand.hbm [shape: f32[17,128], index: 4, kind: input, shape index: {}]
  %s5 = inlined_call_operand.vmem [shape: f32[2,1,128], index: 5, kind: input, shape index: {}]
  %s6 = inlined_call_operand.vmem [shape: f32[2,1,128], index: 6, kind: input, shape index: {}]
  %s7 = inlined_call_operand.vmem [shape: f32[2,128,384], index: 7, kind: input, shape index: {}]
  %s8 = inlined_call_operand.hbm [shape: f32[2,1,384], index: 8, kind: input, shape index: {}]
  %s9 = inlined_call_operand.hbm [shape: f32[2,128,128], index: 9, kind: input, shape index: {}]
  %s10 = inlined_call_operand.vmem [shape: f32[2,1,128], index: 10, kind: input, shape index: {}]
  %s11 = inlined_call_operand.vmem [shape: f32[2,1,128], index: 11, kind: input, shape index: {}]
  %s12 = inlined_call_operand.vmem [shape: f32[2,1,128], index: 12, kind: input, shape index: {}]
  %s13 = inlined_call_operand.vmem [shape: f32[2,128,256], index: 13, kind: input, shape index: {}]
  %s14 = inlined_call_operand.vmem [shape: f32[2,1,256], index: 14, kind: input, shape index: {}]
  %s15 = inlined_call_operand.vmem [shape: f32[2,256,128], index: 15, kind: input, shape index: {}]
  %s16 = inlined_call_operand.vmem [shape: f32[2,1,128], index: 16, kind: input, shape index: {}]
  %s17 = inlined_call_operand.vmem [shape: f32[1,128], index: 17, kind: input, shape index: {}]
  %s18 = inlined_call_operand.vmem [shape: f32[1,128], index: 18, kind: input, shape index: {}]
  %s19 = inlined_call_operand.vmem [shape: f32[128,16], index: 19, kind: input, shape index: {}]
  %s20 = inlined_call_operand.vmem [shape: f32[1,16], index: 20, kind: input, shape index: {}]
  %s21 = inlined_call_operand.hbm [shape: f32[2,1,16], index: 21, kind: output, shape index: {}]
  %s22 = sld [smem:[#allocation0]]
  $region145: #{vit_forward.1} parent=0
    _
  %s24 = ssub.s32 1, %s22
  %s25 = scalar_select 0, %s24, %s22
  $region1: #{vit_forward.1} parent=0
    #allocation4 [shape = 'u8[24576]{0}', space=vmem, size = 0x6000, scoped, tag = 'input window, operand 1, single buffered']
    #allocation5 [shape = 's32[2]{0}', space=sflag, size = 0x8, scoped, tag = 'scoped memory for vit_forward.1']
    #allocation6 [shape = 's32[2]{0}', space=sflag, size = 0x8, scoped, tag = 'scoped memory for vit_forward.1']
    #allocation7 [shape = 'u8[512]{0}', space=vmem, size = 0x400, scoped, tag = 'input window, operand 2, single buffered']
    #allocation8 [shape = 's32[1]{0}', space=sflag, size = 0x4, scoped, tag = 'scoped memory for vit_forward.1']
    #allocation9 [shape = 'u8[12288]{0}', space=vmem, size = 0x3000, scoped, tag = 'input window, operand 4, single buffered']
    #allocation10 [shape = 'u8[3072]{0}', space=vmem, size = 0xc00, scoped, tag = 'input window, operand 8']
    #allocation11 [shape = 's32[2]{0}', space=sflag, size = 0x8, scoped, tag = 'scoped memory for vit_forward.1']
    #allocation12 [shape = 'u8[131072]{0}', space=vmem, size = 0x20000, scoped, tag = 'input window, operand 9']
    #allocation13 [shape = 'u8[1024]{0}', space=vmem, size = 0x400, scoped, tag = 'output window, operand 0']
    %26 = vsyncpa [#allocation5], 0
    %27 = vsyncpa [#allocation8], 0
    %28 = vsyncpa [#allocation11], 0
    %s29 = scalar_lea.sflag [#allocation11], 1
    %30 = vsyncpa %s29, 0
    %31 = vsyncpa [#allocation6], 0
    %s32 = scalar_lea.sflag [#allocation6], 1
    %33 = vsyncpa %s32, 0
    loop: start=0, step=1, limit=6
    $region2: #{vit_forward.1} parent=1 // loop_pre_header
      _
    $region3: #{vit_forward.1} parent=1 // loop_header
      %s35 = sphi 0, %s39
      %p36 = scmp.ge.s32.totalorder %s35, 6
      %s42 = sphi 0, %s54
      %s43 = sphi 0, %s50
      %s44 = sphi 0, %s42
      %s45 = sphi 0, %s43
      %s46 = sphi 0, %s44
      %s47 = sphi 0, %s45
      %s57 = sphi 0, %s59
      %s60 = sphi 0, %s57
      %s61 = sphi 0, %s60
      %s77 = sphi 0, %s61
      %s81 = sphi 0, %s81
      %s83 = sphi 0, %s81
      %s84 = sphi 0, %s83
      %s98 = sphi 0, %s84
      %s102 = sphi 0, %s102
      %s104 = sphi 0, %s102
      %s105 = sphi 0, %s104
      %s119 = sphi 0, %s105
      %s123 = sphi 0, %s123
      %s125 = sphi 0, %s123
      %s126 = sphi 0, %s125
      %s140 = sphi 0, %s126
      %s144 = sphi 0, %s144
      %s146 = sphi 0, %s144
      %s147 = sphi 0, %s146
      %s161 = sphi 0, %s147
      %s167 = sphi 0, %s169
      %s170 = sphi 0, %s167
      %s171 = sphi 0, %s170
      %s187 = sphi 0, %s171
      %s193 = sphi 0, %s195
      %s196 = sphi 0, %s193
      %s197 = sphi 0, %s196
      %s213 = sphi 0, %s197
      %s219 = sphi 0, %s221
      %s222 = sphi 0, %s219
      %s223 = sphi 0, %s222
      %s239 = sphi 0, %s223
      %s245 = sphi 0, %s247
      %s248 = sphi 0, %s245
      %s249 = sphi 0, %s248
      %s265 = sphi 0, %s249
      %s271 = sphi 0, %s273
      %s274 = sphi 0, %s271
      %s275 = sphi 0, %s274
      %s291 = sphi 0, %s275
      %s297 = sphi 0, %s299
      %s300 = sphi 0, %s297
      %s301 = sphi 0, %s300
      %s317 = sphi 0, %s301
      %s323 = sphi 0, %s325
      %s326 = sphi 0, %s323
      %s327 = sphi 0, %s326
      %s343 = sphi 0, %s327
      %s349 = sphi 0, %s351
      %s352 = sphi 0, %s349
      %s353 = sphi 0, %s352
      %s369 = sphi 0, %s353
      %s375 = sphi 0, %s377
      %s378 = sphi 0, %s375
      %s379 = sphi 0, %s378
      %s395 = sphi 0, %s379
      %s401 = sphi 0, %s403
      %s404 = sphi 0, %s401
      %s405 = sphi 0, %s404
      %s421 = sphi 0, %s405
      %s427 = sphi 0, %s429
      %s430 = sphi 0, %s427
      %s431 = sphi 0, %s430
      %s447 = sphi 0, %s431
      %s453 = sphi 0, %s455
      %s456 = sphi 0, %s453
      %s457 = sphi 0, %s456
      %s473 = sphi 0, %s457
      %s477 = sphi 0, %s477
      %s479 = sphi 0, %s477
      %s480 = sphi 0, %s479
      %s494 = sphi 0, %s480
      %s498 = sphi 0, %s498
      %s500 = sphi 0, %s498
      %s501 = sphi 0, %s500
      %s515 = sphi 0, %s501
      %s519 = sphi 0, %s519
      %s521 = sphi 0, %s519
      %s522 = sphi 0, %s521
      %s536 = sphi 0, %s522
      %s540 = sphi 0, %s540
      %s542 = sphi 0, %s540
      %s543 = sphi 0, %s542
      %s557 = sphi 0, %s543
      %s563 = sphi 0, %s565
      %s566 = sphi 0, %s563
      %s567 = sphi 0, %s566
      %s583 = sphi 0, %s567
    $region4: #{vit_forward.1} parent=1 // loop_header_branch
      %38 = sbr.rel (%p36) target = $region8
    $region5: #{vit_forward.1} parent=1 // loop_body
      %s40 = ssub.s32 %s35, 1
      %s41 = ssub.s32 %s35, 2
      %s48 = sadd.s32 1, %s43
      %p49 = scmp.ge.s32.totalorder %s48, 2
      %s50 = scalar_select %p49, 0, %s48
      %s51 = sadd.s32 1, %s42
      %s52 = scalar_select %p49, %s51, %s42
      %p53 = scmp.ge.s32.totalorder %s52, 2
      %s54 = scalar_select %p53, 0, %s52
      %s55 = ssub.s32 %s42, %s54
      %p56 = scmp.eq.s32.totalorder %s55, 0
      %s58 = sadd.s32 %s57, 1
      %s59 = scalar_select %p56, %s57, %s58
      %p62 = pneg %p56
      %p63 = scmp.eq.s32.totalorder %s35, 3
      %p64 = por %p62, %p63
      %p65 = scmp.ne.s32.totalorder %s57, %s60
      %p66 = scmp.eq.s32.totalorder %s35, 0
      %p67 = por %p65, %p66
      %p68 = scmp.ne.s32.totalorder %s57, %s60
      %p69 = scmp.eq.s32.totalorder %s40, 3
      %p70 = por %p68, %p69
      %p71 = scmp.ne.s32.totalorder %s60, %s61
      %p72 = scmp.eq.s32.totalorder %s40, 0
      %p73 = por %p71, %p72
      %p74 = scmp.ne.s32.totalorder %s60, %s61
      %p75 = scmp.eq.s32.totalorder %s41, 3
      %p76 = por %p74, %p75
      %p78 = scmp.ne.s32.totalorder %s61, %s77
      %p79 = scmp.eq.s32.totalorder %s41, 0
      %p80 = por %p78, %p79
      %s82 = sadd.s32 %s81, 1
      %p85 = scmp.eq.s32.totalorder %s35, 3
      %p86 = scmp.ne.s32.totalorder %s81, %s83
      %p87 = scmp.eq.s32.totalorder %s35, 0
      %p88 = por %p86, %p87
      %p89 = scmp.ne.s32.totalorder %s81, %s83
      %p90 = scmp.eq.s32.totalorder %s40, 3
      %p91 = por %p89, %p90
      %p92 = scmp.ne.s32.totalorder %s83, %s84
      %p93 = scmp.eq.s32.totalorder %s40, 0
      %p94 = por %p92, %p93
      %p95 = scmp.ne.s32.totalorder %s83, %s84
      %p96 = scmp.eq.s32.totalorder %s41, 3
      %p97 = por %p95, %p96
      %p99 = scmp.ne.s32.totalorder %s84, %s98
      %p100 = scmp.eq.s32.totalorder %s41, 0
      %p101 = por %p99, %p100
      %s103 = sadd.s32 %s102, 1
      %p106 = scmp.eq.s32.totalorder %s35, 3
      %p107 = scmp.ne.s32.totalorder %s102, %s104
      %p108 = scmp.eq.s32.totalorder %s35, 0
      %p109 = por %p107, %p108
      %p110 = scmp.ne.s32.totalorder %s102, %s104
      %p111 = scmp.eq.s32.totalorder %s40, 3
      %p112 = por %p110, %p111
      %p113 = scmp.ne.s32.totalorder %s104, %s105
      %p114 = scmp.eq.s32.totalorder %s40, 0
      %p115 = por %p113, %p114
      %p116 = scmp.ne.s32.totalorder %s104, %s105
      %p117 = scmp.eq.s32.totalorder %s41, 3
      %p118 = por %p116, %p117
      %p120 = scmp.ne.s32.totalorder %s105, %s119
      %p121 = scmp.eq.s32.totalorder %s41, 0
      %p122 = por %p120, %p121
      %s124 = sadd.s32 %s123, 1
      %p127 = scmp.eq.s32.totalorder %s35, 3
      %p128 = scmp.ne.s32.totalorder %s123, %s125
      %p129 = scmp.eq.s32.totalorder %s35, 0
      %p130 = por %p128, %p129
      %p131 = scmp.ne.s32.totalorder %s123, %s125
      %p132 = scmp.eq.s32.totalorder %s40, 3
      %p133 = por %p131, %p132
      %p134 = scmp.ne.s32.totalorder %s125, %s126
      %p135 = scmp.eq.s32.totalorder %s40, 0
      %p136 = por %p134, %p135
      %p137 = scmp.ne.s32.totalorder %s125, %s126
      %p138 = scmp.eq.s32.totalorder %s41, 3
      %p139 = por %p137, %p138
      %p141 = scmp.ne.s32.totalorder %s126, %s140
      %p142 = scmp.eq.s32.totalorder %s41, 0
      %p143 = por %p141, %p142
      %s145 = sadd.s32 %s144, 1
      %p148 = scmp.eq.s32.totalorder %s35, 3
      %p149 = scmp.ne.s32.totalorder %s144, %s146
      %p150 = scmp.eq.s32.totalorder %s35, 0
      %p151 = por %p149, %p150
      %p152 = scmp.ne.s32.totalorder %s144, %s146
      %p153 = scmp.eq.s32.totalorder %s40, 3
      %p154 = por %p152, %p153
      %p155 = scmp.ne.s32.totalorder %s146, %s147
      %p156 = scmp.eq.s32.totalorder %s40, 0
      %p157 = por %p155, %p156
      %p158 = scmp.ne.s32.totalorder %s146, %s147
      %p159 = scmp.eq.s32.totalorder %s41, 3
      %p160 = por %p158, %p159
      %p162 = scmp.ne.s32.totalorder %s147, %s161
      %p163 = scmp.eq.s32.totalorder %s41, 0
      %p164 = por %p162, %p163
      %s165 = ssub.s32 %s43, %s50
      %p166 = scmp.eq.s32.totalorder %s165, 0
      %s168 = sadd.s32 %s167, 1
      %s169 = scalar_select %p166, %s167, %s168
      %p172 = pneg %p166
      %p173 = scmp.eq.s32.totalorder %s35, 3
      %p174 = por %p172, %p173
      %p175 = scmp.ne.s32.totalorder %s167, %s170
      %p176 = scmp.eq.s32.totalorder %s35, 0
      %p177 = por %p175, %p176
      %p178 = scmp.ne.s32.totalorder %s167, %s170
      %p179 = scmp.eq.s32.totalorder %s40, 3
      %p180 = por %p178, %p179
      %p181 = scmp.ne.s32.totalorder %s170, %s171
      %p182 = scmp.eq.s32.totalorder %s40, 0
      %p183 = por %p181, %p182
      %p184 = scmp.ne.s32.totalorder %s170, %s171
      %p185 = scmp.eq.s32.totalorder %s41, 3
      %p186 = por %p184, %p185
      %p188 = scmp.ne.s32.totalorder %s171, %s187
      %p189 = scmp.eq.s32.totalorder %s41, 0
      %p190 = por %p188, %p189
      %s191 = ssub.s32 %s43, %s50
      %p192 = scmp.eq.s32.totalorder %s191, 0
      %s194 = sadd.s32 %s193, 1
      %s195 = scalar_select %p192, %s193, %s194
      %p198 = pneg %p192
      %p199 = scmp.eq.s32.totalorder %s35, 3
      %p200 = por %p198, %p199
      %p201 = scmp.ne.s32.totalorder %s193, %s196
      %p202 = scmp.eq.s32.totalorder %s35, 0
      %p203 = por %p201, %p202
      %p204 = scmp.ne.s32.totalorder %s193, %s196
      %p205 = scmp.eq.s32.totalorder %s40, 3
      %p206 = por %p204, %p205
      %p207 = scmp.ne.s32.totalorder %s196, %s197
      %p208 = scmp.eq.s32.totalorder %s40, 0
      %p209 = por %p207, %p208
      %p210 = scmp.ne.s32.totalorder %s196, %s197
      %p211 = scmp.eq.s32.totalorder %s41, 3
      %p212 = por %p210, %p211
      %p214 = scmp.ne.s32.totalorder %s197, %s213
      %p215 = scmp.eq.s32.totalorder %s41, 0
      %p216 = por %p214, %p215
      %s217 = ssub.s32 %s43, %s50
      %p218 = scmp.eq.s32.totalorder %s217, 0
      %s220 = sadd.s32 %s219, 1
      %s221 = scalar_select %p218, %s219, %s220
      %p224 = pneg %p218
      %p225 = scmp.eq.s32.totalorder %s35, 3
      %p226 = por %p224, %p225
      %p227 = scmp.ne.s32.totalorder %s219, %s222
      %p228 = scmp.eq.s32.totalorder %s35, 0
      %p229 = por %p227, %p228
      %p230 = scmp.ne.s32.totalorder %s219, %s222
      %p231 = scmp.eq.s32.totalorder %s40, 3
      %p232 = por %p230, %p231
      %p233 = scmp.ne.s32.totalorder %s222, %s223
      %p234 = scmp.eq.s32.totalorder %s40, 0
      %p235 = por %p233, %p234
      %p236 = scmp.ne.s32.totalorder %s222, %s223
      %p237 = scmp.eq.s32.totalorder %s41, 3
      %p238 = por %p236, %p237
      %p240 = scmp.ne.s32.totalorder %s223, %s239
      %p241 = scmp.eq.s32.totalorder %s41, 0
      %p242 = por %p240, %p241
      %s243 = ssub.s32 %s43, %s50
      %p244 = scmp.eq.s32.totalorder %s243, 0
      %s246 = sadd.s32 %s245, 1
      %s247 = scalar_select %p244, %s245, %s246
      %p250 = pneg %p244
      %p251 = scmp.eq.s32.totalorder %s35, 3
      %p252 = por %p250, %p251
      %p253 = scmp.ne.s32.totalorder %s245, %s248
      %p254 = scmp.eq.s32.totalorder %s35, 0
      %p255 = por %p253, %p254
      %p256 = scmp.ne.s32.totalorder %s245, %s248
      %p257 = scmp.eq.s32.totalorder %s40, 3
      %p258 = por %p256, %p257
      %p259 = scmp.ne.s32.totalorder %s248, %s249
      %p260 = scmp.eq.s32.totalorder %s40, 0
      %p261 = por %p259, %p260
      %p262 = scmp.ne.s32.totalorder %s248, %s249
      %p263 = scmp.eq.s32.totalorder %s41, 3
      %p264 = por %p262, %p263
      %p266 = scmp.ne.s32.totalorder %s249, %s265
      %p267 = scmp.eq.s32.totalorder %s41, 0
      %p268 = por %p266, %p267
      %s269 = ssub.s32 %s43, %s50
      %p270 = scmp.eq.s32.totalorder %s269, 0
      %s272 = sadd.s32 %s271, 1
      %s273 = scalar_select %p270, %s271, %s272
      %p276 = pneg %p270
      %p277 = scmp.eq.s32.totalorder %s35, 3
      %p278 = por %p276, %p277
      %p279 = scmp.ne.s32.totalorder %s271, %s274
      %p280 = scmp.eq.s32.totalorder %s35, 0
      %p281 = por %p279, %p280
      %p282 = scmp.ne.s32.totalorder %s271, %s274
      %p283 = scmp.eq.s32.totalorder %s40, 3
      %p284 = por %p282, %p283
      %p285 = scmp.ne.s32.totalorder %s274, %s275
      %p286 = scmp.eq.s32.totalorder %s40, 0
      %p287 = por %p285, %p286
      %p288 = scmp.ne.s32.totalorder %s274, %s275
      %p289 = scmp.eq.s32.totalorder %s41, 3
      %p290 = por %p288, %p289
      %p292 = scmp.ne.s32.totalorder %s275, %s291
      %p293 = scmp.eq.s32.totalorder %s41, 0
      %p294 = por %p292, %p293
      %s295 = ssub.s32 %s43, %s50
      %p296 = scmp.eq.s32.totalorder %s295, 0
      %s298 = sadd.s32 %s297, 1
      %s299 = scalar_select %p296, %s297, %s298
      %p302 = pneg %p296
      %p303 = scmp.eq.s32.totalorder %s35, 3
      %p304 = por %p302, %p303
      %p305 = scmp.ne.s32.totalorder %s297, %s300
      %p306 = scmp.eq.s32.totalorder %s35, 0
      %p307 = por %p305, %p306
      %p308 = scmp.ne.s32.totalorder %s297, %s300
      %p309 = scmp.eq.s32.totalorder %s40, 3
      %p310 = por %p308, %p309
      %p311 = scmp.ne.s32.totalorder %s300, %s301
      %p312 = scmp.eq.s32.totalorder %s40, 0
      %p313 = por %p311, %p312
      %p314 = scmp.ne.s32.totalorder %s300, %s301
      %p315 = scmp.eq.s32.totalorder %s41, 3
      %p316 = por %p314, %p315
      %p318 = scmp.ne.s32.totalorder %s301, %s317
      %p319 = scmp.eq.s32.totalorder %s41, 0
      %p320 = por %p318, %p319
      %s321 = ssub.s32 %s43, %s50
      %p322 = scmp.eq.s32.totalorder %s321, 0
      %s324 = sadd.s32 %s323, 1
      %s325 = scalar_select %p322, %s323, %s324
      %p328 = pneg %p322
      %p329 = scmp.eq.s32.totalorder %s35, 3
      %p330 = por %p328, %p329
      %p331 = scmp.ne.s32.totalorder %s323, %s326
      %p332 = scmp.eq.s32.totalorder %s35, 0
      %p333 = por %p331, %p332
      %p334 = scmp.ne.s32.totalorder %s323, %s326
      %p335 = scmp.eq.s32.totalorder %s40, 3
      %p336 = por %p334, %p335
      %p337 = scmp.ne.s32.totalorder %s326, %s327
      %p338 = scmp.eq.s32.totalorder %s40, 0
      %p339 = por %p337, %p338
      %p340 = scmp.ne.s32.totalorder %s326, %s327
      %p341 = scmp.eq.s32.totalorder %s41, 3
      %p342 = por %p340, %p341
      %p344 = scmp.ne.s32.totalorder %s327, %s343
      %p345 = scmp.eq.s32.totalorder %s41, 0
      %p346 = por %p344, %p345
      %s347 = ssub.s32 %s43, %s50
      %p348 = scmp.eq.s32.totalorder %s347, 0
      %s350 = sadd.s32 %s349, 1
      %s351 = scalar_select %p348, %s349, %s350
      %p354 = pneg %p348
      %p355 = scmp.eq.s32.totalorder %s35, 3
      %p356 = por %p354, %p355
      %p357 = scmp.ne.s32.totalorder %s349, %s352
      %p358 = scmp.eq.s32.totalorder %s35, 0
      %p359 = por %p357, %p358
      %p360 = scmp.ne.s32.totalorder %s349, %s352
      %p361 = scmp.eq.s32.totalorder %s40, 3
      %p362 = por %p360, %p361
      %p363 = scmp.ne.s32.totalorder %s352, %s353
      %p364 = scmp.eq.s32.totalorder %s40, 0
      %p365 = por %p363, %p364
      %p366 = scmp.ne.s32.totalorder %s352, %s353
      %p367 = scmp.eq.s32.totalorder %s41, 3
      %p368 = por %p366, %p367
      %p370 = scmp.ne.s32.totalorder %s353, %s369
      %p371 = scmp.eq.s32.totalorder %s41, 0
      %p372 = por %p370, %p371
      %s373 = ssub.s32 %s43, %s50
      %p374 = scmp.eq.s32.totalorder %s373, 0
      %s376 = sadd.s32 %s375, 1
      %s377 = scalar_select %p374, %s375, %s376
      %p380 = pneg %p374
      %p381 = scmp.eq.s32.totalorder %s35, 3
      %p382 = por %p380, %p381
      %p383 = scmp.ne.s32.totalorder %s375, %s378
      %p384 = scmp.eq.s32.totalorder %s35, 0
      %p385 = por %p383, %p384
      %p386 = scmp.ne.s32.totalorder %s375, %s378
      %p387 = scmp.eq.s32.totalorder %s40, 3
      %p388 = por %p386, %p387
      %p389 = scmp.ne.s32.totalorder %s378, %s379
      %p390 = scmp.eq.s32.totalorder %s40, 0
      %p391 = por %p389, %p390
      %p392 = scmp.ne.s32.totalorder %s378, %s379
      %p393 = scmp.eq.s32.totalorder %s41, 3
      %p394 = por %p392, %p393
      %p396 = scmp.ne.s32.totalorder %s379, %s395
      %p397 = scmp.eq.s32.totalorder %s41, 0
      %p398 = por %p396, %p397
      %s399 = ssub.s32 %s43, %s50
      %p400 = scmp.eq.s32.totalorder %s399, 0
      %s402 = sadd.s32 %s401, 1
      %s403 = scalar_select %p400, %s401, %s402
      %p406 = pneg %p400
      %p407 = scmp.eq.s32.totalorder %s35, 3
      %p408 = por %p406, %p407
      %p409 = scmp.ne.s32.totalorder %s401, %s404
      %p410 = scmp.eq.s32.totalorder %s35, 0
      %p411 = por %p409, %p410
      %p412 = scmp.ne.s32.totalorder %s401, %s404
      %p413 = scmp.eq.s32.totalorder %s40, 3
      %p414 = por %p412, %p413
      %p415 = scmp.ne.s32.totalorder %s404, %s405
      %p416 = scmp.eq.s32.totalorder %s40, 0
      %p417 = por %p415, %p416
      %p418 = scmp.ne.s32.totalorder %s404, %s405
      %p419 = scmp.eq.s32.totalorder %s41, 3
      %p420 = por %p418, %p419
      %p422 = scmp.ne.s32.totalorder %s405, %s421
      %p423 = scmp.eq.s32.totalorder %s41, 0
      %p424 = por %p422, %p423
      %s425 = ssub.s32 %s43, %s50
      %p426 = scmp.eq.s32.totalorder %s425, 0
      %s428 = sadd.s32 %s427, 1
      %s429 = scalar_select %p426, %s427, %s428
      %p432 = pneg %p426
      %p433 = scmp.eq.s32.totalorder %s35, 3
      %p434 = por %p432, %p433
      %p435 = scmp.ne.s32.totalorder %s427, %s430
      %p436 = scmp.eq.s32.totalorder %s35, 0
      %p437 = por %p435, %p436
      %p438 = scmp.ne.s32.totalorder %s427, %s430
      %p439 = scmp.eq.s32.totalorder %s40, 3
      %p440 = por %p438, %p439
      %p441 = scmp.ne.s32.totalorder %s430, %s431
      %p442 = scmp.eq.s32.totalorder %s40, 0
      %p443 = por %p441, %p442
      %p444 = scmp.ne.s32.totalorder %s430, %s431
      %p445 = scmp.eq.s32.totalorder %s41, 3
      %p446 = por %p444, %p445
      %p448 = scmp.ne.s32.totalorder %s431, %s447
      %p449 = scmp.eq.s32.totalorder %s41, 0
      %p450 = por %p448, %p449
      %s451 = ssub.s32 %s43, %s50
      %p452 = scmp.eq.s32.totalorder %s451, 0
      %s454 = sadd.s32 %s453, 1
      %s455 = scalar_select %p452, %s453, %s454
      %p458 = pneg %p452
      %p459 = scmp.eq.s32.totalorder %s35, 3
      %p460 = por %p458, %p459
      %p461 = scmp.ne.s32.totalorder %s453, %s456
      %p462 = scmp.eq.s32.totalorder %s35, 0
      %p463 = por %p461, %p462
      %p464 = scmp.ne.s32.totalorder %s453, %s456
      %p465 = scmp.eq.s32.totalorder %s40, 3
      %p466 = por %p464, %p465
      %p467 = scmp.ne.s32.totalorder %s456, %s457
      %p468 = scmp.eq.s32.totalorder %s40, 0
      %p469 = por %p467, %p468
      %p470 = scmp.ne.s32.totalorder %s456, %s457
      %p471 = scmp.eq.s32.totalorder %s41, 3
      %p472 = por %p470, %p471
      %p474 = scmp.ne.s32.totalorder %s457, %s473
      %p475 = scmp.eq.s32.totalorder %s41, 0
      %p476 = por %p474, %p475
      %s478 = sadd.s32 %s477, 1
      %p481 = scmp.eq.s32.totalorder %s35, 3
      %p482 = scmp.ne.s32.totalorder %s477, %s479
      %p483 = scmp.eq.s32.totalorder %s35, 0
      %p484 = por %p482, %p483
      %p485 = scmp.ne.s32.totalorder %s477, %s479
      %p486 = scmp.eq.s32.totalorder %s40, 3
      %p487 = por %p485, %p486
      %p488 = scmp.ne.s32.totalorder %s479, %s480
      %p489 = scmp.eq.s32.totalorder %s40, 0
      %p490 = por %p488, %p489
      %p491 = scmp.ne.s32.totalorder %s479, %s480
      %p492 = scmp.eq.s32.totalorder %s41, 3
      %p493 = por %p491, %p492
      %p495 = scmp.ne.s32.totalorder %s480, %s494
      %p496 = scmp.eq.s32.totalorder %s41, 0
      %p497 = por %p495, %p496
      %s499 = sadd.s32 %s498, 1
      %p502 = scmp.eq.s32.totalorder %s35, 3
      %p503 = scmp.ne.s32.totalorder %s498, %s500
      %p504 = scmp.eq.s32.totalorder %s35, 0
      %p505 = por %p503, %p504
      %p506 = scmp.ne.s32.totalorder %s498, %s500
      %p507 = scmp.eq.s32.totalorder %s40, 3
      %p508 = por %p506, %p507
      %p509 = scmp.ne.s32.totalorder %s500, %s501
      %p510 = scmp.eq.s32.totalorder %s40, 0
      %p511 = por %p509, %p510
      %p512 = scmp.ne.s32.totalorder %s500, %s501
      %p513 = scmp.eq.s32.totalorder %s41, 3
      %p514 = por %p512, %p513
      %p516 = scmp.ne.s32.totalorder %s501, %s515
      %p517 = scmp.eq.s32.totalorder %s41, 0
      %p518 = por %p516, %p517
      %s520 = sadd.s32 %s519, 1
      %p523 = scmp.eq.s32.totalorder %s35, 3
      %p524 = scmp.ne.s32.totalorder %s519, %s521
      %p525 = scmp.eq.s32.totalorder %s35, 0
      %p526 = por %p524, %p525
      %p527 = scmp.ne.s32.totalorder %s519, %s521
      %p528 = scmp.eq.s32.totalorder %s40, 3
      %p529 = por %p527, %p528
      %p530 = scmp.ne.s32.totalorder %s521, %s522
      %p531 = scmp.eq.s32.totalorder %s40, 0
      %p532 = por %p530, %p531
      %p533 = scmp.ne.s32.totalorder %s521, %s522
      %p534 = scmp.eq.s32.totalorder %s41, 3
      %p535 = por %p533, %p534
      %p537 = scmp.ne.s32.totalorder %s522, %s536
      %p538 = scmp.eq.s32.totalorder %s41, 0
      %p539 = por %p537, %p538
      %s541 = sadd.s32 %s540, 1
      %p544 = scmp.eq.s32.totalorder %s35, 3
      %p545 = scmp.ne.s32.totalorder %s540, %s542
      %p546 = scmp.eq.s32.totalorder %s35, 0
      %p547 = por %p545, %p546
      %p548 = scmp.ne.s32.totalorder %s540, %s542
      %p549 = scmp.eq.s32.totalorder %s40, 3
      %p550 = por %p548, %p549
      %p551 = scmp.ne.s32.totalorder %s542, %s543
      %p552 = scmp.eq.s32.totalorder %s40, 0
      %p553 = por %p551, %p552
      %p554 = scmp.ne.s32.totalorder %s542, %s543
      %p555 = scmp.eq.s32.totalorder %s41, 3
      %p556 = por %p554, %p555
      %p558 = scmp.ne.s32.totalorder %s543, %s557
      %p559 = scmp.eq.s32.totalorder %s41, 0
      %p560 = por %p558, %p559
      %s561 = ssub.s32 %s42, %s54
      %p562 = scmp.eq.s32.totalorder %s561, 0
      %s564 = sadd.s32 %s563, 1
      %s565 = scalar_select %p562, %s563, %s564
      %p568 = pneg %p562
      %p569 = scmp.eq.s32.totalorder %s35, 3
      %p570 = por %p568, %p569
      %p571 = scmp.ne.s32.totalorder %s563, %s566
      %p572 = scmp.eq.s32.totalorder %s35, 0
      %p573 = por %p571, %p572
      %p574 = scmp.ne.s32.totalorder %s563, %s566
      %p575 = scmp.eq.s32.totalorder %s40, 3
      %p576 = por %p574, %p575
      %p577 = scmp.ne.s32.totalorder %s566, %s567
      %p578 = scmp.eq.s32.totalorder %s40, 0
      %p579 = por %p577, %p578
      %p580 = scmp.ne.s32.totalorder %s566, %s567
      %p581 = scmp.eq.s32.totalorder %s41, 3
      %p582 = por %p580, %p581
      %p584 = scmp.ne.s32.totalorder %s567, %s583
      %p585 = scmp.eq.s32.totalorder %s41, 0
      %p586 = por %p584, %p585
      %p587 = scmp.le.s32.totalorder 1, %s35
      %p588 = scmp.lt.s32.totalorder %s35, 5
      %p589 = pnand %p587, %p588
      %p590 = pneg %p589
      // Predicated region
      $region9: #{vit_forward.1} parent=5 // pred_check
        _
      $region10: #{vit_forward.1} parent=5 // pred_check_branch
        %592 = sbr.rel (%p589) target = $region12
      $region11: #{vit_forward.1} parent=5 // pred_region
        %s593 = ssub.s32 %s35, 1
        // Predicated region
        $region13: #{vit_forward.1} parent=11 // pred_check
          %p594 = pneg %p94
        $region14: #{vit_forward.1} parent=11 // pred_check_branch
          %596 = sbr.rel (%p594) target = $region16
        $region15: #{vit_forward.1} parent=11 // pred_region
          %s598 = ssub.s32 768, 768
          %599 = vsyncadd [#allocation5], %s598
          %s600 = sshll.u32 [#allocation4], 4
          %s601 = int_to_ptr.vmem [resolvable:$true] %s600
          %606 = dma.hbm_to_vmem [thread:$0]  %s1, 768, %s601, [#allocation5], 128, 128, 8
        $region16: #{vit_forward.1} parent=11 // pred_fallthru
          _
        // Predicated region
        $region17: #{vit_forward.1} parent=11 // pred_check
          %p607 = pneg %p115
        $region18: #{vit_forward.1} parent=11 // pred_check_branch
          %609 = sbr.rel (%p607) target = $region20
        $region19: #{vit_forward.1} parent=11 // pred_region
          %s611 = ssub.s32 16, 16
          %612 = vsyncadd [#allocation8], %s611
          %s614 = sshll.u32 [#allocation7], 4
          %s615 = int_to_ptr.vmem [resolvable:$true] %s614
          %617 = dma.hbm_to_vmem [thread:$0]  %s2, 16, %s615, [#allocation8]
        $region20: #{vit_forward.1} parent=11 // pred_fallthru
          _
        // Predicated region
        $region21: #{vit_forward.1} parent=11 // pred_check
          %p618 = pneg %p136
        $region22: #{vit_forward.1} parent=11 // pred_check_branch
          %620 = sbr.rel (%p618) target = $region24
        $region23: #{vit_forward.1} parent=11 // pred_region
          _
        $region24: #{vit_forward.1} parent=11 // pred_fallthru
          _
        // Predicated region
        $region25: #{vit_forward.1} parent=11 // pred_check
          %p621 = pneg %p157
        $region26: #{vit_forward.1} parent=11 // pred_check_branch
          %623 = sbr.rel (%p621) target = $region28
        $region27: #{vit_forward.1} parent=11 // pred_region
          %s625 = ssub.s32 384, 384
          %626 = vsyncadd [#allocation8], %s625
          %s627 = sshll.u32 [#allocation9], 4
          %s628 = int_to_ptr.vmem [resolvable:$true] %s627
          %633 = dma.hbm_to_vmem [thread:$0]  %s4, 384, %s628, [#allocation8], 128, 128, 8
        $region28: #{vit_forward.1} parent=11 // pred_fallthru
          _
        // Predicated region
        $region29: #{vit_forward.1} parent=11 // pred_check
          %p634 = pneg %p490
        $region30: #{vit_forward.1} parent=11 // pred_check_branch
          %636 = sbr.rel (%p634) target = $region32
        $region31: #{vit_forward.1} parent=11 // pred_region
          _
        $region32: #{vit_forward.1} parent=11 // pred_fallthru
          _
        // Predicated region
        $region33: #{vit_forward.1} parent=11 // pred_check
          %p637 = pneg %p511
        $region34: #{vit_forward.1} parent=11 // pred_check_branch
          %639 = sbr.rel (%p637) target = $region36
        $region35: #{vit_forward.1} parent=11 // pred_region
          _
        $region36: #{vit_forward.1} parent=11 // pred_fallthru
          _
        // Predicated region
        $region37: #{vit_forward.1} parent=11 // pred_check
          %p640 = pneg %p532
        $region38: #{vit_forward.1} parent=11 // pred_check_branch
          %642 = sbr.rel (%p640) target = $region40
        $region39: #{vit_forward.1} parent=11 // pred_region
          _
        $region40: #{vit_forward.1} parent=11 // pred_fallthru
          _
        // Predicated region
        $region41: #{vit_forward.1} parent=11 // pred_check
          %p643 = pneg %p553
        $region42: #{vit_forward.1} parent=11 // pred_check_branch
          %645 = sbr.rel (%p643) target = $region44
        $region43: #{vit_forward.1} parent=11 // pred_region
          _
        $region44: #{vit_forward.1} parent=11 // pred_fallthru
          _
      $region12: #{vit_forward.1} parent=5 // pred_fallthru
        _
      %p646 = scmp.lt.s32.totalorder %s35, 4
      // Predicated region
      $region45: #{vit_forward.1} parent=5 // pred_check
        %p647 = pneg %p646
      $region46: #{vit_forward.1} parent=5 // pred_check_branch
        %649 = sbr.rel (%p647) target = $region48
      $region47: #{vit_forward.1} parent=5 // pred_region
        // Predicated region
        $region49: #{vit_forward.1} parent=47 // pred_check
          %p650 = pneg %p67
        $region50: #{vit_forward.1} parent=47 // pred_check_branch
          %652 = sbr.rel (%p650) target = $region52
        $region51: #{vit_forward.1} parent=47 // pred_region
          %p653 = scmp.lt.s32.totalorder %s42, 1
          %s654 = scalar_select %p653, %s42, 1
          %s655 = smul.addr %s654, 2
          %s656 = smul.addr %s655, 8
          %s657 = scalar_lea.vmem %s0, %s656
        $region52: #{vit_forward.1} parent=47 // pred_fallthru
          _
        // Predicated region
        $region53: #{vit_forward.1} parent=47 // pred_check
          %p658 = pneg %p177
        $region54: #{vit_forward.1} parent=47 // pred_check_branch
          %660 = sbr.rel (%p658) target = $region56
        $region55: #{vit_forward.1} parent=47 // pred_region
          %p661 = scmp.lt.s32.totalorder %s43, 1
          %s662 = scalar_select %p661, %s43, 1
          %s663 = scalar_lea.vmem %s5, %s662
        $region56: #{vit_forward.1} parent=47 // pred_fallthru
          _
        // Predicated region
        $region57: #{vit_forward.1} parent=47 // pred_check
          %p664 = pneg %p203
        $region58: #{vit_forward.1} parent=47 // pred_check_branch
          %666 = sbr.rel (%p664) target = $region60
        $region59: #{vit_forward.1} parent=47 // pred_region
          %p667 = scmp.lt.s32.totalorder %s43, 1
          %s668 = scalar_select %p667, %s43, 1
          %s669 = scalar_lea.vmem %s6, %s668
        $region60: #{vit_forward.1} parent=47 // pred_fallthru
          _
        // Predicated region
        $region61: #{vit_forward.1} parent=47 // pred_check
          %p670 = pneg %p229
        $region62: #{vit_forward.1} parent=47 // pred_check_branch
          %672 = sbr.rel (%p670) target = $region64
        $region63: #{vit_forward.1} parent=47 // pred_region
          %p673 = scmp.lt.s32.totalorder %s43, 1
          %s674 = scalar_select %p673, %s43, 1
          %s675 = smul.addr %s674, 48
          %s676 = smul.addr %s675, 8
          %s677 = scalar_lea.vmem %s7, %s676
        $region64: #{vit_forward.1} parent=47 // pred_fallthru
          _
        // Predicated region
        $region65: #{vit_forward.1} parent=47 // pred_check
          %p678 = pneg %p255
        $region66: #{vit_forward.1} parent=47 // pred_check_branch
          %680 = sbr.rel (%p678) target = $region68
        $region67: #{vit_forward.1} parent=47 // pred_region
          %s681 = sand.u32 %s35, 1
          %s682 = scalar_lea.sflag [#allocation11], %s681
          %s683 = sand.u32 %s245, 1
          %s684 = smul.addr %s683, 3
          %s685 = scalar_lea.vmem [#allocation10], %s684
          %s687 = ssub.s32 48, 48
          %688 = vsyncadd %s682, %s687
          %s689 = smul.addr %s43, 3
          %s690 = smul.addr %s689, 16
          %s691 = scalar_lea.hbm %s8, %s690
          %s693 = sshll.u32 %s685, 4
          %s694 = int_to_ptr.vmem [resolvable:$true] %s693
          %696 = dma.hbm_to_vmem [thread:$0]  %s691, 48, %s694, %s682
        $region68: #{vit_forward.1} parent=47 // pred_fallthru
          _
        // Predicated region
        $region69: #{vit_forward.1} parent=47 // pred_check
          %p697 = pneg %p281
        $region70: #{vit_forward.1} parent=47 // pred_check_branch
          %699 = sbr.rel (%p697) target = $region72
        $region71: #{vit_forward.1} parent=47 // pred_region
          %s700 = sand.u32 %s35, 1
          %s701 = scalar_lea.sflag [#allocation11], %s700
          %s702 = sand.u32 %s271, 1
          %s703 = smul.addr %s702, 128
          %s704 = scalar_lea.vmem [#allocation12], %s703
          %s706 = ssub.s32 2048, 2048
          %707 = vsyncadd %s701, %s706
          %s708 = smul.addr %s43, 16
          %s709 = smul.addr %s708, 128
          %s710 = scalar_lea.hbm %s9, %s709
          %s711 = sshll.u32 %s704, 4
          %s712 = int_to_ptr.vmem [resolvable:$true] %s711
          %717 = dma.hbm_to_vmem [thread:$0]  %s710, 2048, %s712, %s701, 128, 128, 8
        $region72: #{vit_forward.1} parent=47 // pred_fallthru
          _
        // Predicated region
        $region73: #{vit_forward.1} parent=47 // pred_check
          %p718 = pneg %p307
        $region74: #{vit_forward.1} parent=47 // pred_check_branch
          %720 = sbr.rel (%p718) target = $region76
        $region75: #{vit_forward.1} parent=47 // pred_region
          %p721 = scmp.lt.s32.totalorder %s43, 1
          %s722 = scalar_select %p721, %s43, 1
          %s723 = scalar_lea.vmem %s10, %s722
        $region76: #{vit_forward.1} parent=47 // pred_fallthru
          _
        // Predicated region
        $region77: #{vit_forward.1} parent=47 // pred_check
          %p724 = pneg %p333
        $region78: #{vit_forward.1} parent=47 // pred_check_branch
          %726 = sbr.rel (%p724) target = $region80
        $region79: #{vit_forward.1} parent=47 // pred_region
          %p727 = scmp.lt.s32.totalorder %s43, 1
          %s728 = scalar_select %p727, %s43, 1
          %s729 = scalar_lea.vmem %s11, %s728
        $region80: #{vit_forward.1} parent=47 // pred_fallthru
          _
        // Predicated region
        $region81: #{vit_forward.1} parent=47 // pred_check
          %p730 = pneg %p359
        $region82: #{vit_forward.1} parent=47 // pred_check_branch
          %732 = sbr.rel (%p730) target = $region84
        $region83: #{vit_forward.1} parent=47 // pred_region
          %p733 = scmp.lt.s32.totalorder %s43, 1
          %s734 = scalar_select %p733, %s43, 1
          %s735 = scalar_lea.vmem %s12, %s734
        $region84: #{vit_forward.1} parent=47 // pred_fallthru
          _
        // Predicated region
        $region85: #{vit_forward.1} parent=47 // pred_check
          %p736 = pneg %p385
        $region86: #{vit_forward.1} parent=47 // pred_check_branch
          %738 = sbr.rel (%p736) target = $region88
        $region87: #{vit_forward.1} parent=47 // pred_region
          %p739 = scmp.lt.s32.totalorder %s43, 1
          %s740 = scalar_select %p739, %s43, 1
          %s741 = smul.addr %s740, 32
          %s742 = smul.addr %s741, 8
          %s743 = scalar_lea.vmem %s13, %s742
        $region88: #{vit_forward.1} parent=47 // pred_fallthru
          _
        // Predicated region
        $region89: #{vit_forward.1} parent=47 // pred_check
          %p744 = pneg %p411
        $region90: #{vit_forward.1} parent=47 // pred_check_branch
          %746 = sbr.rel (%p744) target = $region92
        $region91: #{vit_forward.1} parent=47 // pred_region
          %p747 = scmp.lt.s32.totalorder %s43, 1
          %s748 = scalar_select %p747, %s43, 1
          %s749 = smul.addr %s748, 2
          %s750 = scalar_lea.vmem %s14, %s749
        $region92: #{vit_forward.1} parent=47 // pred_fallthru
          _
        // Predicated region
        $region93: #{vit_forward.1} parent=47 // pred_check
          %p751 = pneg %p437
        $region94: #{vit_forward.1} parent=47 // pred_check_branch
          %753 = sbr.rel (%p751) target = $region96
        $region95: #{vit_forward.1} parent=47 // pred_region
          %p754 = scmp.lt.s32.totalorder %s43, 1
          %s755 = scalar_select %p754, %s43, 1
          %s756 = smul.addr %s755, 32
          %s757 = smul.addr %s756, 8
          %s758 = scalar_lea.vmem %s15, %s757
        $region96: #{vit_forward.1} parent=47 // pred_fallthru
          _
        // Predicated region
        $region97: #{vit_forward.1} parent=47 // pred_check
          %p759 = pneg %p463
        $region98: #{vit_forward.1} parent=47 // pred_check_branch
          %761 = sbr.rel (%p759) target = $region100
        $region99: #{vit_forward.1} parent=47 // pred_region
          %p762 = scmp.lt.s32.totalorder %s43, 1
          %s763 = scalar_select %p762, %s43, 1
          %s764 = scalar_lea.vmem %s16, %s763
        $region100: #{vit_forward.1} parent=47 // pred_fallthru
          _
      $region48: #{vit_forward.1} parent=5 // pred_fallthru
        _
      %p765 = scmp.le.s32.totalorder 1, %s35
      %p766 = scmp.lt.s32.totalorder %s35, 5
      %p767 = pnand %p765, %p766
      %p768 = pneg %p767
      // Predicated region
      $region101: #{vit_forward.1} parent=5 // pred_check
        _
      $region102: #{vit_forward.1} parent=5 // pred_check_branch
        %770 = sbr.rel (%p767) target = $region104
      $region103: #{vit_forward.1} parent=5 // pred_region
        %s771 = ssub.s32 %s35, 1
        // Predicated region
        $region105: #{vit_forward.1} parent=103 // pred_check
          %p772 = pneg %p94
        $region106: #{vit_forward.1} parent=103 // pred_check_branch
          %774 = sbr.rel (%p772) target = $region108
        $region107: #{vit_forward.1} parent=103 // pred_region
          %775 = dma.done [#allocation5], 768
        $region108: #{vit_forward.1} parent=103 // pred_fallthru
          _
        // Predicated region
        $region109: #{vit_forward.1} parent=103 // pred_check
          %p776 = pneg %p115
        $region110: #{vit_forward.1} parent=103 // pred_check_branch
          %778 = sbr.rel (%p776) target = $region112
        $region111: #{vit_forward.1} parent=103 // pred_region
          %779 = dma.done [#allocation8], 16
        $region112: #{vit_forward.1} parent=103 // pred_fallthru
          _
        // Predicated region
        $region113: #{vit_forward.1} parent=103 // pred_check
          %p780 = pneg %p157
        $region114: #{vit_forward.1} parent=103 // pred_check_branch
          %782 = sbr.rel (%p780) target = $region116
        $region115: #{vit_forward.1} parent=103 // pred_region
          %783 = dma.done [#allocation8], 384
        $region116: #{vit_forward.1} parent=103 // pred_fallthru
          _
        %s784 = sand.u32 %s40, 1
        %s785 = scalar_lea.sflag [#allocation11], %s784
        %s786 = sand.u32 %s248, 1
        %s787 = smul.addr %s786, 3
        %s788 = scalar_lea.vmem [#allocation10], %s787
        // Predicated region
        $region117: #{vit_forward.1} parent=103 // pred_check
          %p789 = pneg %p261
        $region118: #{vit_forward.1} parent=103 // pred_check_branch
          %791 = sbr.rel (%p789) target = $region120
        $region119: #{vit_forward.1} parent=103 // pred_region
          %792 = dma.done %s785, 48
        $region120: #{vit_forward.1} parent=103 // pred_fallthru
          _
        %s793 = sand.u32 %s40, 1
        %s794 = scalar_lea.sflag [#allocation11], %s793
        %s795 = sand.u32 %s274, 1
        %s796 = smul.addr %s795, 128
        %s797 = scalar_lea.vmem [#allocation12], %s796
        // Predicated region
        $region121: #{vit_forward.1} parent=103 // pred_check
          %p798 = pneg %p287
        $region122: #{vit_forward.1} parent=103 // pred_check_branch
          %800 = sbr.rel (%p798) target = $region124
        $region123: #{vit_forward.1} parent=103 // pred_region
          %801 = dma.done %s794, 2048
        $region124: #{vit_forward.1} parent=103 // pred_fallthru
          _
        %p802 = scmp.lt.s32.totalorder %s44, 1
        %s803 = scalar_select %p802, %s44, 1
        %s804 = smul.addr %s803, 2
        %s805 = smul.addr %s804, 8
        %s806 = scalar_lea.vmem %s0, %s805
        %p807 = pneg %p73
        %p808 = pneg %p70
        %p809 = pneg %p94
        %p810 = pneg %p91
        %p811 = pneg %p115
        %p812 = pneg %p112
        %p813 = pneg %p136
        %p814 = pneg %p133
        %p815 = pneg %p157
        %p816 = pneg %p154
        %p817 = scmp.lt.s32.totalorder %s45, 1
        %s818 = scalar_select %p817, %s45, 1
        %s819 = scalar_lea.vmem %s5, %s818
        %p820 = pneg %p183
        %p821 = pneg %p180
        %p822 = scmp.lt.s32.totalorder %s45, 1
        %s823 = scalar_select %p822, %s45, 1
        %s824 = scalar_lea.vmem %s6, %s823
        %p825 = pneg %p209
        %p826 = pneg %p206
        %p827 = scmp.lt.s32.totalorder %s45, 1
        %s828 = scalar_select %p827, %s45, 1
        %s829 = smul.addr %s828, 48
        %s830 = smul.addr %s829, 8
        %s831 = scalar_lea.vmem %s7, %s830
        %p832 = pneg %p235
        %p833 = pneg %p232
        %s834 = sand.u32 %s40, 1
        %s835 = scalar_lea.sflag [#allocation11], %s834
        %s836 = sand.u32 %s248, 1
        %s837 = smul.addr %s836, 3
        %s838 = scalar_lea.vmem [#allocation10], %s837
        %p839 = pneg %p261
        %p840 = pneg %p258
        %s841 = sand.u32 %s40, 1
        %s842 = scalar_lea.sflag [#allocation11], %s841
        %s843 = sand.u32 %s274, 1
        %s844 = smul.addr %s843, 128
        %s845 = scalar_lea.vmem [#allocation12], %s844
        %p846 = pneg %p287
        %p847 = pneg %p284
        %p848 = scmp.lt.s32.totalorder %s45, 1
        %s849 = scalar_select %p848, %s45, 1
        %s850 = scalar_lea.vmem %s10, %s849
        %p851 = pneg %p313
        %p852 = pneg %p310
        %p853 = scmp.lt.s32.totalorder %s45, 1
        %s854 = scalar_select %p853, %s45, 1
        %s855 = scalar_lea.vmem %s11, %s854
        %p856 = pneg %p339
        %p857 = pneg %p336
        %p858 = scmp.lt.s32.totalorder %s45, 1
        %s859 = scalar_select %p858, %s45, 1
        %s860 = scalar_lea.vmem %s12, %s859
        %p861 = pneg %p365
        %p862 = pneg %p362
        %p863 = scmp.lt.s32.totalorder %s45, 1
        %s864 = scalar_select %p863, %s45, 1
        %s865 = smul.addr %s864, 32
        %s866 = smul.addr %s865, 8
        %s867 = scalar_lea.vmem %s13, %s866
        %p868 = pneg %p391
        %p869 = pneg %p388
        %p870 = scmp.lt.s32.totalorder %s45, 1
        %s871 = scalar_select %p870, %s45, 1
        %s872 = smul.addr %s871, 2
        %s873 = scalar_lea.vmem %s14, %s872
        %p874 = pneg %p417
        %p875 = pneg %p414
        %p876 = scmp.lt.s32.totalorder %s45, 1
        %s877 = scalar_select %p876, %s45, 1
        %s878 = smul.addr %s877, 32
        %s879 = smul.addr %s878, 8
        %s880 = scalar_lea.vmem %s15, %s879
        %p881 = pneg %p443
        %p882 = pneg %p440
        %p883 = scmp.lt.s32.totalorder %s45, 1
        %s884 = scalar_select %p883, %s45, 1
        %s885 = scalar_lea.vmem %s16, %s884
        %p886 = pneg %p469
        %p887 = pneg %p466
        %p888 = pneg %p490
        %p889 = pneg %p487
        %p890 = pneg %p511
        %p891 = pneg %p508
        %p892 = pneg %p532
        %p893 = pneg %p529
        %p894 = pneg %p553
        %p895 = pneg %p550
        %p896 = pneg %p579
        %p897 = pneg %p576
        %s898 = sand.u32 %s566, 1
        %s899 = scalar_lea.sflag [#allocation6], %s898
        %s900 = sand.u32 %s566, 1
        %s901 = scalar_lea.vmem [#allocation13], %s900
        %p902 = scmp.lt.s32.totalorder %s44, 1
        %s903 = scalar_select %p902, %s44, 1
        %s904 = smul.addr %s903, 2
        %s905 = smul.addr %s904, 8
        %s906 = scalar_lea.vmem %s0, %s905
        %p907 = scmp.lt.s32.totalorder %s45, 1
        %s908 = scalar_select %p907, %s45, 1
        %s909 = scalar_lea.vmem %s5, %s908
        %p910 = scmp.lt.s32.totalorder %s45, 1
        %s911 = scalar_select %p910, %s45, 1
        %s912 = scalar_lea.vmem %s6, %s911
        %p913 = scmp.lt.s32.totalorder %s45, 1
        %s914 = scalar_select %p913, %s45, 1
        %s915 = smul.addr %s914, 48
        %s916 = smul.addr %s915, 8
        %s917 = scalar_lea.vmem %s7, %s916
        %p918 = scmp.lt.s32.totalorder %s45, 1
        %s919 = scalar_select %p918, %s45, 1
        %s920 = scalar_lea.vmem %s10, %s919
        %p921 = scmp.lt.s32.totalorder %s45, 1
        %s922 = scalar_select %p921, %s45, 1
        %s923 = scalar_lea.vmem %s11, %s922
        %p924 = scmp.lt.s32.totalorder %s45, 1
        %s925 = scalar_select %p924, %s45, 1
        %s926 = scalar_lea.vmem %s12, %s925
        %p927 = scmp.lt.s32.totalorder %s45, 1
        %s928 = scalar_select %p927, %s45, 1
        %s929 = smul.addr %s928, 32
        %s930 = smul.addr %s929, 8
        %s931 = scalar_lea.vmem %s13, %s930
        %p932 = scmp.lt.s32.totalorder %s45, 1
        %s933 = scalar_select %p932, %s45, 1
        %s934 = smul.addr %s933, 2
        %s935 = scalar_lea.vmem %s14, %s934
        %p936 = scmp.lt.s32.totalorder %s45, 1
        %s937 = scalar_select %p936, %s45, 1
        %s938 = smul.addr %s937, 32
        %s939 = smul.addr %s938, 8
        %s940 = scalar_lea.vmem %s15, %s939
        %p941 = scmp.lt.s32.totalorder %s45, 1
        %s942 = scalar_select %p941, %s45, 1
        %s943 = scalar_lea.vmem %s16, %s942
        %p944 = scmp.eq.s32.totalorder %s45, 0
        // Predicated region
        $region125: #{vit_forward.1} parent=103 // pred_check
          %p945 = pneg %p944
        $region126: #{vit_forward.1} parent=103 // pred_check_branch
          %947 = sbr.rel (%p945) target = $region128
        $region127: #{vit_forward.1} parent=103 // pred_region
          %v948 = vld [vmem:[%s906] sm:$0xff]
          %v949 = vld [vmem:[%s906 + $0x8] sm:$0xff]
          %v950 = vld [vmem:[#allocation4] sm:$0xff]
          %v951 = vld [vmem:[#allocation4 + $0x8] sm:$0xff]
          %v952 = vld [vmem:[#allocation4 + $0x10] sm:$0xff]
          %v953 = vld [vmem:[#allocation4 + $0x18] sm:$0xff]
          %v954 = vld [vmem:[#allocation4 + $0x20] sm:$0xff]
          %v955 = vld [vmem:[#allocation4 + $0x28] sm:$0xff]
          %v956 = vld [vmem:[#allocation7] sm:$0x1]
          %v958 = vlaneseq
          %v959 = vshrl.u32 %v958, 7
          %v960 = vsub.s32 0, %v959
          %v961 = vrot.slane %v956, %v960
          %vm963 = vcmask 392192
          %v965 = vsel %vm963, %v948, 0
          %v968 = vsel %vm963, %v949, 0
          %970 = vmatprep.subr.mxu0 0.0
          %971 = vmatpush1.msra.mxu0 %v950
          %972 = vmatprep.subr.mxu0 0.0
          %973 = vmatpush1.msra.mxu0 %v951
          %974 = vmatprep.subr.mxu0 0.0
          %975 = vmatpush1.msra.mxu0 %v952
          %976 = vmatprep.subr.mxu0 0.0
          %977 = vmatpush1.msra.mxu0 %v953
          %978 = vmatprep.subr.mxu0 0.0
          %979 = vmatpush1.msra.mxu0 %v954
          %980 = vmatprep.subr.mxu0 0.0
          %981 = vmatpush1.msra.mxu0 %v955
          %982 = vmatprep.subr.mxu0 0.0
          %983 = vmatpush1.msra.mxu0 0.0
          %984 = vmatprep.subr.mxu0 0.0
          %985 = vmatpush1.msra.mxu0 0.0
          %986 = vmatprep.subr.mxu0 0.0
          %987 = vmatpush1.msra.mxu0 0.0
          %988 = vmatprep.subr.mxu0 0.0
          %989 = vmatpush1.msra.mxu0 0.0
          %990 = vmatprep.subr.mxu0 0.0
          %991 = vmatpush1.msra.mxu0 0.0
          %992 = vmatprep.subr.mxu0 0.0
          %993 = vmatpush1.msra.mxu0 0.0
          %994 = vmatprep.subr.mxu0 0.0
          %995 = vmatpush1.msra.mxu0 0.0
          %996 = vmatprep.subr.mxu0 0.0
          %997 = vmatpush1.msra.mxu0 0.0
          %998 = vmatprep.subr.mxu0 0.0
          %999 = vmatpush1.msra.mxu0 0.0
          %1000 = vmatprep.subr.mxu0 0.0
          %1001 = vmatpush1.msra.mxu0 0.0
          %1002 = vmatprep.subr.mxu0 0.0
          %1003 = vmatpush1.msra.mxu0 0.0
          %1004 = vmatprep.subr.mxu0 0.0
          %1005 = vmatpush1.msra.mxu0 0.0
          %1006 = vmatprep.subr.mxu0 0.0
          %1007 = vmatpush1.msra.mxu0 0.0
          %1008 = vmatprep.subr.mxu0 0.0
          %1009 = vmatpush1.msra.mxu0 0.0
          %1010 = vmatprep.subr.mxu0 0.0
          %1011 = vmatpush1.msra.mxu0 0.0
          %1012 = vmatprep.subr.mxu0 0.0
          %1013 = vmatpush1.msra.mxu0 0.0
          %1014 = vmatprep.subr.mxu0 0.0
          %1015 = vmatpush1.msra.mxu0 0.0
          %1016 = vmatprep.subr.mxu0 0.0
          %1017 = vmatpush1.msra.mxu0 0.0
          %1018 = vmatprep.subr.mxu0 0.0
          %1019 = vmatpush1.msra.mxu0 0.0
          %1020 = vmatprep.subr.mxu0 0.0
          %1021 = vmatpush1.msra.mxu0 0.0
          %1022 = vmatprep.subr.mxu0 0.0
          %1023 = vmatpush1.msra.mxu0 0.0
          %1024 = vmatprep.subr.mxu0 0.0
          %1025 = vmatpush1.msra.mxu0 0.0
          %1026 = vmatprep.subr.mxu0 0.0
          %1027 = vmatpush1.msra.mxu0 0.0
          %1028 = vmatprep.subr.mxu0 0.0
          %1029 = vmatpush1.msra.mxu0 0.0
          %1030 = vmatprep.subr.mxu0 0.0
          %1031 = vmatpush1.msra.mxu0 0.0
          %1032 = vmatprep.subr.mxu0 0.0
          %1033 = vmatpush1.msra.mxu0 0.0
          %1034 = vmatprep.mubr.f32.mxu0 0.0
          %1035 = vmatmul.mubr.f32.gmra.mrb[0].mxu0 %v965
          %v1036 = vpop.f32.mrb[0].mxu0
          %v1037 = vadd.f32 %v961, %v1036
          %v1038 = vpop.f32.mrb[0].mxu0
          %1039 = vmatprep.mubr.f32.mxu0 0.0
          %1040 = vmatmul.mubr.f32.gmra.mrb[0].mxu0 %v968
          %v1041 = vpop.f32.mrb[0].mxu0
          %v1042 = vadd.f32 %v961, %v1041
          %v1043 = vpop.f32.mrb[0].mxu0
          %1044 = vdwg.mxu0
          %1045 = vst [vmem:[#allocation2] sm:$0xff] 0.0
          %1046 = vst [vmem:[#allocation2 + $0x8] sm:$0xff] 0.0
          %1047 = vst [vmem:[#allocation2 + $0x10] sm:$0xff] 0.0
          %v1048 = vld [vmem:[%s3] sm:$0x1]
          %v1049 = vld [vmem:[#allocation9] sm:$0x1]
          %v1050 = vadd.f32 %v1048, %v1049
          %1051 = vst [vmem:[#allocation2] sm:$0x1] %v1050
          %v1052 = vld [vmem:[#allocation9 + $0x1] sm:$0xff]
          %v1053 = vld [vmem:[#allocation9 + $0x9] sm:$0xff]
          %v1054 = vadd.f32 %v1037, %v1052
          %v1055 = vadd.f32 %v1042, %v1053
          %1056 = vst [vmem:[#allocation2 + $0x1] sm:$0xff] %v1054
          %1057 = vst [vmem:[#allocation2 + $0x9] sm:$0xff] %v1055
        $region128: #{vit_forward.1} parent=103 // pred_fallthru
          _
        %v1058 = vld [vmem:[#allocation2] sm:$0xff]
        %v1059 = vld [vmem:[#allocation2 + $0x8] sm:$0xff]
        %v1060 = vld [vmem:[#allocation2 + $0x10] sm:$0xff]
        %v1061 = vld [vmem:[%s909] sm:$0x1]
        %v1062 = vld [vmem:[%s912] sm:$0x1]
        %1063 = vadd.xlane.f32.xlu0 %v1058
        %v1064 = vpop.xlane.xlu0 %1063
        %1065 = vadd.xlane.f32.xlu0 %v1059
        %v1066 = vpop.xlane.xlu0 %1065
        %1067 = vadd.xlane.f32.xlu0 %v1060
        %v1068 = vpop.xlane.xlu0 %1067
        %v1069 = vrcp.pop 128.0
        %v1070 = vmul.f32 %v1064, %v1069
        %v1071 = vmul.f32 %v1066, %v1069
        %v1072 = vmul.f32 %v1068, %v1069
        %v1073 = vsub.f32 %v1058, %v1070
        %v1074 = vsub.f32 %v1059, %v1071
        %v1075 = vsub.f32 %v1060, %v1072
        %v1076 = vmul.f32 %v1073, %v1073
        %v1077 = vmul.f32 %v1074, %v1074
        %v1078 = vmul.f32 %v1075, %v1075
        %1079 = vadd.xlane.f32.xlu0 %v1076
        %v1080 = vpop.xlane.xlu0 %1079
        %1081 = vadd.xlane.f32.xlu0 %v1077
        %v1082 = vpop.xlane.xlu0 %1081
        %1083 = vadd.xlane.f32.xlu0 %v1078
        %v1084 = vpop.xlane.xlu0 %1083
        %v1085 = vmul.f32 %v1080, %v1069
        %v1086 = vmul.f32 %v1082, %v1069
        %v1087 = vmul.f32 %v1084, %v1069
        %v1088 = vadd.f32 %v1085, 1e-05
        %v1089 = vadd.f32 %v1086, 1e-05
        %v1090 = vadd.f32 %v1087, 1e-05
        %v1091 = vrsqrt.pop %v1088
        %v1092 = vrsqrt.pop %v1089
        %v1093 = vrsqrt.pop %v1090
        %v1094 = vmul.f32 %v1073, %v1091
        %v1095 = vmul.f32 %v1074, %v1092
        %v1096 = vmul.f32 %v1075, %v1093
        %v1098 = vlaneseq
        %v1099 = vshrl.u32 %v1098, 7
        %v1100 = vsub.s32 0, %v1099
        %v1101 = vrot.slane %v1061, %v1100
        %v1103 = vmul.f32 %v1094, %v1101
        %v1104 = vmul.f32 %v1095, %v1101
        %v1105 = vmul.f32 %v1096, %v1101
        %v1107 = vlaneseq
        %v1108 = vshrl.u32 %v1107, 7
        %v1109 = vsub.s32 0, %v1108
        %v1110 = vrot.slane %v1062, %v1109
        %v1112 = vadd.f32 %v1103, %v1110
        %v1113 = vadd.f32 %v1104, %v1110
        %v1114 = vadd.f32 %v1105, %v1110
        %v1115 = vld [vmem:[%s917] sm:$0xff]
        %v1116 = vld [vmem:[%s917 + $0x8] sm:$0xff]
        %v1117 = vld [vmem:[%s917 + $0x10] sm:$0xff]
        %v1118 = vld [vmem:[%s917 + $0x18] sm:$0xff]
        %v1119 = vld [vmem:[%s917 + $0x20] sm:$0xff]
        %v1120 = vld [vmem:[%s917 + $0x28] sm:$0xff]
        %v1121 = vld [vmem:[%s917 + $0x30] sm:$0xff]
        %v1122 = vld [vmem:[%s917 + $0x38] sm:$0xff]
        %v1123 = vld [vmem:[%s917 + $0x40] sm:$0xff]
        %v1124 = vld [vmem:[%s917 + $0x48] sm:$0xff]
        %v1125 = vld [vmem:[%s917 + $0x50] sm:$0xff]
        %v1126 = vld [vmem:[%s917 + $0x58] sm:$0xff]
        %v1127 = vld [vmem:[%s917 + $0x60] sm:$0xff]
        %v1128 = vld [vmem:[%s917 + $0x68] sm:$0xff]
        %v1129 = vld [vmem:[%s917 + $0x70] sm:$0xff]
        %v1130 = vld [vmem:[%s917 + $0x78] sm:$0xff]
        %v1131 = vld [vmem:[%s917 + $0x80] sm:$0xff]
        %v1132 = vld [vmem:[%s917 + $0x88] sm:$0xff]
        %v1133 = vld [vmem:[%s917 + $0x90] sm:$0xff]
        %v1134 = vld [vmem:[%s917 + $0x98] sm:$0xff]
        %v1135 = vld [vmem:[%s917 + $0xa0] sm:$0xff]
        %v1136 = vld [vmem:[%s917 + $0xa8] sm:$0xff]
        %v1137 = vld [vmem:[%s917 + $0xb0] sm:$0xff]
        %v1138 = vld [vmem:[%s917 + $0xb8] sm:$0xff]
        %v1139 = vld [vmem:[%s917 + $0xc0] sm:$0xff]
        %v1140 = vld [vmem:[%s917 + $0xc8] sm:$0xff]
        %v1141 = vld [vmem:[%s917 + $0xd0] sm:$0xff]
        %v1142 = vld [vmem:[%s917 + $0xd8] sm:$0xff]
        %v1143 = vld [vmem:[%s917 + $0xe0] sm:$0xff]
        %v1144 = vld [vmem:[%s917 + $0xe8] sm:$0xff]
        %v1145 = vld [vmem:[%s917 + $0xf0] sm:$0xff]
        %v1146 = vld [vmem:[%s917 + $0xf8] sm:$0xff]
        %v1147 = vld [vmem:[%s917 + $0x100] sm:$0xff]
        %v1148 = vld [vmem:[%s917 + $0x108] sm:$0xff]
        %v1149 = vld [vmem:[%s917 + $0x110] sm:$0xff]
        %v1150 = vld [vmem:[%s917 + $0x118] sm:$0xff]
        %v1151 = vld [vmem:[%s917 + $0x120] sm:$0xff]
        %v1152 = vld [vmem:[%s917 + $0x128] sm:$0xff]
        %v1153 = vld [vmem:[%s917 + $0x130] sm:$0xff]
        %v1154 = vld [vmem:[%s917 + $0x138] sm:$0xff]
        %v1155 = vld [vmem:[%s917 + $0x140] sm:$0xff]
        %v1156 = vld [vmem:[%s917 + $0x148] sm:$0xff]
        %v1157 = vld [vmem:[%s917 + $0x150] sm:$0xff]
        %v1158 = vld [vmem:[%s917 + $0x158] sm:$0xff]
        %v1159 = vld [vmem:[%s917 + $0x160] sm:$0xff]
        %v1160 = vld [vmem:[%s917 + $0x168] sm:$0xff]
        %v1161 = vld [vmem:[%s917 + $0x170] sm:$0xff]
        %v1162 = vld [vmem:[%s917 + $0x178] sm:$0xff]
        %v1163 = vld [vmem:[%s788] sm:$0x7]
        %v1165 = vlaneseq
        %v1166 = vshrl.u32 %v1165, 7
        %v1167 = vsub.s32 0, %v1166
        %v1168 = vrot.slane %v1163, %v1167
        %v1169 = vlaneseq
        %v1170 = vshrl.u32 %v1169, 7
        %v1171 = vsub.s32 1, %v1170
        %v1172 = vrot.slane %v1163, %v1171
        %v1173 = vlaneseq
        %v1174 = vshrl.u32 %v1173, 7
        %v1175 = vsub.s32 2, %v1174
        %v1176 = vrot.slane %v1163, %v1175
        %1180 = vmatprep.subr.mxu0 %v1116
        %1181 = vmatpush1.msra.mxu0 %v1115
        %1182 = vmatprep.subr.mxu0 %v1119
        %1183 = vmatpush1.msra.mxu0 %v1118
        %1184 = vmatprep.subr.mxu0 %v1122
        %1185 = vmatpush1.msra.mxu0 %v1121
        %1186 = vmatprep.subr.mxu0 %v1125
        %1187 = vmatpush1.msra.mxu0 %v1124
        %1188 = vmatprep.subr.mxu0 %v1128
        %1189 = vmatpush1.msra.mxu0 %v1127
        %1190 = vmatprep.subr.mxu0 %v1131
        %1191 = vmatpush1.msra.mxu0 %v1130
        %1192 = vmatprep.subr.mxu0 %v1134
        %1193 = vmatpush1.msra.mxu0 %v1133
        %1194 = vmatprep.subr.mxu0 %v1137
        %1195 = vmatpush1.msra.mxu0 %v1136
        %1196 = vmatprep.subr.mxu0 %v1140
        %1197 = vmatpush1.msra.mxu0 %v1139
        %1198 = vmatprep.subr.mxu0 %v1143
        %1199 = vmatpush1.msra.mxu0 %v1142
        %1200 = vmatprep.subr.mxu0 %v1146
        %1201 = vmatpush1.msra.mxu0 %v1145
        %1202 = vmatprep.subr.mxu0 %v1149
        %1203 = vmatpush1.msra.mxu0 %v1148
        %1204 = vmatprep.subr.mxu0 %v1152
        %1205 = vmatpush1.msra.mxu0 %v1151
        %1206 = vmatprep.subr.mxu0 %v1155
        %1207 = vmatpush1.msra.mxu0 %v1154
        %1208 = vmatprep.subr.mxu0 %v1158
        %1209 = vmatpush1.msra.mxu0 %v1157
        %1210 = vmatprep.subr.mxu0 %v1161
        %1211 = vmatpush1.msra.mxu0 %v1160
        %1212 = vmatprep.subr.mxu0 0.0
        %1213 = vmatpush1.msra.mxu0 0.0
        %1214 = vmatprep.subr.mxu0 0.0
        %1215 = vmatpush1.msra.mxu0 0.0
        %1216 = vmatprep.subr.mxu0 0.0
        %1217 = vmatpush1.msra.mxu0 0.0
        %1218 = vmatprep.subr.mxu0 0.0
        %1219 = vmatpush1.msra.mxu0 0.0
        %1220 = vmatprep.subr.mxu0 0.0
        %1221 = vmatpush1.msra.mxu0 0.0
        %1222 = vmatprep.subr.mxu0 0.0
        %1223 = vmatpush1.msra.mxu0 0.0
        %1224 = vmatprep.subr.mxu0 0.0
        %1225 = vmatpush1.msra.mxu0 0.0
        %1226 = vmatprep.subr.mxu0 0.0
        %1227 = vmatpush1.msra.mxu0 0.0
        %1228 = vmatprep.subr.mxu0 0.0
        %1229 = vmatpush1.msra.mxu0 0.0
        %1230 = vmatprep.subr.mxu0 0.0
        %1231 = vmatpush1.msra.mxu0 0.0
        %1232 = vmatprep.subr.mxu0 0.0
        %1233 = vmatpush1.msra.mxu0 0.0
        %1234 = vmatprep.subr.mxu0 0.0
        %1235 = vmatpush1.msra.mxu0 0.0
        %1236 = vmatprep.subr.mxu0 0.0
        %1237 = vmatpush1.msra.mxu0 0.0
        %1238 = vmatprep.subr.mxu0 0.0
        %1239 = vmatpush1.msra.mxu0 0.0
        %1240 = vmatprep.subr.mxu0 0.0
        %1241 = vmatpush1.msra.mxu0 0.0
        %1242 = vmatprep.subr.mxu0 0.0
        %1243 = vmatpush1.msra.mxu0 0.0
        %1244 = vmatprep.mubr.f32.mxu0 0.0
        %1245 = vmatmul.mubr.f32.gmra.mrb[0].mxu0 %v1112
        %v1246 = vpop.f32.mrb[0].mxu0
        %v1247 = vadd.f32 %v1168, %v1246
        %v1248 = vpop.f32.mrb[0].mxu0
        %v1249 = vadd.f32 %v1172, %v1248
        %1250 = vmatprep.mubr.f32.mxu0 0.0
        %1251 = vmatmul.mubr.f32.gmra.mrb[0].mxu0 %v1113
        %v1252 = vpop.f32.mrb[0].mxu0
        %v1253 = vadd.f32 %v1168, %v1252
        %v1254 = vpop.f32.mrb[0].mxu0
        %v1255 = vadd.f32 %v1172, %v1254
        %1256 = vmatprep.mubr.f32.mxu0 0.0
        %1257 = vmatmul.mubr.f32.gmra.mrb[0].mxu0 %v1114
        %v1258 = vpop.f32.mrb[0].mxu0
        %v1259 = vadd.f32 %v1168, %v1258
        %v1260 = vpop.f32.mrb[0].mxu0
        %v1261 = vadd.f32 %v1172, %v1260
        %1262 = vdwg.mxu0
        %1263 = vmatprep.subr.mxu0 0.0
        %1264 = vmatpush1.msra.mxu0 %v1117
        %1265 = vmatprep.subr.mxu0 0.0
        %1266 = vmatpush1.msra.mxu0 %v1120
        %1267 = vmatprep.subr.mxu0 0.0
        %1268 = vmatpush1.msra.mxu0 %v1123
        %1269 = vmatprep.subr.mxu0 0.0
        %1270 = vmatpush1.msra.mxu0 %v1126
        %1271 = vmatprep.subr.mxu0 0.0
        %1272 = vmatpush1.msra.mxu0 %v1129
        %1273 = vmatprep.subr.mxu0 0.0
        %1274 = vmatpush1.msra.mxu0 %v1132
        %1275 = vmatprep.subr.mxu0 0.0
        %1276 = vmatpush1.msra.mxu0 %v1135
        %1277 = vmatprep.subr.mxu0 0.0
        %1278 = vmatpush1.msra.mxu0 %v1138
        %1279 = vmatprep.subr.mxu0 0.0
        %1280 = vmatpush1.msra.mxu0 %v1141
        %1281 = vmatprep.subr.mxu0 0.0
        %1282 = vmatpush1.msra.mxu0 %v1144
        %1283 = vmatprep.subr.mxu0 0.0
        %1284 = vmatpush1.msra.mxu0 %v1147
        %1285 = vmatprep.subr.mxu0 0.0
        %1286 = vmatpush1.msra.mxu0 %v1150
        %1287 = vmatprep.subr.mxu0 0.0
        %1288 = vmatpush1.msra.mxu0 %v1153
        %1289 = vmatprep.subr.mxu0 0.0
        %1290 = vmatpush1.msra.mxu0 %v1156
        %1291 = vmatprep.subr.mxu0 0.0
        %1292 = vmatpush1.msra.mxu0 %v1159
        %1293 = vmatprep.subr.mxu0 0.0
        %1294 = vmatpush1.msra.mxu0 %v1162
        %1295 = vmatprep.subr.mxu0 0.0
        %1296 = vmatpush1.msra.mxu0 0.0
        %1297 = vmatprep.subr.mxu0 0.0
        %1298 = vmatpush1.msra.mxu0 0.0
        %1299 = vmatprep.subr.mxu0 0.0
        %1300 = vmatpush1.msra.mxu0 0.0
        %1301 = vmatprep.subr.mxu0 0.0
        %1302 = vmatpush1.msra.mxu0 0.0
        %1303 = vmatprep.subr.mxu0 0.0
        %1304 = vmatpush1.msra.mxu0 0.0
        %1305 = vmatprep.subr.mxu0 0.0
        %1306 = vmatpush1.msra.mxu0 0.0
        %1307 = vmatprep.subr.mxu0 0.0
        %1308 = vmatpush1.msra.mxu0 0.0
        %1309 = vmatprep.subr.mxu0 0.0
        %1310 = vmatpush1.msra.mxu0 0.0
        %1311 = vmatprep.subr.mxu0 0.0
        %1312 = vmatpush1.msra.mxu0 0.0
        %1313 = vmatprep.subr.mxu0 0.0
        %1314 = vmatpush1.msra.mxu0 0.0
        %1315 = vmatprep.subr.mxu0 0.0
        %1316 = vmatpush1.msra.mxu0 0.0
        %1317 = vmatprep.subr.mxu0 0.0
        %1318 = vmatpush1.msra.mxu0 0.0
        %1319 = vmatprep.subr.mxu0 0.0
        %1320 = vmatpush1.msra.mxu0 0.0
        %1321 = vmatprep.subr.mxu0 0.0
        %1322 = vmatpush1.msra.mxu0 0.0
        %1323 = vmatprep.subr.mxu0 0.0
        %1324 = vmatpush1.msra.mxu0 0.0
        %1325 = vmatprep.subr.mxu0 0.0
        %1326 = vmatpush1.msra.mxu0 0.0
        %1327 = vmatprep.mubr.f32.mxu0 0.0
        %1328 = vmatmul.mubr.f32.gmra.mrb[0].mxu0 %v1112
        %v1329 = vpop.f32.mrb[0].mxu0
        %v1330 = vadd.f32 %v1176, %v1329
        %v1331 = vpop.f32.mrb[0].mxu0
        %1332 = vmatprep.mubr.f32.mxu0 0.0
        %1333 = vmatmul.mubr.f32.gmra.mrb[0].mxu0 %v1113
        %v1334 = vpop.f32.mrb[0].mxu0
        %v1335 = vadd.f32 %v1176, %v1334
        %v1336 = vpop.f32.mrb[0].mxu0
        %1337 = vmatprep.mubr.f32.mxu0 0.0
        %1338 = vmatmul.mubr.f32.gmra.mrb[0].mxu0 %v1114
        %v1339 = vpop.f32.mrb[0].mxu0
        %v1340 = vadd.f32 %v1176, %v1339
        %v1341 = vpop.f32.mrb[0].mxu0
        %1342 = vdwg.mxu0
        %1343 = vst [vmem:[#allocation3] sm:$0xff] %v1247
        %1344 = vst [vmem:[#allocation3 + $0x8] sm:$0xff] %v1249
        %1345 = vst [vmem:[#allocation3 + $0x10] sm:$0xff] %v1330
        %1346 = vst [vmem:[#allocation3 + $0x18] sm:$0xff] %v1253
        %1347 = vst [vmem:[#allocation3 + $0x20] sm:$0xff] %v1255
        %1348 = vst [vmem:[#allocation3 + $0x28] sm:$0xff] %v1335
        %1349 = vst [vmem:[#allocation3 + $0x30] sm:$0xff] %v1259
        %1350 = vst [vmem:[#allocation3 + $0x38] sm:$0xff] %v1261
        %1351 = vst [vmem:[#allocation3 + $0x40] sm:$0xff] %v1340
        %v1352 = vlaneseq
        %v1353 = vand.u32 %v1352, 127
        %vm1354 = vcmp.lt.s32.totalorder %v1353, 17
        %v1355 = vsel %vm1354, 0.0, -1e+30
        %v1356 = vld [vmem:[#allocation3] sm:$0xff]
        %v1357 = vld [vmem:[#allocation3 + $0x18] sm:$0xff]
        %v1358 = vld [vmem:[#allocation3 + $0x30] sm:$0xff]
        %v1359 = vld [vmem:[#allocation3 + $0x8] sm:$0xff]
        %v1360 = vld [vmem:[#allocation3 + $0x20] sm:$0xff]
        %v1361 = vld [vmem:[#allocation3 + $0x38] sm:$0xff]
        %v1362 = vld [vmem:[#allocation3 + $0x10] sm:$0xff]
        %v1363 = vld [vmem:[#allocation3 + $0x28] sm:$0xff]
        %v1364 = vld [vmem:[#allocation3 + $0x40] sm:$0xff]
        %vm1365 = vcmask 261120
        %v1367 = vsel %vm1365, %v1356, 0
        %v1370 = vsel %vm1365, %v1357, 0
        %v1373 = vsel %vm1365, %v1358, 0
        %v1376 = vsel %vm1365, %v1359, 0
        %v1379 = vsel %vm1365, %v1360, 0
        %v1382 = vsel %vm1365, %v1361, 0
        %1384 = vmatprep.subr.mxu0 0.0
        %1385 = vmatpush1.xpose.msra.mxu0 %v1376
        %1386 = vmatprep.subr.mxu0 0.0
        %1387 = vmatpush1.xpose.msra.mxu0 %v1379
        %1388 = vmatprep.subr.mxu0 0.0
        %1389 = vmatpush1.xpose.msra.mxu0 %v1382
        %1390 = vmatprep.subr.mxu0 0.0
        %1391 = vmatpush1.xpose.msra.mxu0 0.0
        %1392 = vmatprep.subr.mxu0 0.0
        %1393 = vmatpush1.xpose.msra.mxu0 0.0
        %1394 = vmatprep.subr.mxu0 0.0
        %1395 = vmatpush1.xpose.msra.mxu0 0.0
        %1396 = vmatprep.subr.mxu0 0.0
        %1397 = vmatpush1.xpose.msra.mxu0 0.0
        %1398 = vmatprep.subr.mxu0 0.0
        %1399 = vmatpush1.xpose.msra.mxu0 0.0
        %1400 = vmatprep.subr.mxu0 0.0
        %1401 = vmatpush1.xpose.msra.mxu0 0.0
        %1402 = vmatprep.subr.mxu0 0.0
        %1403 = vmatpush1.xpose.msra.mxu0 0.0
        %1404 = vmatprep.subr.mxu0 0.0
        %1405 = vmatpush1.xpose.msra.mxu0 0.0
        %1406 = vmatprep.subr.mxu0 0.0
        %1407 = vmatpush1.xpose.msra.mxu0 0.0
        %1408 = vmatprep.subr.mxu0 0.0
        %1409 = vmatpush1.xpose.msra.mxu0 0.0
        %1410 = vmatprep.subr.mxu0 0.0
        %1411 = vmatpush1.xpose.msra.mxu0 0.0
        %1412 = vmatprep.subr.mxu0 0.0
        %1413 = vmatpush1.xpose.msra.mxu0 0.0
        %1414 = vmatprep.subr.mxu0 0.0
        %1415 = vmatpush1.xpose.msra.mxu0 0.0
        %1416 = vmatprep.subr.mxu0 0.0
        %1417 = vmatpush1.xpose.msra.mxu0 0.0
        %1418 = vmatprep.subr.mxu0 0.0
        %1419 = vmatpush1.xpose.msra.mxu0 0.0
        %1420 = vmatprep.subr.mxu0 0.0
        %1421 = vmatpush1.xpose.msra.mxu0 0.0
        %1422 = vmatprep.subr.mxu0 0.0
        %1423 = vmatpush1.xpose.msra.mxu0 0.0
        %1424 = vmatprep.subr.mxu0 0.0
        %1425 = vmatpush1.xpose.msra.mxu0 0.0
        %1426 = vmatprep.subr.mxu0 0.0
        %1427 = vmatpush1.xpose.msra.mxu0 0.0
        %1428 = vmatprep.subr.mxu0 0.0
        %1429 = vmatpush1.xpose.msra.mxu0 0.0
        %1430 = vmatprep.subr.mxu0 0.0
        %1431 = vmatpush1.xpose.msra.mxu0 0.0
        %1432 = vmatprep.subr.mxu0 0.0
        %1433 = vmatpush1.xpose.msra.mxu0 0.0
        %1434 = vmatprep.subr.mxu0 0.0
        %1435 = vmatpush1.xpose.msra.mxu0 0.0
        %1436 = vmatprep.subr.mxu0 0.0
        %1437 = vmatpush1.xpose.msra.mxu0 0.0
        %1438 = vmatprep.subr.mxu0 0.0
        %1439 = vmatpush1.xpose.msra.mxu0 0.0
        %1440 = vmatprep.subr.mxu0 0.0
        %1441 = vmatpush1.xpose.msra.mxu0 0.0
        %1442 = vmatprep.subr.mxu0 0.0
        %1443 = vmatpush1.xpose.msra.mxu0 0.0
        %1444 = vmatprep.subr.mxu0 0.0
        %1445 = vmatpush1.xpose.msra.mxu0 0.0
        %1446 = vmatprep.subr.mxu0 0.0
        %1447 = vmatpush1.xpose.msra.mxu0 0.0
        %1448 = vmatprep.mubr.f32.mxu0 0.0
        %1449 = vmatmul.mubr.f32.gmra.mrb[0].mxu0 %v1367
        %v1450 = vpop.f32.mrb[0].mxu0
        %v1451 = vadd.f32 0.0, %v1450
        %v1452 = vpop.f32.mrb[0].mxu0
        %1453 = vmatprep.mubr.f32.mxu0 0.0
        %1454 = vmatmul.mubr.f32.gmra.mrb[0].mxu0 %v1370
        %v1455 = vpop.f32.mrb[0].mxu0
        %v1456 = vadd.f32 0.0, %v1455
        %v1457 = vpop.f32.mrb[0].mxu0
        %1458 = vmatprep.mubr.f32.mxu0 0.0
        %1459 = vmatmul.mubr.f32.gmra.mrb[0].mxu0 %v1373
        %v1460 = vpop.f32.mrb[0].mxu0
        %v1461 = vadd.f32 0.0, %v1460
        %v1462 = vpop.f32.mrb[0].mxu0
        %1463 = vdwg.mxu0
        %v1464 = vmul.f32 %v1451, 0.17677669
        %v1465 = vmul.f32 %v1456, 0.17677669
        %v1466 = vmul.f32 %v1461, 0.17677669
        %v1467 = vadd.f32 %v1464, %v1355
        %v1468 = vadd.f32 %v1465, %v1355
        %v1469 = vadd.f32 %v1466, %v1355
        %vm1470 = vcmask 195584
        %v1471 = vsel %vm1470, %v1467, -inf
        %1472 = vmax.xlane.f32.xlu0 %v1471
        %v1473 = vpop.xlane.xlu0 %1472
        %v1474 = vsel %vm1470, %v1468, -inf
        %1475 = vmax.xlane.f32.xlu0 %v1474
        %v1476 = vpop.xlane.xlu0 %1475
        %v1477 = vsel %vm1470, %v1469, -inf
        %1478 = vmax.xlane.f32.xlu0 %v1477
        %v1479 = vpop.xlane.xlu0 %1478
        %v1480 = vsub.f32 %v1467, %v1473
        %v1481 = vsub.f32 %v1468, %v1476
        %v1482 = vsub.f32 %v1469, %v1479
        %v1483 = vmul.f32 %v1480, 1.442695
        %v1484 = vpow.pop %v1483
        %v1485 = vmul.f32 %v1481, 1.442695
        %v1486 = vpow.pop %v1485
        %v1487 = vmul.f32 %v1482, 1.442695
        %v1488 = vpow.pop %v1487
        %v1489 = vsel %vm1470, %v1484, 0.0
        %1490 = vadd.xlane.f32.xlu0 %v1489
        %v1491 = vpop.xlane.xlu0 %1490
        %v1492 = vsel %vm1470, %v1486, 0.0
        %1493 = vadd.xlane.f32.xlu0 %v1492
        %v1494 = vpop.xlane.xlu0 %1493
        %v1495 = vsel %vm1470, %v1488, 0.0
        %1496 = vadd.xlane.f32.xlu0 %v1495
        %v1497 = vpop.xlane.xlu0 %1496
        %v1498 = vrcp.pop %v1491
        %v1499 = vmul.f32 %v1484, %v1498
        %v1500 = vrcp.pop %v1494
        %v1501 = vmul.f32 %v1486, %v1500
        %v1502 = vrcp.pop %v1497
        %v1503 = vmul.f32 %v1488, %v1502
        %v1505 = vsel %vm1470, %v1499, 0
        %v1508 = vsel %vm1470, %v1501, 0
        %v1511 = vsel %vm1470, %v1503, 0
        %1513 = vmatprep.subr.mxu0 0.0
        %1514 = vmatpush1.msra.mxu0 %v1362
        %1515 = vmatprep.subr.mxu0 0.0
        %1516 = vmatpush1.msra.mxu0 %v1363
        %1517 = vmatprep.subr.mxu0 0.0
        %1518 = vmatpush1.msra.mxu0 %v1364
        %1519 = vmatprep.subr.mxu0 0.0
        %1520 = vmatpush1.msra.mxu0 0.0
        %1521 = vmatprep.subr.mxu0 0.0
        %1522 = vmatpush1.msra.mxu0 0.0
        %1523 = vmatprep.subr.mxu0 0.0
        %1524 = vmatpush1.msra.mxu0 0.0
        %1525 = vmatprep.subr.mxu0 0.0
        %1526 = vmatpush1.msra.mxu0 0.0
        %1527 = vmatprep.subr.mxu0 0.0
        %1528 = vmatpush1.msra.mxu0 0.0
        %1529 = vmatprep.subr.mxu0 0.0
        %1530 = vmatpush1.msra.mxu0 0.0
        %1531 = vmatprep.subr.mxu0 0.0
        %1532 = vmatpush1.msra.mxu0 0.0
        %1533 = vmatprep.subr.mxu0 0.0
        %1534 = vmatpush1.msra.mxu0 0.0
        %1535 = vmatprep.subr.mxu0 0.0
        %1536 = vmatpush1.msra.mxu0 0.0
        %1537 = vmatprep.subr.mxu0 0.0
        %1538 = vmatpush1.msra.mxu0 0.0
        %1539 = vmatprep.subr.mxu0 0.0
        %1540 = vmatpush1.msra.mxu0 0.0
        %1541 = vmatprep.subr.mxu0 0.0
        %1542 = vmatpush1.msra.mxu0 0.0
        %1543 = vmatprep.subr.mxu0 0.0
        %1544 = vmatpush1.msra.mxu0 0.0
        %1545 = vmatprep.subr.mxu0 0.0
        %1546 = vmatpush1.msra.mxu0 0.0
        %1547 = vmatprep.subr.mxu0 0.0
        %1548 = vmatpush1.msra.mxu0 0.0
        %1549 = vmatprep.subr.mxu0 0.0
        %1550 = vmatpush1.msra.mxu0 0.0
        %1551 = vmatprep.subr.mxu0 0.0
        %1552 = vmatpush1.msra.mxu0 0.0
        %1553 = vmatprep.subr.mxu0 0.0
        %1554 = vmatpush1.msra.mxu0 0.0
        %1555 = vmatprep.subr.mxu0 0.0
        %1556 = vmatpush1.msra.mxu0 0.0
        %1557 = vmatprep.subr.mxu0 0.0
        %1558 = vmatpush1.msra.mxu0 0.0
        %1559 = vmatprep.subr.mxu0 0.0
        %1560 = vmatpush1.msra.mxu0 0.0
        %1561 = vmatprep.subr.mxu0 0.0
        %1562 = vmatpush1.msra.mxu0 0.0
        %1563 = vmatprep.subr.mxu0 0.0
        %1564 = vmatpush1.msra.mxu0 0.0
        %1565 = vmatprep.subr.mxu0 0.0
        %1566 = vmatpush1.msra.mxu0 0.0
        %1567 = vmatprep.subr.mxu0 0.0
        %1568 = vmatpush1.msra.mxu0 0.0
        %1569 = vmatprep.subr.mxu0 0.0
        %1570 = vmatpush1.msra.mxu0 0.0
        %1571 = vmatprep.subr.mxu0 0.0
        %1572 = vmatpush1.msra.mxu0 0.0
        %1573 = vmatprep.subr.mxu0 0.0
        %1574 = vmatpush1.msra.mxu0 0.0
        %1575 = vmatprep.subr.mxu0 0.0
        %1576 = vmatpush1.msra.mxu0 0.0
        %1577 = vmatprep.mubr.f32.mxu0 0.0
        %1578 = vmatmul.mubr.f32.gmra.mrb[0].mxu0 %v1505
        %v1579 = vpop.f32.mrb[0].mxu0
        %v1580 = vadd.f32 0.0, %v1579
        %v1581 = vpop.f32.mrb[0].mxu0
        %1582 = vmatprep.mubr.f32.mxu0 0.0
        %1583 = vmatmul.mubr.f32.gmra.mrb[0].mxu0 %v1508
        %v1584 = vpop.f32.mrb[0].mxu0
        %v1585 = vadd.f32 0.0, %v1584
        %v1586 = vpop.f32.mrb[0].mxu0
        %1587 = vmatprep.mubr.f32.mxu0 0.0
        %1588 = vmatmul.mubr.f32.gmra.mrb[0].mxu0 %v1511
        %v1589 = vpop.f32.mrb[0].mxu0
        %v1590 = vadd.f32 0.0, %v1589
        %v1591 = vpop.f32.mrb[0].mxu0
        %1592 = vdwg.mxu0
        %1593 = vst.msk [vmem:[#allocation3] sm:$0xff] %vm1365, %v1580
        %1594 = vst.msk [vmem:[#allocation3 + $0x18] sm:$0xff] %vm1365, %v1585
        %1595 = vst.msk [vmem:[#allocation3 + $0x30] sm:$0xff] %vm1365, %v1590
        %v1596 = vld [vmem:[#allocation3] sm:$0xff]
        %v1597 = vld [vmem:[#allocation3 + $0x18] sm:$0xff]
        %v1598 = vld [vmem:[#allocation3 + $0x30] sm:$0xff]
        %v1599 = vld [vmem:[#allocation3 + $0x8] sm:$0xff]
        %v1600 = vld [vmem:[#allocation3 + $0x20] sm:$0xff]
        %v1601 = vld [vmem:[#allocation3 + $0x38] sm:$0xff]
        %v1602 = vld [vmem:[#allocation3 + $0x10] sm:$0xff]
        %v1603 = vld [vmem:[#allocation3 + $0x28] sm:$0xff]
        %v1604 = vld [vmem:[#allocation3 + $0x40] sm:$0xff]
        %1608 = vrot.lane.b32.xlu0 %v1596, 96
        %v1609 = vpop.permute.xlu0 %1608
        %1610 = vrot.lane.b32.xlu0 %v1597, 96
        %v1611 = vpop.permute.xlu0 %1610
        %1612 = vrot.lane.b32.xlu0 %v1598, 96
        %v1613 = vpop.permute.xlu0 %1612
        %1617 = vrot.lane.b32.xlu0 %v1599, 96
        %v1618 = vpop.permute.xlu0 %1617
        %1619 = vrot.lane.b32.xlu0 %v1600, 96
        %v1620 = vpop.permute.xlu0 %1619
        %1621 = vrot.lane.b32.xlu0 %v1601, 96
        %v1622 = vpop.permute.xlu0 %1621
        %v1623 = vsel %vm1365, %v1609, 0
        %v1625 = vsel %vm1365, %v1611, 0
        %v1627 = vsel %vm1365, %v1613, 0
        %v1629 = vsel %vm1365, %v1618, 0
        %v1631 = vsel %vm1365, %v1620, 0
        %v1633 = vsel %vm1365, %v1622, 0
        %1635 = vmatprep.subr.mxu0 0.0
        %1636 = vmatpush1.xpose.msra.mxu0 %v1629
        %1637 = vmatprep.subr.mxu0 0.0
        %1638 = vmatpush1.xpose.msra.mxu0 %v1631
        %1639 = vmatprep.subr.mxu0 0.0
        %1640 = vmatpush1.xpose.msra.mxu0 %v1633
        %1641 = vmatprep.subr.mxu0 0.0
        %1642 = vmatpush1.xpose.msra.mxu0 0.0
        %1643 = vmatprep.subr.mxu0 0.0
        %1644 = vmatpush1.xpose.msra.mxu0 0.0
        %1645 = vmatprep.subr.mxu0 0.0
        %1646 = vmatpush1.xpose.msra.mxu0 0.0
        %1647 = vmatprep.subr.mxu0 0.0
        %1648 = vmatpush1.xpose.msra.mxu0 0.0
        %1649 = vmatprep.subr.mxu0 0.0
        %1650 = vmatpush1.xpose.msra.mxu0 0.0
        %1651 = vmatprep.subr.mxu0 0.0
        %1652 = vmatpush1.xpose.msra.mxu0 0.0
        %1653 = vmatprep.subr.mxu0 0.0
        %1654 = vmatpush1.xpose.msra.mxu0 0.0
        %1655 = vmatprep.subr.mxu0 0.0
        %1656 = vmatpush1.xpose.msra.mxu0 0.0
        %1657 = vmatprep.subr.mxu0 0.0
        %1658 = vmatpush1.xpose.msra.mxu0 0.0
        %1659 = vmatprep.subr.mxu0 0.0
        %1660 = vmatpush1.xpose.msra.mxu0 0.0
        %1661 = vmatprep.subr.mxu0 0.0
        %1662 = vmatpush1.xpose.msra.mxu0 0.0
        %1663 = vmatprep.subr.mxu0 0.0
        %1664 = vmatpush1.xpose.msra.mxu0 0.0
        %1665 = vmatprep.subr.mxu0 0.0
        %1666 = vmatpush1.xpose.msra.mxu0 0.0
        %1667 = vmatprep.subr.mxu0 0.0
        %1668 = vmatpush1.xpose.msra.mxu0 0.0
        %1669 = vmatprep.subr.mxu0 0.0
        %1670 = vmatpush1.xpose.msra.mxu0 0.0
        %1671 = vmatprep.subr.mxu0 0.0
        %1672 = vmatpush1.xpose.msra.mxu0 0.0
        %1673 = vmatprep.subr.mxu0 0.0
        %1674 = vmatpush1.xpose.msra.mxu0 0.0
        %1675 = vmatprep.subr.mxu0 0.0
        %1676 = vmatpush1.xpose.msra.mxu0 0.0
        %1677 = vmatprep.subr.mxu0 0.0
        %1678 = vmatpush1.xpose.msra.mxu0 0.0
        %1679 = vmatprep.subr.mxu0 0.0
        %1680 = vmatpush1.xpose.msra.mxu0 0.0
        %1681 = vmatprep.subr.mxu0 0.0
        %1682 = vmatpush1.xpose.msra.mxu0 0.0
        %1683 = vmatprep.subr.mxu0 0.0
        %1684 = vmatpush1.xpose.msra.mxu0 0.0
        %1685 = vmatprep.subr.mxu0 0.0
        %1686 = vmatpush1.xpose.msra.mxu0 0.0
        %1687 = vmatprep.subr.mxu0 0.0
        %1688 = vmatpush1.xpose.msra.mxu0 0.0
        %1689 = vmatprep.subr.mxu0 0.0
        %1690 = vmatpush1.xpose.msra.mxu0 0.0
        %1691 = vmatprep.subr.mxu0 0.0
        %1692 = vmatpush1.xpose.msra.mxu0 0.0
        %1693 = vmatprep.subr.mxu0 0.0
        %1694 = vmatpush1.xpose.msra.mxu0 0.0
        %1695 = vmatprep.subr.mxu0 0.0
        %1696 = vmatpush1.xpose.msra.mxu0 0.0
        %1697 = vmatprep.subr.mxu0 0.0
        %1698 = vmatpush1.xpose.msra.mxu0 0.0
        %1699 = vmatprep.mubr.f32.mxu0 0.0
        %1700 = vmatmul.mubr.f32.gmra.mrb[0].mxu0 %v1623
        %v1701 = vpop.f32.mrb[0].mxu0
        %v1702 = vadd.f32 0.0, %v1701
        %v1703 = vpop.f32.mrb[0].mxu0
        %1704 = vmatprep.mubr.f32.mxu0 0.0
        %1705 = vmatmul.mubr.f32.gmra.mrb[0].mxu0 %v1625
        %v1706 = vpop.f32.mrb[0].mxu0
        %v1707 = vadd.f32 0.0, %v1706
        %v1708 = vpop.f32.mrb[0].mxu0
        %1709 = vmatprep.mubr.f32.mxu0 0.0
        %1710 = vmatmul.mubr.f32.gmra.mrb[0].mxu0 %v1627
        %v1711 = vpop.f32.mrb[0].mxu0
        %v1712 = vadd.f32 0.0, %v1711
        %v1713 = vpop.f32.mrb[0].mxu0
        %1714 = vdwg.mxu0
        %v1715 = vmul.f32 %v1702, 0.17677669
        %v1716 = vmul.f32 %v1707, 0.17677669
        %v1717 = vmul.f32 %v1712, 0.17677669
        %v1718 = vadd.f32 %v1715, %v1355
        %v1719 = vadd.f32 %v1716, %v1355
        %v1720 = vadd.f32 %v1717, %v1355
        %v1721 = vsel %vm1470, %v1718, -inf
        %1722 = vmax.xlane.f32.xlu0 %v1721
        %v1723 = vpop.xlane.xlu0 %1722
        %v1724 = vsel %vm1470, %v1719, -inf
        %1725 = vmax.xlane.f32.xlu0 %v1724
        %v1726 = vpop.xlane.xlu0 %1725
        %v1727 = vsel %vm1470, %v1720, -inf
        %1728 = vmax.xlane.f32.xlu0 %v1727
        %v1729 = vpop.xlane.xlu0 %1728
        %v1730 = vsub.f32 %v1718, %v1723
        %v1731 = vsub.f32 %v1719, %v1726
        %v1732 = vsub.f32 %v1720, %v1729
        %v1733 = vmul.f32 %v1730, 1.442695
        %v1734 = vpow.pop %v1733
        %v1735 = vmul.f32 %v1731, 1.442695
        %v1736 = vpow.pop %v1735
        %v1737 = vmul.f32 %v1732, 1.442695
        %v1738 = vpow.pop %v1737
        %v1739 = vsel %vm1470, %v1734, 0.0
        %1740 = vadd.xlane.f32.xlu0 %v1739
        %v1741 = vpop.xlane.xlu0 %1740
        %v1742 = vsel %vm1470, %v1736, 0.0
        %1743 = vadd.xlane.f32.xlu0 %v1742
        %v1744 = vpop.xlane.xlu0 %1743
        %v1745 = vsel %vm1470, %v1738, 0.0
        %1746 = vadd.xlane.f32.xlu0 %v1745
        %v1747 = vpop.xlane.xlu0 %1746
        %v1748 = vrcp.pop %v1741
        %v1749 = vmul.f32 %v1734, %v1748
        %v1750 = vrcp.pop %v1744
        %v1751 = vmul.f32 %v1736, %v1750
        %v1752 = vrcp.pop %v1747
        %v1753 = vmul.f32 %v1738, %v1752
        %1757 = vrot.lane.b32.xlu0 %v1602, 96
        %v1758 = vpop.permute.xlu0 %1757
        %1759 = vrot.lane.b32.xlu0 %v1603, 96
        %v1760 = vpop.permute.xlu0 %1759
        %1761 = vrot.lane.b32.xlu0 %v1604, 96
        %v1762 = vpop.permute.xlu0 %1761
        %v1767 = vsel %vm1470, %v1749, 0
        %v1770 = vsel %vm1470, %v1751, 0
        %v1773 = vsel %vm1470, %v1753, 0
        %1775 = vmatprep.subr.mxu0 0.0
        %1776 = vmatpush1.msra.mxu0 %v1758
        %1777 = vmatprep.subr.mxu0 0.0
        %1778 = vmatpush1.msra.mxu0 %v1760
        %1779 = vmatprep.subr.mxu0 0.0
        %1780 = vmatpush1.msra.mxu0 %v1762
        %1781 = vmatprep.subr.mxu0 0.0
        %1782 = vmatpush1.msra.mxu0 0.0
        %1783 = vmatprep.subr.mxu0 0.0
        %1784 = vmatpush1.msra.mxu0 0.0
        %1785 = vmatprep.subr.mxu0 0.0
        %1786 = vmatpush1.msra.mxu0 0.0
        %1787 = vmatprep.subr.mxu0 0.0
        %1788 = vmatpush1.msra.mxu0 0.0
        %1789 = vmatprep.subr.mxu0 0.0
        %1790 = vmatpush1.msra.mxu0 0.0
        %1791 = vmatprep.subr.mxu0 0.0
        %1792 = vmatpush1.msra.mxu0 0.0
        %1793 = vmatprep.subr.mxu0 0.0
        %1794 = vmatpush1.msra.mxu0 0.0
        %1795 = vmatprep.subr.mxu0 0.0
        %1796 = vmatpush1.msra.mxu0 0.0
        %1797 = vmatprep.subr.mxu0 0.0
        %1798 = vmatpush1.msra.mxu0 0.0
        %1799 = vmatprep.subr.mxu0 0.0
        %1800 = vmatpush1.msra.mxu0 0.0
        %1801 = vmatprep.subr.mxu0 0.0
        %1802 = vmatpush1.msra.mxu0 0.0
        %1803 = vmatprep.subr.mxu0 0.0
        %1804 = vmatpush1.msra.mxu0 0.0
        %1805 = vmatprep.subr.mxu0 0.0
        %1806 = vmatpush1.msra.mxu0 0.0
        %1807 = vmatprep.subr.mxu0 0.0
        %1808 = vmatpush1.msra.mxu0 0.0
        %1809 = vmatprep.subr.mxu0 0.0
        %1810 = vmatpush1.msra.mxu0 0.0
        %1811 = vmatprep.subr.mxu0 0.0
        %1812 = vmatpush1.msra.mxu0 0.0
        %1813 = vmatprep.subr.mxu0 0.0
        %1814 = vmatpush1.msra.mxu0 0.0
        %1815 = vmatprep.subr.mxu0 0.0
        %1816 = vmatpush1.msra.mxu0 0.0
        %1817 = vmatprep.subr.mxu0 0.0
        %1818 = vmatpush1.msra.mxu0 0.0
        %1819 = vmatprep.subr.mxu0 0.0
        %1820 = vmatpush1.msra.mxu0 0.0
        %1821 = vmatprep.subr.mxu0 0.0
        %1822 = vmatpush1.msra.mxu0 0.0
        %1823 = vmatprep.subr.mxu0 0.0
        %1824 = vmatpush1.msra.mxu0 0.0
        %1825 = vmatprep.subr.mxu0 0.0
        %1826 = vmatpush1.msra.mxu0 0.0
        %1827 = vmatprep.subr.mxu0 0.0
        %1828 = vmatpush1.msra.mxu0 0.0
        %1829 = vmatprep.subr.mxu0 0.0
        %1830 = vmatpush1.msra.mxu0 0.0
        %1831 = vmatprep.subr.mxu0 0.0
        %1832 = vmatpush1.msra.mxu0 0.0
        %1833 = vmatprep.subr.mxu0 0.0
        %1834 = vmatpush1.msra.mxu0 0.0
        %1835 = vmatprep.subr.mxu0 0.0
        %1836 = vmatpush1.msra.mxu0 0.0
        %1837 = vmatprep.subr.mxu0 0.0
        %1838 = vmatpush1.msra.mxu0 0.0
        %1839 = vmatprep.mubr.f32.mxu0 0.0
        %1840 = vmatmul.mubr.f32.gmra.mrb[0].mxu0 %v1767
        %v1841 = vpop.f32.mrb[0].mxu0
        %v1842 = vadd.f32 0.0, %v1841
        %v1843 = vpop.f32.mrb[0].mxu0
        %1844 = vmatprep.mubr.f32.mxu0 0.0
        %1845 = vmatmul.mubr.f32.gmra.mrb[0].mxu0 %v1770
        %v1846 = vpop.f32.mrb[0].mxu0
        %v1847 = vadd.f32 0.0, %v1846
        %v1848 = vpop.f32.mrb[0].mxu0
        %1849 = vmatprep.mubr.f32.mxu0 0.0
        %1850 = vmatmul.mubr.f32.gmra.mrb[0].mxu0 %v1773
        %v1851 = vpop.f32.mrb[0].mxu0
        %v1852 = vadd.f32 0.0, %v1851
        %v1853 = vpop.f32.mrb[0].mxu0
        %1854 = vdwg.mxu0
        %1858 = vrot.lane.b32.xlu0 %v1842, 32
        %v1859 = vpop.permute.xlu0 %1858
        %1860 = vrot.lane.b32.xlu0 %v1847, 32
        %v1861 = vpop.permute.xlu0 %1860
        %1862 = vrot.lane.b32.xlu0 %v1852, 32
        %v1863 = vpop.permute.xlu0 %1862
        %vm1867 = vcmask 523520
        %1868 = vst.msk [vmem:[#allocation3] sm:$0xff] %vm1867, %v1859
        %1869 = vst.msk [vmem:[#allocation3 + $0x18] sm:$0xff] %vm1867, %v1861
        %1870 = vst.msk [vmem:[#allocation3 + $0x30] sm:$0xff] %vm1867, %v1863
        %v1871 = vld [vmem:[#allocation3] sm:$0xff]
        %v1872 = vld [vmem:[#allocation3 + $0x18] sm:$0xff]
        %v1873 = vld [vmem:[#allocation3 + $0x30] sm:$0xff]
        %v1874 = vld [vmem:[#allocation3 + $0x8] sm:$0xff]
        %v1875 = vld [vmem:[#allocation3 + $0x20] sm:$0xff]
        %v1876 = vld [vmem:[#allocation3 + $0x38] sm:$0xff]
        %v1877 = vld [vmem:[#allocation3 + $0x10] sm:$0xff]
        %v1878 = vld [vmem:[#allocation3 + $0x28] sm:$0xff]
        %v1879 = vld [vmem:[#allocation3 + $0x40] sm:$0xff]
        %1883 = vrot.lane.b32.xlu0 %v1871, 64
        %v1884 = vpop.permute.xlu0 %1883
        %1885 = vrot.lane.b32.xlu0 %v1872, 64
        %v1886 = vpop.permute.xlu0 %1885
        %1887 = vrot.lane.b32.xlu0 %v1873, 64
        %v1888 = vpop.permute.xlu0 %1887
        %1892 = vrot.lane.b32.xlu0 %v1874, 64
        %v1893 = vpop.permute.xlu0 %1892
        %1894 = vrot.lane.b32.xlu0 %v1875, 64
        %v1895 = vpop.permute.xlu0 %1894
        %1896 = vrot.lane.b32.xlu0 %v1876, 64
        %v1897 = vpop.permute.xlu0 %1896
        %v1898 = vsel %vm1365, %v1884, 0
        %v1900 = vsel %vm1365, %v1886, 0
        %v1902 = vsel %vm1365, %v1888, 0
        %v1904 = vsel %vm1365, %v1893, 0
        %v1906 = vsel %vm1365, %v1895, 0
        %v1908 = vsel %vm1365, %v1897, 0
        %1910 = vmatprep.subr.mxu0 0.0
        %1911 = vmatpush1.xpose.msra.mxu0 %v1904
        %1912 = vmatprep.subr.mxu0 0.0
        %1913 = vmatpush1.xpose.msra.mxu0 %v1906
        %1914 = vmatprep.subr.mxu0 0.0
        %1915 = vmatpush1.xpose.msra.mxu0 %v1908
        %1916 = vmatprep.subr.mxu0 0.0
        %1917 = vmatpush1.xpose.msra.mxu0 0.0
        %1918 = vmatprep.subr.mxu0 0.0
        %1919 = vmatpush1.xpose.msra.mxu0 0.0
        %1920 = vmatprep.subr.mxu0 0.0
        %1921 = vmatpush1.xpose.msra.mxu0 0.0
        %1922 = vmatprep.subr.mxu0 0.0
        %1923 = vmatpush1.xpose.msra.mxu0 0.0
        %1924 = vmatprep.subr.mxu0 0.0
        %1925 = vmatpush1.xpose.msra.mxu0 0.0
        %1926 = vmatprep.subr.mxu0 0.0
        %1927 = vmatpush1.xpose.msra.mxu0 0.0
        %1928 = vmatprep.subr.mxu0 0.0
        %1929 = vmatpush1.xpose.msra.mxu0 0.0
        %1930 = vmatprep.subr.mxu0 0.0
        %1931 = vmatpush1.xpose.msra.mxu0 0.0
        %1932 = vmatprep.subr.mxu0 0.0
        %1933 = vmatpush1.xpose.msra.mxu0 0.0
        %1934 = vmatprep.subr.mxu0 0.0
        %1935 = vmatpush1.xpose.msra.mxu0 0.0
        %1936 = vmatprep.subr.mxu0 0.0
        %1937 = vmatpush1.xpose.msra.mxu0 0.0
        %1938 = vmatprep.subr.mxu0 0.0
        %1939 = vmatpush1.xpose.msra.mxu0 0.0
        %1940 = vmatprep.subr.mxu0 0.0
        %1941 = vmatpush1.xpose.msra.mxu0 0.0
        %1942 = vmatprep.subr.mxu0 0.0
        %1943 = vmatpush1.xpose.msra.mxu0 0.0
        %1944 = vmatprep.subr.mxu0 0.0
        %1945 = vmatpush1.xpose.msra.mxu0 0.0
        %1946 = vmatprep.subr.mxu0 0.0
        %1947 = vmatpush1.xpose.msra.mxu0 0.0
        %1948 = vmatprep.subr.mxu0 0.0
        %1949 = vmatpush1.xpose.msra.mxu0 0.0
        %1950 = vmatprep.subr.mxu0 0.0
        %1951 = vmatpush1.xpose.msra.mxu0 0.0
        %1952 = vmatprep.subr.mxu0 0.0
        %1953 = vmatpush1.xpose.msra.mxu0 0.0
        %1954 = vmatprep.subr.mxu0 0.0
        %1955 = vmatpush1.xpose.msra.mxu0 0.0
        %1956 = vmatprep.subr.mxu0 0.0
        %1957 = vmatpush1.xpose.msra.mxu0 0.0
        %1958 = vmatprep.subr.mxu0 0.0
        %1959 = vmatpush1.xpose.msra.mxu0 0.0
        %1960 = vmatprep.subr.mxu0 0.0
        %1961 = vmatpush1.xpose.msra.mxu0 0.0
        %1962 = vmatprep.subr.mxu0 0.0
        %1963 = vmatpush1.xpose.msra.mxu0 0.0
        %1964 = vmatprep.subr.mxu0 0.0
        %1965 = vmatpush1.xpose.msra.mxu0 0.0
        %1966 = vmatprep.subr.mxu0 0.0
        %1967 = vmatpush1.xpose.msra.mxu0 0.0
        %1968 = vmatprep.subr.mxu0 0.0
        %1969 = vmatpush1.xpose.msra.mxu0 0.0
        %1970 = vmatprep.subr.mxu0 0.0
        %1971 = vmatpush1.xpose.msra.mxu0 0.0
        %1972 = vmatprep.subr.mxu0 0.0
        %1973 = vmatpush1.xpose.msra.mxu0 0.0
        %1974 = vmatprep.mubr.f32.mxu0 0.0
        %1975 = vmatmul.mubr.f32.gmra.mrb[0].mxu0 %v1898
        %v1976 = vpop.f32.mrb[0].mxu0
        %v1977 = vadd.f32 0.0, %v1976
        %v1978 = vpop.f32.mrb[0].mxu0
        %1979 = vmatprep.mubr.f32.mxu0 0.0
        %1980 = vmatmul.mubr.f32.gmra.mrb[0].mxu0 %v1900
        %v1981 = vpop.f32.mrb[0].mxu0
        %v1982 = vadd.f32 0.0, %v1981
        %v1983 = vpop.f32.mrb[0].mxu0
        %1984 = vmatprep.mubr.f32.mxu0 0.0
        %1985 = vmatmul.mubr.f32.gmra.mrb[0].mxu0 %v1902
        %v1986 = vpop.f32.mrb[0].mxu0
        %v1987 = vadd.f32 0.0, %v1986
        %v1988 = vpop.f32.mrb[0].mxu0
        %1989 = vdwg.mxu0
        %v1990 = vmul.f32 %v1977, 0.17677669
        %v1991 = vmul.f32 %v1982, 0.17677669
        %v1992 = vmul.f32 %v1987, 0.17677669
        %v1993 = vadd.f32 %v1990, %v1355
        %v1994 = vadd.f32 %v1991, %v1355
        %v1995 = vadd.f32 %v1992, %v1355
        %v1996 = vsel %vm1470, %v1993, -inf
        %1997 = vmax.xlane.f32.xlu0 %v1996
        %v1998 = vpop.xlane.xlu0 %1997
        %v1999 = vsel %vm1470, %v1994, -inf
        %2000 = vmax.xlane.f32.xlu0 %v1999
        %v2001 = vpop.xlane.xlu0 %2000
        %v2002 = vsel %vm1470, %v1995, -inf
        %2003 = vmax.xlane.f32.xlu0 %v2002
        %v2004 = vpop.xlane.xlu0 %2003
        %v2005 = vsub.f32 %v1993, %v1998
        %v2006 = vsub.f32 %v1994, %v2001
        %v2007 = vsub.f32 %v1995, %v2004
        %v2008 = vmul.f32 %v2005, 1.442695
        %v2009 = vpow.pop %v2008
        %v2010 = vmul.f32 %v2006, 1.442695
        %v2011 = vpow.pop %v2010
        %v2012 = vmul.f32 %v2007, 1.442695
        %v2013 = vpow.pop %v2012
        %v2014 = vsel %vm1470, %v2009, 0.0
        %2015 = vadd.xlane.f32.xlu0 %v2014
        %v2016 = vpop.xlane.xlu0 %2015
        %v2017 = vsel %vm1470, %v2011, 0.0
        %2018 = vadd.xlane.f32.xlu0 %v2017
        %v2019 = vpop.xlane.xlu0 %2018
        %v2020 = vsel %vm1470, %v2013, 0.0
        %2021 = vadd.xlane.f32.xlu0 %v2020
        %v2022 = vpop.xlane.xlu0 %2021
        %v2023 = vrcp.pop %v2016
        %v2024 = vmul.f32 %v2009, %v2023
        %v2025 = vrcp.pop %v2019
        %v2026 = vmul.f32 %v2011, %v2025
        %v2027 = vrcp.pop %v2022
        %v2028 = vmul.f32 %v2013, %v2027
        %2032 = vrot.lane.b32.xlu0 %v1877, 64
        %v2033 = vpop.permute.xlu0 %2032
        %2034 = vrot.lane.b32.xlu0 %v1878, 64
        %v2035 = vpop.permute.xlu0 %2034
        %2036 = vrot.lane.b32.xlu0 %v1879, 64
        %v2037 = vpop.permute.xlu0 %2036
        %v2042 = vsel %vm1470, %v2024, 0
        %v2045 = vsel %vm1470, %v2026, 0
        %v2048 = vsel %vm1470, %v2028, 0
        %2050 = vmatprep.subr.mxu0 0.0
        %2051 = vmatpush1.msra.mxu0 %v2033
        %2052 = vmatprep.subr.mxu0 0.0
        %2053 = vmatpush1.msra.mxu0 %v2035
        %2054 = vmatprep.subr.mxu0 0.0
        %2055 = vmatpush1.msra.mxu0 %v2037
        %2056 = vmatprep.subr.mxu0 0.0
        %2057 = vmatpush1.msra.mxu0 0.0
        %2058 = vmatprep.subr.mxu0 0.0
        %2059 = vmatpush1.msra.mxu0 0.0
        %2060 = vmatprep.subr.mxu0 0.0
        %2061 = vmatpush1.msra.mxu0 0.0
        %2062 = vmatprep.subr.mxu0 0.0
        %2063 = vmatpush1.msra.mxu0 0.0
        %2064 = vmatprep.subr.mxu0 0.0
        %2065 = vmatpush1.msra.mxu0 0.0
        %2066 = vmatprep.subr.mxu0 0.0
        %2067 = vmatpush1.msra.mxu0 0.0
        %2068 = vmatprep.subr.mxu0 0.0
        %2069 = vmatpush1.msra.mxu0 0.0
        %2070 = vmatprep.subr.mxu0 0.0
        %2071 = vmatpush1.msra.mxu0 0.0
        %2072 = vmatprep.subr.mxu0 0.0
        %2073 = vmatpush1.msra.mxu0 0.0
        %2074 = vmatprep.subr.mxu0 0.0
        %2075 = vmatpush1.msra.mxu0 0.0
        %2076 = vmatprep.subr.mxu0 0.0
        %2077 = vmatpush1.msra.mxu0 0.0
        %2078 = vmatprep.subr.mxu0 0.0
        %2079 = vmatpush1.msra.mxu0 0.0
        %2080 = vmatprep.subr.mxu0 0.0
        %2081 = vmatpush1.msra.mxu0 0.0
        %2082 = vmatprep.subr.mxu0 0.0
        %2083 = vmatpush1.msra.mxu0 0.0
        %2084 = vmatprep.subr.mxu0 0.0
        %2085 = vmatpush1.msra.mxu0 0.0
        %2086 = vmatprep.subr.mxu0 0.0
        %2087 = vmatpush1.msra.mxu0 0.0
        %2088 = vmatprep.subr.mxu0 0.0
        %2089 = vmatpush1.msra.mxu0 0.0
        %2090 = vmatprep.subr.mxu0 0.0
        %2091 = vmatpush1.msra.mxu0 0.0
        %2092 = vmatprep.subr.mxu0 0.0
        %2093 = vmatpush1.msra.mxu0 0.0
        %2094 = vmatprep.subr.mxu0 0.0
        %2095 = vmatpush1.msra.mxu0 0.0
        %2096 = vmatprep.subr.mxu0 0.0
        %2097 = vmatpush1.msra.mxu0 0.0
        %2098 = vmatprep.subr.mxu0 0.0
        %2099 = vmatpush1.msra.mxu0 0.0
        %2100 = vmatprep.subr.mxu0 0.0
        %2101 = vmatpush1.msra.mxu0 0.0
        %2102 = vmatprep.subr.mxu0 0.0
        %2103 = vmatpush1.msra.mxu0 0.0
        %2104 = vmatprep.subr.mxu0 0.0
        %2105 = vmatpush1.msra.mxu0 0.0
        %2106 = vmatprep.subr.mxu0 0.0
        %2107 = vmatpush1.msra.mxu0 0.0
        %2108 = vmatprep.subr.mxu0 0.0
        %2109 = vmatpush1.msra.mxu0 0.0
        %2110 = vmatprep.subr.mxu0 0.0
        %2111 = vmatpush1.msra.mxu0 0.0
        %2112 = vmatprep.subr.mxu0 0.0
        %2113 = vmatpush1.msra.mxu0 0.0
        %2114 = vmatprep.mubr.f32.mxu0 0.0
        %2115 = vmatmul.mubr.f32.gmra.mrb[0].mxu0 %v2042
        %v2116 = vpop.f32.mrb[0].mxu0
        %v2117 = vadd.f32 0.0, %v2116
        %v2118 = vpop.f32.mrb[0].mxu0
        %2119 = vmatprep.mubr.f32.mxu0 0.0
        %2120 = vmatmul.mubr.f32.gmra.mrb[0].mxu0 %v2045
        %v2121 = vpop.f32.mrb[0].mxu0
        %v2122 = vadd.f32 0.0, %v2121
        %v2123 = vpop.f32.mrb[0].mxu0
        %2124 = vmatprep.mubr.f32.mxu0 0.0
        %2125 = vmatmul.mubr.f32.gmra.mrb[0].mxu0 %v2048
        %v2126 = vpop.f32.mrb[0].mxu0
        %v2127 = vadd.f32 0.0, %v2126
        %v2128 = vpop.f32.mrb[0].mxu0
        %2129 = vdwg.mxu0
        %2133 = vrot.lane.b32.xlu0 %v2117, 64
        %v2134 = vpop.permute.xlu0 %2133
        %2135 = vrot.lane.b32.xlu0 %v2122, 64
        %v2136 = vpop.permute.xlu0 %2135
        %2137 = vrot.lane.b32.xlu0 %v2127, 64
        %v2138 = vpop.permute.xlu0 %2137
        %vm2142 = vcmask 785920
        %2143 = vst.msk [vmem:[#allocation3] sm:$0xff] %vm2142, %v2134
        %2144 = vst.msk [vmem:[#allocation3 + $0x18] sm:$0xff] %vm2142, %v2136
        %2145 = vst.msk [vmem:[#allocation3 + $0x30] sm:$0xff] %vm2142, %v2138
        %v2146 = vld [vmem:[#allocation3] sm:$0xff]
        %v2147 = vld [vmem:[#allocation3 + $0x18] sm:$0xff]
        %v2148 = vld [vmem:[#allocation3 + $0x30] sm:$0xff]
        %v2149 = vld [vmem:[#allocation3 + $0x8] sm:$0xff]
        %v2150 = vld [vmem:[#allocation3 + $0x20] sm:$0xff]
        %v2151 = vld [vmem:[#allocation3 + $0x38] sm:$0xff]
        %v2152 = vld [vmem:[#allocation3 + $0x10] sm:$0xff]
        %v2153 = vld [vmem:[#allocation3 + $0x28] sm:$0xff]
        %v2154 = vld [vmem:[#allocation3 + $0x40] sm:$0xff]
        %2158 = vrot.lane.b32.xlu0 %v2146, 32
        %v2159 = vpop.permute.xlu0 %2158
        %2160 = vrot.lane.b32.xlu0 %v2147, 32
        %v2161 = vpop.permute.xlu0 %2160
        %2162 = vrot.lane.b32.xlu0 %v2148, 32
        %v2163 = vpop.permute.xlu0 %2162
        %2167 = vrot.lane.b32.xlu0 %v2149, 32
        %v2168 = vpop.permute.xlu0 %2167
        %2169 = vrot.lane.b32.xlu0 %v2150, 32
        %v2170 = vpop.permute.xlu0 %2169
        %2171 = vrot.lane.b32.xlu0 %v2151, 32
        %v2172 = vpop.permute.xlu0 %2171
        %v2173 = vsel %vm1365, %v2159, 0
        %v2175 = vsel %vm1365, %v2161, 0
        %v2177 = vsel %vm1365, %v2163, 0
        %v2179 = vsel %vm1365, %v2168, 0
        %v2181 = vsel %vm1365, %v2170, 0
        %v2183 = vsel %vm1365, %v2172, 0
        %2185 = vmatprep.subr.mxu0 0.0
        %2186 = vmatpush1.xpose.msra.mxu0 %v2179
        %2187 = vmatprep.subr.mxu0 0.0
        %2188 = vmatpush1.xpose.msra.mxu0 %v2181
        %2189 = vmatprep.subr.mxu0 0.0
        %2190 = vmatpush1.xpose.msra.mxu0 %v2183
        %2191 = vmatprep.subr.mxu0 0.0
        %2192 = vmatpush1.xpose.msra.mxu0 0.0
        %2193 = vmatprep.subr.mxu0 0.0
        %2194 = vmatpush1.xpose.msra.mxu0 0.0
        %2195 = vmatprep.subr.mxu0 0.0
        %2196 = vmatpush1.xpose.msra.mxu0 0.0
        %2197 = vmatprep.subr.mxu0 0.0
        %2198 = vmatpush1.xpose.msra.mxu0 0.0
        %2199 = vmatprep.subr.mxu0 0.0
        %2200 = vmatpush1.xpose.msra.mxu0 0.0
        %2201 = vmatprep.subr.mxu0 0.0
        %2202 = vmatpush1.xpose.msra.mxu0 0.0
        %2203 = vmatprep.subr.mxu0 0.0
        %2204 = vmatpush1.xpose.msra.mxu0 0.0
        %2205 = vmatprep.subr.mxu0 0.0
        %2206 = vmatpush1.xpose.msra.mxu0 0.0
        %2207 = vmatprep.subr.mxu0 0.0
        %2208 = vmatpush1.xpose.msra.mxu0 0.0
        %2209 = vmatprep.subr.mxu0 0.0
        %2210 = vmatpush1.xpose.msra.mxu0 0.0
        %2211 = vmatprep.subr.mxu0 0.0
        %2212 = vmatpush1.xpose.msra.mxu0 0.0
        %2213 = vmatprep.subr.mxu0 0.0
        %2214 = vmatpush1.xpose.msra.mxu0 0.0
        %2215 = vmatprep.subr.mxu0 0.0
        %2216 = vmatpush1.xpose.msra.mxu0 0.0
        %2217 = vmatprep.subr.mxu0 0.0
        %2218 = vmatpush1.xpose.msra.mxu0 0.0
        %2219 = vmatprep.subr.mxu0 0.0
        %2220 = vmatpush1.xpose.msra.mxu0 0.0
        %2221 = vmatprep.subr.mxu0 0.0
        %2222 = vmatpush1.xpose.msra.mxu0 0.0
        %2223 = vmatprep.subr.mxu0 0.0
        %2224 = vmatpush1.xpose.msra.mxu0 0.0
        %2225 = vmatprep.subr.mxu0 0.0
        %2226 = vmatpush1.xpose.msra.mxu0 0.0
        %2227 = vmatprep.subr.mxu0 0.0
        %2228 = vmatpush1.xpose.msra.mxu0 0.0
        %2229 = vmatprep.subr.mxu0 0.0
        %2230 = vmatpush1.xpose.msra.mxu0 0.0
        %2231 = vmatprep.subr.mxu0 0.0
        %2232 = vmatpush1.xpose.msra.mxu0 0.0
        %2233 = vmatprep.subr.mxu0 0.0
        %2234 = vmatpush1.xpose.msra.mxu0 0.0
        %2235 = vmatprep.subr.mxu0 0.0
        %2236 = vmatpush1.xpose.msra.mxu0 0.0
        %2237 = vmatprep.subr.mxu0 0.0
        %2238 = vmatpush1.xpose.msra.mxu0 0.0
        %2239 = vmatprep.subr.mxu0 0.0
        %2240 = vmatpush1.xpose.msra.mxu0 0.0
        %2241 = vmatprep.subr.mxu0 0.0
        %2242 = vmatpush1.xpose.msra.mxu0 0.0
        %2243 = vmatprep.subr.mxu0 0.0
        %2244 = vmatpush1.xpose.msra.mxu0 0.0
        %2245 = vmatprep.subr.mxu0 0.0
        %2246 = vmatpush1.xpose.msra.mxu0 0.0
        %2247 = vmatprep.subr.mxu0 0.0
        %2248 = vmatpush1.xpose.msra.mxu0 0.0
        %2249 = vmatprep.mubr.f32.mxu0 0.0
        %2250 = vmatmul.mubr.f32.gmra.mrb[0].mxu0 %v2173
        %v2251 = vpop.f32.mrb[0].mxu0
        %v2252 = vadd.f32 0.0, %v2251
        %v2253 = vpop.f32.mrb[0].mxu0
        %2254 = vmatprep.mubr.f32.mxu0 0.0
        %2255 = vmatmul.mubr.f32.gmra.mrb[0].mxu0 %v2175
        %v2256 = vpop.f32.mrb[0].mxu0
        %v2257 = vadd.f32 0.0, %v2256
        %v2258 = vpop.f32.mrb[0].mxu0
        %2259 = vmatprep.mubr.f32.mxu0 0.0
        %2260 = vmatmul.mubr.f32.gmra.mrb[0].mxu0 %v2177
        %v2261 = vpop.f32.mrb[0].mxu0
        %v2262 = vadd.f32 0.0, %v2261
        %v2263 = vpop.f32.mrb[0].mxu0
        %2264 = vdwg.mxu0
        %v2265 = vmul.f32 %v2252, 0.17677669
        %v2266 = vmul.f32 %v2257, 0.17677669
        %v2267 = vmul.f32 %v2262, 0.17677669
        %v2268 = vadd.f32 %v2265, %v1355
        %v2269 = vadd.f32 %v2266, %v1355
        %v2270 = vadd.f32 %v2267, %v1355
        %v2271 = vsel %vm1470, %v2268, -inf
        %2272 = vmax.xlane.f32.xlu0 %v2271
        %v2273 = vpop.xlane.xlu0 %2272
        %v2274 = vsel %vm1470, %v2269, -inf
        %2275 = vmax.xlane.f32.xlu0 %v2274
        %v2276 = vpop.xlane.xlu0 %2275
        %v2277 = vsel %vm1470, %v2270, -inf
        %2278 = vmax.xlane.f32.xlu0 %v2277
        %v2279 = vpop.xlane.xlu0 %2278
        %v2280 = vsub.f32 %v2268, %v2273
        %v2281 = vsub.f32 %v2269, %v2276
        %v2282 = vsub.f32 %v2270, %v2279
        %v2283 = vmul.f32 %v2280, 1.442695
        %v2284 = vpow.pop %v2283
        %v2285 = vmul.f32 %v2281, 1.442695
        %v2286 = vpow.pop %v2285
        %v2287 = vmul.f32 %v2282, 1.442695
        %v2288 = vpow.pop %v2287
        %v2289 = vsel %vm1470, %v2284, 0.0
        %2290 = vadd.xlane.f32.xlu0 %v2289
        %v2291 = vpop.xlane.xlu0 %2290
        %v2292 = vsel %vm1470, %v2286, 0.0
        %2293 = vadd.xlane.f32.xlu0 %v2292
        %v2294 = vpop.xlane.xlu0 %2293
        %v2295 = vsel %vm1470, %v2288, 0.0
        %2296 = vadd.xlane.f32.xlu0 %v2295
        %v2297 = vpop.xlane.xlu0 %2296
        %v2298 = vrcp.pop %v2291
        %v2299 = vmul.f32 %v2284, %v2298
        %v2300 = vrcp.pop %v2294
        %v2301 = vmul.f32 %v2286, %v2300
        %v2302 = vrcp.pop %v2297
        %v2303 = vmul.f32 %v2288, %v2302
        %2307 = vrot.lane.b32.xlu0 %v2152, 32
        %v2308 = vpop.permute.xlu0 %2307
        %2309 = vrot.lane.b32.xlu0 %v2153, 32
        %v2310 = vpop.permute.xlu0 %2309
        %2311 = vrot.lane.b32.xlu0 %v2154, 32
        %v2312 = vpop.permute.xlu0 %2311
        %v2317 = vsel %vm1470, %v2299, 0
        %v2320 = vsel %vm1470, %v2301, 0
        %v2323 = vsel %vm1470, %v2303, 0
        %2325 = vmatprep.subr.mxu0 0.0
        %2326 = vmatpush1.msra.mxu0 %v2308
        %2327 = vmatprep.subr.mxu0 0.0
        %2328 = vmatpush1.msra.mxu0 %v2310
        %2329 = vmatprep.subr.mxu0 0.0
        %2330 = vmatpush1.msra.mxu0 %v2312
        %2331 = vmatprep.subr.mxu0 0.0
        %2332 = vmatpush1.msra.mxu0 0.0
        %2333 = vmatprep.subr.mxu0 0.0
        %2334 = vmatpush1.msra.mxu0 0.0
        %2335 = vmatprep.subr.mxu0 0.0
        %2336 = vmatpush1.msra.mxu0 0.0
        %2337 = vmatprep.subr.mxu0 0.0
        %2338 = vmatpush1.msra.mxu0 0.0
        %2339 = vmatprep.subr.mxu0 0.0
        %2340 = vmatpush1.msra.mxu0 0.0
        %2341 = vmatprep.subr.mxu0 0.0
        %2342 = vmatpush1.msra.mxu0 0.0
        %2343 = vmatprep.subr.mxu0 0.0
        %2344 = vmatpush1.msra.mxu0 0.0
        %2345 = vmatprep.subr.mxu0 0.0
        %2346 = vmatpush1.msra.mxu0 0.0
        %2347 = vmatprep.subr.mxu0 0.0
        %2348 = vmatpush1.msra.mxu0 0.0
        %2349 = vmatprep.subr.mxu0 0.0
        %2350 = vmatpush1.msra.mxu0 0.0
        %2351 = vmatprep.subr.mxu0 0.0
        %2352 = vmatpush1.msra.mxu0 0.0
        %2353 = vmatprep.subr.mxu0 0.0
        %2354 = vmatpush1.msra.mxu0 0.0
        %2355 = vmatprep.subr.mxu0 0.0
        %2356 = vmatpush1.msra.mxu0 0.0
        %2357 = vmatprep.subr.mxu0 0.0
        %2358 = vmatpush1.msra.mxu0 0.0
        %2359 = vmatprep.subr.mxu0 0.0
        %2360 = vmatpush1.msra.mxu0 0.0
        %2361 = vmatprep.subr.mxu0 0.0
        %2362 = vmatpush1.msra.mxu0 0.0
        %2363 = vmatprep.subr.mxu0 0.0
        %2364 = vmatpush1.msra.mxu0 0.0
        %2365 = vmatprep.subr.mxu0 0.0
        %2366 = vmatpush1.msra.mxu0 0.0
        %2367 = vmatprep.subr.mxu0 0.0
        %2368 = vmatpush1.msra.mxu0 0.0
        %2369 = vmatprep.subr.mxu0 0.0
        %2370 = vmatpush1.msra.mxu0 0.0
        %2371 = vmatprep.subr.mxu0 0.0
        %2372 = vmatpush1.msra.mxu0 0.0
        %2373 = vmatprep.subr.mxu0 0.0
        %2374 = vmatpush1.msra.mxu0 0.0
        %2375 = vmatprep.subr.mxu0 0.0
        %2376 = vmatpush1.msra.mxu0 0.0
        %2377 = vmatprep.subr.mxu0 0.0
        %2378 = vmatpush1.msra.mxu0 0.0
        %2379 = vmatprep.subr.mxu0 0.0
        %2380 = vmatpush1.msra.mxu0 0.0
        %2381 = vmatprep.subr.mxu0 0.0
        %2382 = vmatpush1.msra.mxu0 0.0
        %2383 = vmatprep.subr.mxu0 0.0
        %2384 = vmatpush1.msra.mxu0 0.0
        %2385 = vmatprep.subr.mxu0 0.0
        %2386 = vmatpush1.msra.mxu0 0.0
        %2387 = vmatprep.subr.mxu0 0.0
        %2388 = vmatpush1.msra.mxu0 0.0
        %2389 = vmatprep.mubr.f32.mxu0 0.0
        %2390 = vmatmul.mubr.f32.gmra.mrb[0].mxu0 %v2317
        %v2391 = vpop.f32.mrb[0].mxu0
        %v2392 = vadd.f32 0.0, %v2391
        %v2393 = vpop.f32.mrb[0].mxu0
        %2394 = vmatprep.mubr.f32.mxu0 0.0
        %2395 = vmatmul.mubr.f32.gmra.mrb[0].mxu0 %v2320
        %v2396 = vpop.f32.mrb[0].mxu0
        %v2397 = vadd.f32 0.0, %v2396
        %v2398 = vpop.f32.mrb[0].mxu0
        %2399 = vmatprep.mubr.f32.mxu0 0.0
        %2400 = vmatmul.mubr.f32.gmra.mrb[0].mxu0 %v2323
        %v2401 = vpop.f32.mrb[0].mxu0
        %v2402 = vadd.f32 0.0, %v2401
        %v2403 = vpop.f32.mrb[0].mxu0
        %2404 = vdwg.mxu0
        %2408 = vrot.lane.b32.xlu0 %v2392, 96
        %v2409 = vpop.permute.xlu0 %2408
        %2410 = vrot.lane.b32.xlu0 %v2397, 96
        %v2411 = vpop.permute.xlu0 %2410
        %2412 = vrot.lane.b32.xlu0 %v2402, 96
        %v2413 = vpop.permute.xlu0 %2412
        %vm2417 = vcmask 1048320
        %2418 = vst.msk [vmem:[#allocation3] sm:$0xff] %vm2417, %v2409
        %2419 = vst.msk [vmem:[#allocation3 + $0x18] sm:$0xff] %vm2417, %v2411
        %2420 = vst.msk [vmem:[#allocation3 + $0x30] sm:$0xff] %vm2417, %v2413
        %v2421 = vld [vmem:[#allocation3] sm:$0xff]
        %v2422 = vld [vmem:[#allocation3 + $0x18] sm:$0xff]
        %v2423 = vld [vmem:[#allocation3 + $0x30] sm:$0xff]
        %v2424 = vld [vmem:[%s797] sm:$0xff]
        %v2425 = vld [vmem:[%s797 + $0x8] sm:$0xff]
        %v2426 = vld [vmem:[%s797 + $0x10] sm:$0xff]
        %v2427 = vld [vmem:[%s797 + $0x18] sm:$0xff]
        %v2428 = vld [vmem:[%s797 + $0x20] sm:$0xff]
        %v2429 = vld [vmem:[%s797 + $0x28] sm:$0xff]
        %v2430 = vld [vmem:[%s797 + $0x30] sm:$0xff]
        %v2431 = vld [vmem:[%s797 + $0x38] sm:$0xff]
        %v2432 = vld [vmem:[%s797 + $0x40] sm:$0xff]
        %v2433 = vld [vmem:[%s797 + $0x48] sm:$0xff]
        %v2434 = vld [vmem:[%s797 + $0x50] sm:$0xff]
        %v2435 = vld [vmem:[%s797 + $0x58] sm:$0xff]
        %v2436 = vld [vmem:[%s797 + $0x60] sm:$0xff]
        %v2437 = vld [vmem:[%s797 + $0x68] sm:$0xff]
        %v2438 = vld [vmem:[%s797 + $0x70] sm:$0xff]
        %v2439 = vld [vmem:[%s797 + $0x78] sm:$0xff]
        %2440 = vmatprep.subr.mxu0 0.0
        %2441 = vmatpush1.msra.mxu0 %v2424
        %2442 = vmatprep.subr.mxu0 0.0
        %2443 = vmatpush1.msra.mxu0 %v2425
        %2444 = vmatprep.subr.mxu0 0.0
        %2445 = vmatpush1.msra.mxu0 %v2426
        %2446 = vmatprep.subr.mxu0 0.0
        %2447 = vmatpush1.msra.mxu0 %v2427
        %2448 = vmatprep.subr.mxu0 0.0
        %2449 = vmatpush1.msra.mxu0 %v2428
        %2450 = vmatprep.subr.mxu0 0.0
        %2451 = vmatpush1.msra.mxu0 %v2429
        %2452 = vmatprep.subr.mxu0 0.0
        %2453 = vmatpush1.msra.mxu0 %v2430
        %2454 = vmatprep.subr.mxu0 0.0
        %2455 = vmatpush1.msra.mxu0 %v2431
        %2456 = vmatprep.subr.mxu0 0.0
        %2457 = vmatpush1.msra.mxu0 %v2432
        %2458 = vmatprep.subr.mxu0 0.0
        %2459 = vmatpush1.msra.mxu0 %v2433
        %2460 = vmatprep.subr.mxu0 0.0
        %2461 = vmatpush1.msra.mxu0 %v2434
        %2462 = vmatprep.subr.mxu0 0.0
        %2463 = vmatpush1.msra.mxu0 %v2435
        %2464 = vmatprep.subr.mxu0 0.0
        %2465 = vmatpush1.msra.mxu0 %v2436
        %2466 = vmatprep.subr.mxu0 0.0
        %2467 = vmatpush1.msra.mxu0 %v2437
        %2468 = vmatprep.subr.mxu0 0.0
        %2469 = vmatpush1.msra.mxu0 %v2438
        %2470 = vmatprep.subr.mxu0 0.0
        %2471 = vmatpush1.msra.mxu0 %v2439
        %2472 = vmatprep.subr.mxu0 0.0
        %2473 = vmatpush1.msra.mxu0 0.0
        %2474 = vmatprep.subr.mxu0 0.0
        %2475 = vmatpush1.msra.mxu0 0.0
        %2476 = vmatprep.subr.mxu0 0.0
        %2477 = vmatpush1.msra.mxu0 0.0
        %2478 = vmatprep.subr.mxu0 0.0
        %2479 = vmatpush1.msra.mxu0 0.0
        %2480 = vmatprep.subr.mxu0 0.0
        %2481 = vmatpush1.msra.mxu0 0.0
        %2482 = vmatprep.subr.mxu0 0.0
        %2483 = vmatpush1.msra.mxu0 0.0
        %2484 = vmatprep.subr.mxu0 0.0
        %2485 = vmatpush1.msra.mxu0 0.0
        %2486 = vmatprep.subr.mxu0 0.0
        %2487 = vmatpush1.msra.mxu0 0.0
        %2488 = vmatprep.subr.mxu0 0.0
        %2489 = vmatpush1.msra.mxu0 0.0
        %2490 = vmatprep.subr.mxu0 0.0
        %2491 = vmatpush1.msra.mxu0 0.0
        %2492 = vmatprep.subr.mxu0 0.0
        %2493 = vmatpush1.msra.mxu0 0.0
        %2494 = vmatprep.subr.mxu0 0.0
        %2495 = vmatpush1.msra.mxu0 0.0
        %2496 = vmatprep.subr.mxu0 0.0
        %2497 = vmatpush1.msra.mxu0 0.0
        %2498 = vmatprep.subr.mxu0 0.0
        %2499 = vmatpush1.msra.mxu0 0.0
        %2500 = vmatprep.subr.mxu0 0.0
        %2501 = vmatpush1.msra.mxu0 0.0
        %2502 = vmatprep.subr.mxu0 0.0
        %2503 = vmatpush1.msra.mxu0 0.0
        %2504 = vmatprep.mubr.f32.mxu0 0.0
        %2505 = vmatmul.mubr.f32.gmra.mrb[0].mxu0 %v2421
        %v2506 = vpop.f32.mrb[0].mxu0
        %v2507 = vadd.f32 0.0, %v2506
        %v2508 = vpop.f32.mrb[0].mxu0
        %2509 = vmatprep.mubr.f32.mxu0 0.0
        %2510 = vmatmul.mubr.f32.gmra.mrb[0].mxu0 %v2422
        %v2511 = vpop.f32.mrb[0].mxu0
        %v2512 = vadd.f32 0.0, %v2511
        %v2513 = vpop.f32.mrb[0].mxu0
        %2514 = vmatprep.mubr.f32.mxu0 0.0
        %2515 = vmatmul.mubr.f32.gmra.mrb[0].mxu0 %v2423
        %v2516 = vpop.f32.mrb[0].mxu0
        %v2517 = vadd.f32 0.0, %v2516
        %v2518 = vpop.f32.mrb[0].mxu0
        %2519 = vdwg.mxu0
        %v2520 = vadd.f32 %v1058, %v2507
        %v2521 = vadd.f32 %v1059, %v2512
        %v2522 = vadd.f32 %v1060, %v2517
        %v2523 = vld [vmem:[%s920] sm:$0x1]
        %v2525 = vlaneseq
        %v2526 = vshrl.u32 %v2525, 7
        %v2527 = vsub.s32 0, %v2526
        %v2528 = vrot.slane %v2523, %v2527
        %v2530 = vadd.f32 %v2520, %v2528
        %v2531 = vadd.f32 %v2521, %v2528
        %v2532 = vadd.f32 %v2522, %v2528
        %v2533 = vld [vmem:[%s923] sm:$0x1]
        %v2534 = vld [vmem:[%s926] sm:$0x1]
        %2535 = vadd.xlane.f32.xlu0 %v2530
        %v2536 = vpop.xlane.xlu0 %2535
        %2537 = vadd.xlane.f32.xlu0 %v2531
        %v2538 = vpop.xlane.xlu0 %2537
        %2539 = vadd.xlane.f32.xlu0 %v2532
        %v2540 = vpop.xlane.xlu0 %2539
        %v2541 = vmul.f32 %v2536, %v1069
        %v2542 = vmul.f32 %v2538, %v1069
        %v2543 = vmul.f32 %v2540, %v1069
        %v2544 = vsub.f32 %v2530, %v2541
        %v2545 = vsub.f32 %v2531, %v2542
        %v2546 = vsub.f32 %v2532, %v2543
        %v2547 = vmul.f32 %v2544, %v2544
        %v2548 = vmul.f32 %v2545, %v2545
        %v2549 = vmul.f32 %v2546, %v2546
        %2550 = vadd.xlane.f32.xlu0 %v2547
        %v2551 = vpop.xlane.xlu0 %2550
        %2552 = vadd.xlane.f32.xlu0 %v2548
        %v2553 = vpop.xlane.xlu0 %2552
        %2554 = vadd.xlane.f32.xlu0 %v2549
        %v2555 = vpop.xlane.xlu0 %2554
        %v2556 = vmul.f32 %v2551, %v1069
        %v2557 = vmul.f32 %v2553, %v1069
        %v2558 = vmul.f32 %v2555, %v1069
        %v2559 = vadd.f32 %v2556, 1e-05
        %v2560 = vadd.f32 %v2557, 1e-05
        %v2561 = vadd.f32 %v2558, 1e-05
        %v2562 = vrsqrt.pop %v2559
        %v2563 = vrsqrt.pop %v2560
        %v2564 = vrsqrt.pop %v2561
        %v2565 = vmul.f32 %v2544, %v2562
        %v2566 = vmul.f32 %v2545, %v2563
        %v2567 = vmul.f32 %v2546, %v2564
        %v2569 = vlaneseq
        %v2570 = vshrl.u32 %v2569, 7
        %v2571 = vsub.s32 0, %v2570
        %v2572 = vrot.slane %v2533, %v2571
        %v2574 = vmul.f32 %v2565, %v2572
        %v2575 = vmul.f32 %v2566, %v2572
        %v2576 = vmul.f32 %v2567, %v2572
        %v2578 = vlaneseq
        %v2579 = vshrl.u32 %v2578, 7
        %v2580 = vsub.s32 0, %v2579
        %v2581 = vrot.slane %v2534, %v2580
        %v2583 = vadd.f32 %v2574, %v2581
        %v2584 = vadd.f32 %v2575, %v2581
        %v2585 = vadd.f32 %v2576, %v2581
        %v2586 = vld [vmem:[%s931] sm:$0xff]
        %v2587 = vld [vmem:[%s931 + $0x8] sm:$0xff]
        %v2588 = vld [vmem:[%s931 + $0x10] sm:$0xff]
        %v2589 = vld [vmem:[%s931 + $0x18] sm:$0xff]
        %v2590 = vld [vmem:[%s931 + $0x20] sm:$0xff]
        %v2591 = vld [vmem:[%s931 + $0x28] sm:$0xff]
        %v2592 = vld [vmem:[%s931 + $0x30] sm:$0xff]
        %v2593 = vld [vmem:[%s931 + $0x38] sm:$0xff]
        %v2594 = vld [vmem:[%s931 + $0x40] sm:$0xff]
        %v2595 = vld [vmem:[%s931 + $0x48] sm:$0xff]
        %v2596 = vld [vmem:[%s931 + $0x50] sm:$0xff]
        %v2597 = vld [vmem:[%s931 + $0x58] sm:$0xff]
        %v2598 = vld [vmem:[%s931 + $0x60] sm:$0xff]
        %v2599 = vld [vmem:[%s931 + $0x68] sm:$0xff]
        %v2600 = vld [vmem:[%s931 + $0x70] sm:$0xff]
        %v2601 = vld [vmem:[%s931 + $0x78] sm:$0xff]
        %v2602 = vld [vmem:[%s931 + $0x80] sm:$0xff]
        %v2603 = vld [vmem:[%s931 + $0x88] sm:$0xff]
        %v2604 = vld [vmem:[%s931 + $0x90] sm:$0xff]
        %v2605 = vld [vmem:[%s931 + $0x98] sm:$0xff]
        %v2606 = vld [vmem:[%s931 + $0xa0] sm:$0xff]
        %v2607 = vld [vmem:[%s931 + $0xa8] sm:$0xff]
        %v2608 = vld [vmem:[%s931 + $0xb0] sm:$0xff]
        %v2609 = vld [vmem:[%s931 + $0xb8] sm:$0xff]
        %v2610 = vld [vmem:[%s931 + $0xc0] sm:$0xff]
        %v2611 = vld [vmem:[%s931 + $0xc8] sm:$0xff]
        %v2612 = vld [vmem:[%s931 + $0xd0] sm:$0xff]
        %v2613 = vld [vmem:[%s931 + $0xd8] sm:$0xff]
        %v2614 = vld [vmem:[%s931 + $0xe0] sm:$0xff]
        %v2615 = vld [vmem:[%s931 + $0xe8] sm:$0xff]
        %v2616 = vld [vmem:[%s931 + $0xf0] sm:$0xff]
        %v2617 = vld [vmem:[%s931 + $0xf8] sm:$0xff]
        %v2618 = vld [vmem:[%s935] sm:$0x3]
        %v2620 = vlaneseq
        %v2621 = vshrl.u32 %v2620, 7
        %v2622 = vsub.s32 0, %v2621
        %v2623 = vrot.slane %v2618, %v2622
        %v2624 = vlaneseq
        %v2625 = vshrl.u32 %v2624, 7
        %v2626 = vsub.s32 1, %v2625
        %v2627 = vrot.slane %v2618, %v2626
        %2630 = vmatprep.subr.mxu0 %v2587
        %2631 = vmatpush1.msra.mxu0 %v2586
        %2632 = vmatprep.subr.mxu0 %v2589
        %2633 = vmatpush1.msra.mxu0 %v2588
        %2634 = vmatprep.subr.mxu0 %v2591
        %2635 = vmatpush1.msra.mxu0 %v2590
        %2636 = vmatprep.subr.mxu0 %v2593
        %2637 = vmatpush1.msra.mxu0 %v2592
        %2638 = vmatprep.subr.mxu0 %v2595
        %2639 = vmatpush1.msra.mxu0 %v2594
        %2640 = vmatprep.subr.mxu0 %v2597
        %2641 = vmatpush1.msra.mxu0 %v2596
        %2642 = vmatprep.subr.mxu0 %v2599
        %2643 = vmatpush1.msra.mxu0 %v2598
        %2644 = vmatprep.subr.mxu0 %v2601
        %2645 = vmatpush1.msra.mxu0 %v2600
        %2646 = vmatprep.subr.mxu0 %v2603
        %2647 = vmatpush1.msra.mxu0 %v2602
        %2648 = vmatprep.subr.mxu0 %v2605
        %2649 = vmatpush1.msra.mxu0 %v2604
        %2650 = vmatprep.subr.mxu0 %v2607
        %2651 = vmatpush1.msra.mxu0 %v2606
        %2652 = vmatprep.subr.mxu0 %v2609
        %2653 = vmatpush1.msra.mxu0 %v2608
        %2654 = vmatprep.subr.mxu0 %v2611
        %2655 = vmatpush1.msra.mxu0 %v2610
        %2656 = vmatprep.subr.mxu0 %v2613
        %2657 = vmatpush1.msra.mxu0 %v2612
        %2658 = vmatprep.subr.mxu0 %v2615
        %2659 = vmatpush1.msra.mxu0 %v2614
        %2660 = vmatprep.subr.mxu0 %v2617
        %2661 = vmatpush1.msra.mxu0 %v2616
        %2662 = vmatprep.subr.mxu0 0.0
        %2663 = vmatpush1.msra.mxu0 0.0
        %2664 = vmatprep.subr.mxu0 0.0
        %2665 = vmatpush1.msra.mxu0 0.0
        %2666 = vmatprep.subr.mxu0 0.0
        %2667 = vmatpush1.msra.mxu0 0.0
        %2668 = vmatprep.subr.mxu0 0.0
        %2669 = vmatpush1.msra.mxu0 0.0
        %2670 = vmatprep.subr.mxu0 0.0
        %2671 = vmatpush1.msra.mxu0 0.0
        %2672 = vmatprep.subr.mxu0 0.0
        %2673 = vmatpush1.msra.mxu0 0.0
        %2674 = vmatprep.subr.mxu0 0.0
        %2675 = vmatpush1.msra.mxu0 0.0
        %2676 = vmatprep.subr.mxu0 0.0
        %2677 = vmatpush1.msra.mxu0 0.0
        %2678 = vmatprep.subr.mxu0 0.0
        %2679 = vmatpush1.msra.mxu0 0.0
        %2680 = vmatprep.subr.mxu0 0.0
        %2681 = vmatpush1.msra.mxu0 0.0
        %2682 = vmatprep.subr.mxu0 0.0
        %2683 = vmatpush1.msra.mxu0 0.0
        %2684 = vmatprep.subr.mxu0 0.0
        %2685 = vmatpush1.msra.mxu0 0.0
        %2686 = vmatprep.subr.mxu0 0.0
        %2687 = vmatpush1.msra.mxu0 0.0
        %2688 = vmatprep.subr.mxu0 0.0
        %2689 = vmatpush1.msra.mxu0 0.0
        %2690 = vmatprep.subr.mxu0 0.0
        %2691 = vmatpush1.msra.mxu0 0.0
        %2692 = vmatprep.subr.mxu0 0.0
        %2693 = vmatpush1.msra.mxu0 0.0
        %2694 = vmatprep.mubr.f32.mxu0 0.0
        %2695 = vmatmul.mubr.f32.gmra.mrb[0].mxu0 %v2583
        %v2696 = vpop.f32.mrb[0].mxu0
        %v2697 = vadd.f32 %v2623, %v2696
        %v2698 = vpop.f32.mrb[0].mxu0
        %v2699 = vadd.f32 %v2627, %v2698
        %2700 = vmatprep.mubr.f32.mxu0 0.0
        %2701 = vmatmul.mubr.f32.gmra.mrb[0].mxu0 %v2584
        %v2702 = vpop.f32.mrb[0].mxu0
        %v2703 = vadd.f32 %v2623, %v2702
        %v2704 = vpop.f32.mrb[0].mxu0
        %v2705 = vadd.f32 %v2627, %v2704
        %2706 = vmatprep.mubr.f32.mxu0 0.0
        %2707 = vmatmul.mubr.f32.gmra.mrb[0].mxu0 %v2585
        %v2708 = vpop.f32.mrb[0].mxu0
        %v2709 = vadd.f32 %v2623, %v2708
        %v2710 = vpop.f32.mrb[0].mxu0
        %v2711 = vadd.f32 %v2627, %v2710
        %2712 = vdwg.mxu0
        %v2713 = vmul.f32 %v2697, 0.5
        %v2714 = vmul.f32 %v2699, 0.5
        %v2715 = vmul.f32 %v2703, 0.5
        %v2716 = vmul.f32 %v2705, 0.5
        %v2717 = vmul.f32 %v2709, 0.5
        %v2718 = vmul.f32 %v2711, 0.5
        %v2719 = vmul.f32 %v2697, 0.70710677
        %v2720 = vmul.f32 %v2699, 0.70710677
        %v2721 = vmul.f32 %v2703, 0.70710677
        %v2722 = vmul.f32 %v2705, 0.70710677
        %v2723 = vmul.f32 %v2709, 0.70710677
        %v2724 = vmul.f32 %v2711, 0.70710677
        %vm2725 = vcmp.lt.f32.partialorder %v2719, 0.0
        %vm2726 = vcmp.lt.f32.partialorder %v2720, 0.0
        %vm2727 = vcmp.lt.f32.partialorder %v2721, 0.0
        %vm2728 = vcmp.lt.f32.partialorder %v2722, 0.0
        %vm2729 = vcmp.lt.f32.partialorder %v2723, 0.0
        %vm2730 = vcmp.lt.f32.partialorder %v2724, 0.0
        %v2731 = vsel %vm2725, -1.0, 1.0
        %v2732 = vsel %vm2726, -1.0, 1.0
        %v2733 = vsel %vm2727, -1.0, 1.0
        %v2734 = vsel %vm2728, -1.0, 1.0
        %v2735 = vsel %vm2729, -1.0, 1.0
        %v2736 = vsel %vm2730, -1.0, 1.0
        %v2737 = vand.u32 2147483647, %v2719
        %v2738 = vand.u32 2147483647, %v2720
        %v2739 = vand.u32 2147483647, %v2721
        %v2740 = vand.u32 2147483647, %v2722
        %v2741 = vand.u32 2147483647, %v2723
        %v2742 = vand.u32 2147483647, %v2724
        %v2743 = vmul.f32 %v2737, 0.3275911
        %v2744 = vmul.f32 %v2738, 0.3275911
        %v2745 = vmul.f32 %v2739, 0.3275911
        %v2746 = vmul.f32 %v2740, 0.3275911
        %v2747 = vmul.f32 %v2741, 0.3275911
        %v2748 = vmul.f32 %v2742, 0.3275911
        %v2749 = vadd.f32 %v2743, 1.0
        %v2750 = vadd.f32 %v2744, 1.0
        %v2751 = vadd.f32 %v2745, 1.0
        %v2752 = vadd.f32 %v2746, 1.0
        %v2753 = vadd.f32 %v2747, 1.0
        %v2754 = vadd.f32 %v2748, 1.0
        %v2755 = vrcp.pop %v2749
        %v2756 = vmul.f32 1.0, %v2755
        %v2757 = vrcp.pop %v2750
        %v2758 = vmul.f32 1.0, %v2757
        %v2759 = vrcp.pop %v2751
        %v2760 = vmul.f32 1.0, %v2759
        %v2761 = vrcp.pop %v2752
        %v2762 = vmul.f32 1.0, %v2761
        %v2763 = vrcp.pop %v2753
        %v2764 = vmul.f32 1.0, %v2763
        %v2765 = vrcp.pop %v2754
        %v2766 = vmul.f32 1.0, %v2765
        %v2767 = vmul.f32 %v2756, 1.0614054
        %v2768 = vmul.f32 %v2758, 1.0614054
        %v2769 = vmul.f32 %v2760, 1.0614054
        %v2770 = vmul.f32 %v2762, 1.0614054
        %v2771 = vmul.f32 %v2764, 1.0614054
        %v2772 = vmul.f32 %v2766, 1.0614054
        %v2773 = vadd.f32 %v2767, -1.4531521
        %v2774 = vadd.f32 %v2768, -1.4531521
        %v2775 = vadd.f32 %v2769, -1.4531521
        %v2776 = vadd.f32 %v2770, -1.4531521
        %v2777 = vadd.f32 %v2771, -1.4531521
        %v2778 = vadd.f32 %v2772, -1.4531521
        %v2779 = vmul.f32 %v2773, %v2756
        %v2780 = vmul.f32 %v2774, %v2758
        %v2781 = vmul.f32 %v2775, %v2760
        %v2782 = vmul.f32 %v2776, %v2762
        %v2783 = vmul.f32 %v2777, %v2764
        %v2784 = vmul.f32 %v2778, %v2766
        %v2785 = vadd.f32 %v2779, 1.4214138
        %v2786 = vadd.f32 %v2780, 1.4214138
        %v2787 = vadd.f32 %v2781, 1.4214138
        %v2788 = vadd.f32 %v2782, 1.4214138
        %v2789 = vadd.f32 %v2783, 1.4214138
        %v2790 = vadd.f32 %v2784, 1.4214138
        %v2791 = vmul.f32 %v2785, %v2756
        %v2792 = vmul.f32 %v2786, %v2758
        %v2793 = vmul.f32 %v2787, %v2760
        %v2794 = vmul.f32 %v2788, %v2762
        %v2795 = vmul.f32 %v2789, %v2764
        %v2796 = vmul.f32 %v2790, %v2766
        %v2797 = vadd.f32 %v2791, -0.28449672
        %v2798 = vadd.f32 %v2792, -0.28449672
        %v2799 = vadd.f32 %v2793, -0.28449672
        %v2800 = vadd.f32 %v2794, -0.28449672
        %v2801 = vadd.f32 %v2795, -0.28449672
        %v2802 = vadd.f32 %v2796, -0.28449672
        %v2803 = vmul.f32 %v2797, %v2756
        %v2804 = vmul.f32 %v2798, %v2758
        %v2805 = vmul.f32 %v2799, %v2760
        %v2806 = vmul.f32 %v2800, %v2762
        %v2807 = vmul.f32 %v2801, %v2764
        %v2808 = vmul.f32 %v2802, %v2766
        %v2809 = vadd.f32 %v2803, 0.2548296
        %v2810 = vadd.f32 %v2804, 0.2548296
        %v2811 = vadd.f32 %v2805, 0.2548296
        %v2812 = vadd.f32 %v2806, 0.2548296
        %v2813 = vadd.f32 %v2807, 0.2548296
        %v2814 = vadd.f32 %v2808, 0.2548296
        %v2815 = vmul.f32 %v2809, %v2756
        %v2816 = vmul.f32 %v2810, %v2758
        %v2817 = vmul.f32 %v2811, %v2760
        %v2818 = vmul.f32 %v2812, %v2762
        %v2819 = vmul.f32 %v2813, %v2764
        %v2820 = vmul.f32 %v2814, %v2766
        %v2821 = vsub.f32 0.0, %v2737
        %v2822 = vsub.f32 0.0, %v2738
        %v2823 = vsub.f32 0.0, %v2739
        %v2824 = vsub.f32 0.0, %v2740
        %v2825 = vsub.f32 0.0, %v2741
        %v2826 = vsub.f32 0.0, %v2742
        %v2827 = vmul.f32 %v2821, %v2737
        %v2828 = vmul.f32 %v2822, %v2738
        %v2829 = vmul.f32 %v2823, %v2739
        %v2830 = vmul.f32 %v2824, %v2740
        %v2831 = vmul.f32 %v2825, %v2741
        %v2832 = vmul.f32 %v2826, %v2742
        %v2833 = vmul.f32 %v2827, 1.442695
        %v2834 = vpow.pop %v2833
        %v2835 = vmul.f32 %v2828, 1.442695
        %v2836 = vpow.pop %v2835
        %v2837 = vmul.f32 %v2829, 1.442695
        %v2838 = vpow.pop %v2837
        %v2839 = vmul.f32 %v2830, 1.442695
        %v2840 = vpow.pop %v2839
        %v2841 = vmul.f32 %v2831, 1.442695
        %v2842 = vpow.pop %v2841
        %v2843 = vmul.f32 %v2832, 1.442695
        %v2844 = vpow.pop %v2843
        %v2845 = vmul.f32 %v2815, %v2834
        %v2846 = vmul.f32 %v2816, %v2836
        %v2847 = vmul.f32 %v2817, %v2838
        %v2848 = vmul.f32 %v2818, %v2840
        %v2849 = vmul.f32 %v2819, %v2842
        %v2850 = vmul.f32 %v2820, %v2844
        %v2851 = vsub.f32 1.0, %v2845
        %v2852 = vsub.f32 1.0, %v2846
        %v2853 = vsub.f32 1.0, %v2847
        %v2854 = vsub.f32 1.0, %v2848
        %v2855 = vsub.f32 1.0, %v2849
        %v2856 = vsub.f32 1.0, %v2850
        %v2857 = vmul.f32 %v2731, %v2851
        %v2858 = vmul.f32 %v2732, %v2852
        %v2859 = vmul.f32 %v2733, %v2853
        %v2860 = vmul.f32 %v2734, %v2854
        %v2861 = vmul.f32 %v2735, %v2855
        %v2862 = vmul.f32 %v2736, %v2856
        %v2863 = vadd.f32 %v2857, 1.0
        %v2864 = vadd.f32 %v2858, 1.0
        %v2865 = vadd.f32 %v2859, 1.0
        %v2866 = vadd.f32 %v2860, 1.0
        %v2867 = vadd.f32 %v2861, 1.0
        %v2868 = vadd.f32 %v2862, 1.0
        %v2869 = vmul.f32 %v2713, %v2863
        %v2870 = vmul.f32 %v2714, %v2864
        %v2871 = vmul.f32 %v2715, %v2865
        %v2872 = vmul.f32 %v2716, %v2866
        %v2873 = vmul.f32 %v2717, %v2867
        %v2874 = vmul.f32 %v2718, %v2868
        %v2875 = vld [vmem:[%s940] sm:$0xff]
        %v2876 = vld [vmem:[%s940 + $0x8] sm:$0xff]
        %v2877 = vld [vmem:[%s940 + $0x10] sm:$0xff]
        %v2878 = vld [vmem:[%s940 + $0x18] sm:$0xff]
        %v2879 = vld [vmem:[%s940 + $0x20] sm:$0xff]
        %v2880 = vld [vmem:[%s940 + $0x28] sm:$0xff]
        %v2881 = vld [vmem:[%s940 + $0x30] sm:$0xff]
        %v2882 = vld [vmem:[%s940 + $0x38] sm:$0xff]
        %v2883 = vld [vmem:[%s940 + $0x40] sm:$0xff]
        %v2884 = vld [vmem:[%s940 + $0x48] sm:$0xff]
        %v2885 = vld [vmem:[%s940 + $0x50] sm:$0xff]
        %v2886 = vld [vmem:[%s940 + $0x58] sm:$0xff]
        %v2887 = vld [vmem:[%s940 + $0x60] sm:$0xff]
        %v2888 = vld [vmem:[%s940 + $0x68] sm:$0xff]
        %v2889 = vld [vmem:[%s940 + $0x70] sm:$0xff]
        %v2890 = vld [vmem:[%s940 + $0x78] sm:$0xff]
        %v2891 = vld [vmem:[%s940 + $0x80] sm:$0xff]
        %v2892 = vld [vmem:[%s940 + $0x88] sm:$0xff]
        %v2893 = vld [vmem:[%s940 + $0x90] sm:$0xff]
        %v2894 = vld [vmem:[%s940 + $0x98] sm:$0xff]
        %v2895 = vld [vmem:[%s940 + $0xa0] sm:$0xff]
        %v2896 = vld [vmem:[%s940 + $0xa8] sm:$0xff]
        %v2897 = vld [vmem:[%s940 + $0xb0] sm:$0xff]
        %v2898 = vld [vmem:[%s940 + $0xb8] sm:$0xff]
        %v2899 = vld [vmem:[%s940 + $0xc0] sm:$0xff]
        %v2900 = vld [vmem:[%s940 + $0xc8] sm:$0xff]
        %v2901 = vld [vmem:[%s940 + $0xd0] sm:$0xff]
        %v2902 = vld [vmem:[%s940 + $0xd8] sm:$0xff]
        %v2903 = vld [vmem:[%s940 + $0xe0] sm:$0xff]
        %v2904 = vld [vmem:[%s940 + $0xe8] sm:$0xff]
        %v2905 = vld [vmem:[%s940 + $0xf0] sm:$0xff]
        %v2906 = vld [vmem:[%s940 + $0xf8] sm:$0xff]
        %2907 = vmatprep.subr.mxu0 0.0
        %2908 = vmatpush1.msra.mxu0 %v2875
        %2909 = vmatprep.subr.mxu0 0.0
        %2910 = vmatpush1.msra.mxu0 %v2876
        %2911 = vmatprep.subr.mxu0 0.0
        %2912 = vmatpush1.msra.mxu0 %v2877
        %2913 = vmatprep.subr.mxu0 0.0
        %2914 = vmatpush1.msra.mxu0 %v2878
        %2915 = vmatprep.subr.mxu0 0.0
        %2916 = vmatpush1.msra.mxu0 %v2879
        %2917 = vmatprep.subr.mxu0 0.0
        %2918 = vmatpush1.msra.mxu0 %v2880
        %2919 = vmatprep.subr.mxu0 0.0
        %2920 = vmatpush1.msra.mxu0 %v2881
        %2921 = vmatprep.subr.mxu0 0.0
        %2922 = vmatpush1.msra.mxu0 %v2882
        %2923 = vmatprep.subr.mxu0 0.0
        %2924 = vmatpush1.msra.mxu0 %v2883
        %2925 = vmatprep.subr.mxu0 0.0
        %2926 = vmatpush1.msra.mxu0 %v2884
        %2927 = vmatprep.subr.mxu0 0.0
        %2928 = vmatpush1.msra.mxu0 %v2885
        %2929 = vmatprep.subr.mxu0 0.0
        %2930 = vmatpush1.msra.mxu0 %v2886
        %2931 = vmatprep.subr.mxu0 0.0
        %2932 = vmatpush1.msra.mxu0 %v2887
        %2933 = vmatprep.subr.mxu0 0.0
        %2934 = vmatpush1.msra.mxu0 %v2888
        %2935 = vmatprep.subr.mxu0 0.0
        %2936 = vmatpush1.msra.mxu0 %v2889
        %2937 = vmatprep.subr.mxu0 0.0
        %2938 = vmatpush1.msra.mxu0 %v2890
        %2939 = vmatprep.subr.mxu0 0.0
        %2940 = vmatpush1.msra.mxu0 %v2891
        %2941 = vmatprep.subr.mxu0 0.0
        %2942 = vmatpush1.msra.mxu0 %v2892
        %2943 = vmatprep.subr.mxu0 0.0
        %2944 = vmatpush1.msra.mxu0 %v2893
        %2945 = vmatprep.subr.mxu0 0.0
        %2946 = vmatpush1.msra.mxu0 %v2894
        %2947 = vmatprep.subr.mxu0 0.0
        %2948 = vmatpush1.msra.mxu0 %v2895
        %2949 = vmatprep.subr.mxu0 0.0
        %2950 = vmatpush1.msra.mxu0 %v2896
        %2951 = vmatprep.subr.mxu0 0.0
        %2952 = vmatpush1.msra.mxu0 %v2897
        %2953 = vmatprep.subr.mxu0 0.0
        %2954 = vmatpush1.msra.mxu0 %v2898
        %2955 = vmatprep.subr.mxu0 0.0
        %2956 = vmatpush1.msra.mxu0 %v2899
        %2957 = vmatprep.subr.mxu0 0.0
        %2958 = vmatpush1.msra.mxu0 %v2900
        %2959 = vmatprep.subr.mxu0 0.0
        %2960 = vmatpush1.msra.mxu0 %v2901
        %2961 = vmatprep.subr.mxu0 0.0
        %2962 = vmatpush1.msra.mxu0 %v2902
        %2963 = vmatprep.subr.mxu0 0.0
        %2964 = vmatpush1.msra.mxu0 %v2903
        %2965 = vmatprep.subr.mxu0 0.0
        %2966 = vmatpush1.msra.mxu0 %v2904
        %2967 = vmatprep.subr.mxu0 0.0
        %2968 = vmatpush1.msra.mxu0 %v2905
        %2969 = vmatprep.subr.mxu0 0.0
        %2970 = vmatpush1.msra.mxu0 %v2906
        %2971 = vmatprep.mubr.f32.mxu0 %v2870
        %2972 = vmatmul.mubr.f32.gmra.mrb[0].mxu0 %v2869
        %v2973 = vpop.f32.mrb[0].mxu0
        %v2974 = vadd.f32 0.0, %v2973
        %v2975 = vpop.f32.mrb[0].mxu0
        %2976 = vmatprep.mubr.f32.mxu0 %v2872
        %2977 = vmatmul.mubr.f32.gmra.mrb[0].mxu0 %v2871
        %v2978 = vpop.f32.mrb[0].mxu0
        %v2979 = vadd.f32 0.0, %v2978
        %v2980 = vpop.f32.mrb[0].mxu0
        %2981 = vmatprep.mubr.f32.mxu0 %v2874
        %2982 = vmatmul.mubr.f32.gmra.mrb[0].mxu0 %v2873
        %v2983 = vpop.f32.mrb[0].mxu0
        %v2984 = vadd.f32 0.0, %v2983
        %v2985 = vpop.f32.mrb[0].mxu0
        %2986 = vdwg.mxu0
        %v2987 = vadd.f32 %v2530, %v2974
        %v2988 = vadd.f32 %v2531, %v2979
        %v2989 = vadd.f32 %v2532, %v2984
        %v2990 = vld [vmem:[%s943] sm:$0x1]
        %v2992 = vlaneseq
        %v2993 = vshrl.u32 %v2992, 7
        %v2994 = vsub.s32 0, %v2993
        %v2995 = vrot.slane %v2990, %v2994
        %v2997 = vadd.f32 %v2987, %v2995
        %v2998 = vadd.f32 %v2988, %v2995
        %v2999 = vadd.f32 %v2989, %v2995
        %3000 = vst [vmem:[#allocation2] sm:$0xff] %v2997
        %3001 = vst [vmem:[#allocation2 + $0x8] sm:$0xff] %v2998
        %3002 = vst [vmem:[#allocation2 + $0x10] sm:$0xff] %v2999
        %p3003 = scmp.eq.s32.totalorder %s45, 1
        // Predicated region
        $region129: #{vit_forward.1} parent=103 // pred_check
          %p3004 = pneg %p3003
        $region130: #{vit_forward.1} parent=103 // pred_check_branch
          %3006 = sbr.rel (%p3004) target = $region132
        $region131: #{vit_forward.1} parent=103 // pred_region
          %v3007 = vld [vmem:[%s17] sm:$0x1]
          %v3008 = vld [vmem:[%s18] sm:$0x1]
          %vm3009 = vcmask 1040384
          %v3010 = vsel %vm3009, %v2997, 0.0
          %3011 = vadd.xlane.f32.xlu0 %v3010
          %v3012 = vpop.xlane.xlu0 %3011
          %v3013 = vmul.f32 %v3012, %v1069
          %v3014 = vsub.f32 %v2997, %v3013
          %v3015 = vmul.f32 %v3014, %v3014
          %v3016 = vsel %vm3009, %v3015, 0.0
          %3017 = vadd.xlane.f32.xlu0 %v3016
          %v3018 = vpop.xlane.xlu0 %3017
          %v3019 = vmul.f32 %v3018, %v1069
          %v3020 = vadd.f32 %v3019, 1e-05
          %v3021 = vrsqrt.pop %v3020
          %v3022 = vmul.f32 %v3014, %v3021
          %v3023 = vmul.f32 %v3022, %v3007
          %v3024 = vadd.f32 %v3023, %v3008
          %v3025 = vld [vmem:[%s19] sm:$0xff]
          %v3026 = vld [vmem:[%s19 + $0x8] sm:$0xff]
          %v3027 = vld [vmem:[%s19 + $0x10] sm:$0xff]
          %v3028 = vld [vmem:[%s19 + $0x18] sm:$0xff]
          %v3029 = vld [vmem:[%s19 + $0x20] sm:$0xff]
          %v3030 = vld [vmem:[%s19 + $0x28] sm:$0xff]
          %v3031 = vld [vmem:[%s19 + $0x30] sm:$0xff]
          %v3032 = vld [vmem:[%s19 + $0x38] sm:$0xff]
          %v3033 = vld [vmem:[%s19 + $0x40] sm:$0xff]
          %v3034 = vld [vmem:[%s19 + $0x48] sm:$0xff]
          %v3035 = vld [vmem:[%s19 + $0x50] sm:$0xff]
          %v3036 = vld [vmem:[%s19 + $0x58] sm:$0xff]
          %v3037 = vld [vmem:[%s19 + $0x60] sm:$0xff]
          %v3038 = vld [vmem:[%s19 + $0x68] sm:$0xff]
          %v3039 = vld [vmem:[%s19 + $0x70] sm:$0xff]
          %v3040 = vld [vmem:[%s19 + $0x78] sm:$0xff]
          %v3041 = vld [vmem:[%s20] sm:$0x1]
          %3042 = vmatprep.subr.mxu0 0.0
          %3043 = vmatpush1.msra.mxu0 %v3025
          %3044 = vmatprep.subr.mxu0 0.0
          %3045 = vmatpush1.msra.mxu0 %v3026
          %3046 = vmatprep.subr.mxu0 0.0
          %3047 = vmatpush1.msra.mxu0 %v3027
          %3048 = vmatprep.subr.mxu0 0.0
          %3049 = vmatpush1.msra.mxu0 %v3028
          %3050 = vmatprep.subr.mxu0 0.0
          %3051 = vmatpush1.msra.mxu0 %v3029
          %3052 = vmatprep.subr.mxu0 0.0
          %3053 = vmatpush1.msra.mxu0 %v3030
          %3054 = vmatprep.subr.mxu0 0.0
          %3055 = vmatpush1.msra.mxu0 %v3031
          %3056 = vmatprep.subr.mxu0 0.0
          %3057 = vmatpush1.msra.mxu0 %v3032
          %3058 = vmatprep.subr.mxu0 0.0
          %3059 = vmatpush1.msra.mxu0 %v3033
          %3060 = vmatprep.subr.mxu0 0.0
          %3061 = vmatpush1.msra.mxu0 %v3034
          %3062 = vmatprep.subr.mxu0 0.0
          %3063 = vmatpush1.msra.mxu0 %v3035
          %3064 = vmatprep.subr.mxu0 0.0
          %3065 = vmatpush1.msra.mxu0 %v3036
          %3066 = vmatprep.subr.mxu0 0.0
          %3067 = vmatpush1.msra.mxu0 %v3037
          %3068 = vmatprep.subr.mxu0 0.0
          %3069 = vmatpush1.msra.mxu0 %v3038
          %3070 = vmatprep.subr.mxu0 0.0
          %3071 = vmatpush1.msra.mxu0 %v3039
          %3072 = vmatprep.subr.mxu0 0.0
          %3073 = vmatpush1.msra.mxu0 %v3040
          %3074 = vmatprep.subr.mxu0 0.0
          %3075 = vmatpush1.msra.mxu0 0.0
          %3076 = vmatprep.subr.mxu0 0.0
          %3077 = vmatpush1.msra.mxu0 0.0
          %3078 = vmatprep.subr.mxu0 0.0
          %3079 = vmatpush1.msra.mxu0 0.0
          %3080 = vmatprep.subr.mxu0 0.0
          %3081 = vmatpush1.msra.mxu0 0.0
          %3082 = vmatprep.subr.mxu0 0.0
          %3083 = vmatpush1.msra.mxu0 0.0
          %3084 = vmatprep.subr.mxu0 0.0
          %3085 = vmatpush1.msra.mxu0 0.0
          %3086 = vmatprep.subr.mxu0 0.0
          %3087 = vmatpush1.msra.mxu0 0.0
          %3088 = vmatprep.subr.mxu0 0.0
          %3089 = vmatpush1.msra.mxu0 0.0
          %3090 = vmatprep.subr.mxu0 0.0
          %3091 = vmatpush1.msra.mxu0 0.0
          %3092 = vmatprep.subr.mxu0 0.0
          %3093 = vmatpush1.msra.mxu0 0.0
          %3094 = vmatprep.subr.mxu0 0.0
          %3095 = vmatpush1.msra.mxu0 0.0
          %3096 = vmatprep.subr.mxu0 0.0
          %3097 = vmatpush1.msra.mxu0 0.0
          %3098 = vmatprep.subr.mxu0 0.0
          %3099 = vmatpush1.msra.mxu0 0.0
          %3100 = vmatprep.subr.mxu0 0.0
          %3101 = vmatpush1.msra.mxu0 0.0
          %3102 = vmatprep.subr.mxu0 0.0
          %3103 = vmatpush1.msra.mxu0 0.0
          %3104 = vmatprep.subr.mxu0 0.0
          %3105 = vmatpush1.msra.mxu0 0.0
          %3106 = vmatprep.mubr.f32.mxu0 0.0
          %3107 = vmatmul.mubr.f32.gmra.mrb[0].mxu0 %v3024
          %v3108 = vpop.f32.mrb[0].mxu0
          %v3109 = vadd.f32 %v3041, %v3108
          %v3110 = vpop.f32.mrb[0].mxu0
          %3111 = vdwg.mxu0
          %vm3112 = vcmask 122880
          %3113 = vst.msk [vmem:[%s901] sm:$0x1] %vm3112, %v3109
        $region132: #{vit_forward.1} parent=103 // pred_fallthru
          _
        %s3114 = sand.u32 %s566, 1
        %s3115 = scalar_lea.sflag [#allocation6], %s3114
        %s3116 = sand.u32 %s566, 1
        %s3117 = scalar_lea.vmem [#allocation13], %s3116
        // Predicated region
        $region133: #{vit_forward.1} parent=103 // pred_check
          %p3118 = pneg %p576
        $region134: #{vit_forward.1} parent=103 // pred_check_branch
          %3120 = sbr.rel (%p3118) target = $region136
        $region135: #{vit_forward.1} parent=103 // pred_region
          %s3122 = ssub.s32 16, 16
          %3123 = vsyncadd %s3115, %s3122
          %s3124 = smul.addr %s44, 16
          %s3125 = scalar_lea.hbm %s21, %s3124
          %s3127 = sshll.u32 %s3117, 4
          %s3128 = int_to_ptr.vmem [resolvable:$true] %s3127
          %3130 = dma.vmem_to_hbm [thread:$0]  %s3128, 16, %s3125, %s3115
        $region136: #{vit_forward.1} parent=103 // pred_fallthru
          _
      $region104: #{vit_forward.1} parent=5 // pred_fallthru
        _
      %p3131 = scmp.le.s32.totalorder 2, %s35
      // Predicated region
      $region137: #{vit_forward.1} parent=5 // pred_check
        %p3132 = pneg %p3131
      $region138: #{vit_forward.1} parent=5 // pred_check_branch
        %3134 = sbr.rel (%p3132) target = $region140
      $region139: #{vit_forward.1} parent=5 // pred_region
        %s3135 = ssub.s32 %s35, 2
        // Predicated region
        $region141: #{vit_forward.1} parent=139 // pred_check
          %p3136 = pneg %p582
        $region142: #{vit_forward.1} parent=139 // pred_check_branch
          %3138 = sbr.rel (%p3136) target = $region144
        $region143: #{vit_forward.1} parent=139 // pred_region
          %s3139 = sand.u32 %s567, 1
          %s3140 = scalar_lea.sflag [#allocation6], %s3139
          %s3141 = sand.u32 %s567, 1
          %s3142 = scalar_lea.vmem [#allocation13], %s3141
          %3143 = dma.done %s3140, 16
        $region144: #{vit_forward.1} parent=139 // pred_fallthru
          _
      $region140: #{vit_forward.1} parent=5 // pred_fallthru
        _
    $region6: #{vit_forward.1} parent=1 // loop_footer
      %s39 = sadd.s32 1, %s35
    $region7: #{vit_forward.1} parent=1 // loop_footer_branch
      %34 = sbr.rel target = $region3
    $region8: #{vit_forward.1} parent=1 // loop_exit
      _
    %3144 = vsyncpa [#allocation5], 1
    %s3145 = scalar_lea.sflag [#allocation5], 1
    %3146 = vsyncpa %s3145, 1
    %3147 = vsyncpa [#allocation8], 1
    %3148 = vsyncpa [#allocation11], 1
    %s3149 = scalar_lea.sflag [#allocation11], 1
    %3150 = vsyncpa %s3149, 1
    %3151 = vsyncpa [#allocation6], 1
    %s3152 = scalar_lea.sflag [#allocation6], 1
    %3153 = vsyncpa %s3152, 1

</llo_original>
